<compile_context>
chip_gen: v7x
topology: tpu7x:2x2x1
jax: 0.10.0
libtpu: 0.0.40
codegen_flags: <defaults>
</compile_context>

<pallas_src>
import math
from functools import partial

import jax
import jax.numpy as jnp
from jax.experimental import pallas as pl
from jax.experimental.pallas import tpu as pltpu

# ----------------------------- small, lane-friendly config -----------------------------
VOCAB    = 256          # vocab_size
HIDDEN   = 128          # hidden_dim
FF       = HIDDEN * 4   # ff_hidden_dim
N_LAYERS = 2            # n_layers (scaled down from 12)
N_HEADS  = 4            # n_heads  (scaled down from 12)
HEAD_DIM = HIDDEN // N_HEADS
SEQ      = 8            # sequence length of the example batch
MAX_SEQ  = 16           # max_seq (positional table size)
BATCH    = 2
PAD_IDX  = 0
NEG_INF  = -1e9
LN_EPS   = 1e-5

WEIGHT_DTYPE = jnp.bfloat16   # weight storage / MXU operand dtype
MXU_DTYPE    = jnp.bfloat16   # activation dtype fed to the MXU (accumulation stays f32)

# -------- fused embedding table slab: rows [tok | pos | seg | zero-pad to x8] -----------
TOK_OFF      = 0
POS_OFF      = VOCAB
SEG_OFF      = VOCAB + MAX_SEQ
EMB_ROWS     = VOCAB + MAX_SEQ + 2
EMB_ROWS_PAD = ((EMB_ROWS + 7) // 8) * 8

# -------- f32 bias / LayerNorm vector slab: one row per vector, lanes padded to FF ------
VEC_COLS = FF                                  # 512 = widest vector (b1)
VEC_EMB_G, VEC_EMB_B, VEC_MLM_B = 0, 1, 2
VEC_LAYER_BASE = 3
VL_BQKV, VL_BO, VL_LN1G, VL_LN1B, VL_B1, VL_B2, VL_LN2G, VL_LN2B = range(8)
VEC_PER_LAYER = 8
VEC_ROWS = VEC_LAYER_BASE + N_LAYERS * VEC_PER_LAYER

# -------- bf16 fused weight slab A lane offsets: [ wq|wk|wv | wo | w1 ] -----------------
WA_QKV0 = 0
WA_WO0  = 3 * HIDDEN
WA_W10  = 4 * HIDDEN
WA_COLS = 4 * HIDDEN + FF                      # 1024


# ----------------------------------- kernel helpers ------------------------------------
def _layer_norm(x, g, b):
    mu = jnp.mean(x, axis=-1, keepdims=True)
    var = jnp.mean((x - mu) ** 2, axis=-1, keepdims=True)
    return (x - mu) * jax.lax.rsqrt(var + LN_EPS) * g + b


def _gelu(x):
    # tanh-approximate GELU (activation='gelu' in the encoder)
    c = math.sqrt(2.0 / math.pi)
    return 0.5 * x * (1.0 + jnp.tanh(c * (x + 0.044715 * x * x * x)))


# ------------------------------- fused BERT + MLM kernel -------------------------------
def bert_mlm_kernel(ids_ref, seg_ref, emb_tab_ref, vec_ref, w_a_ref, w_b_ref, mlm_w_ref,
                    out_ref, x_scr, *, use_segment):
    # ---------------- preamble: in-kernel embedding gather + padding mask ----------------
    row_pos  = jax.lax.broadcasted_iota(jnp.int32, (BATCH, SEQ), 0)
    lane_pos = jax.lax.broadcasted_iota(jnp.int32, (BATCH, SEQ), 1)
    mask_bs = jnp.zeros((BATCH, SEQ), jnp.float32)          # additive key-padding mask

    for b in range(BATCH):                                   # static unroll (B*S = 16 rows)
        for s in range(SEQ):
            tid = ids_ref[b, s]                              # SMEM scalar token id
            row = (emb_tab_ref[pl.ds(TOK_OFF + tid, 1), :]   # token embedding (pad row = 0)
                   + emb_tab_ref[POS_OFF + s:POS_OFF + s + 1, :])   # positional embedding
            if use_segment:
                sid = seg_ref[b, s]                          # SMEM scalar segment id
                row = row + emb_tab_ref[pl.ds(SEG_OFF + sid, 1), :]
            i = b * SEQ + s
            x_scr[i:i + 1, :] = row
            pad_val = jnp.where(tid == PAD_IDX, NEG_INF, 0.0)          # scalar select
            mask_bs = jnp.where((row_pos == b) & (lane_pos == s), pad_val, mask_bs)

    # BERTInputBlock LayerNorm (dropout = identity)
    x = _layer_norm(x_scr[...],
                    vec_ref[VEC_EMB_G:VEC_EMB_G + 1, :HIDDEN],
                    vec_ref[VEC_EMB_B:VEC_EMB_B + 1, :HIDDEN])          # (B*S, H) f32

    # additive mask for the head/batch-stacked score block, built ONCE: (B*H*S, S)
    add_mask = jnp.concatenate(
        [jnp.broadcast_to(mask_bs[b:b + 1, :], (N_HEADS * SEQ, SEQ)) for b in range(BATCH)],
        axis=0)

    scale = 1.0 / math.sqrt(HEAD_DIM)

    # ------------------------------ TransformerEncoderBlock ------------------------------
    for l in range(N_LAYERS):                                # static unroll over layers
        base = VEC_LAYER_BASE + l * VEC_PER_LAYER

        # fused QKV projection: (B*S, H) @ (H, 3H); result kept f32 for later slicing
        qkv = jnp.dot(x.astype(MXU_DTYPE), w_a_ref[l, :, WA_QKV0:WA_QKV0 + 3 * HIDDEN],
                      preferred_element_type=jnp.float32) \
              + vec_ref[base + VL_BQKV:base + VL_BQKV + 1, :3 * HIDDEN]

        # scores per (batch, head), sublane-stacked -> ONE masked softmax for the layer
        tiles = []
        for b in range(BATCH):
            r0 = b * SEQ
            for h in range(N_HEADS):
                c0 = h * HEAD_DIM
                q = qkv[r0:r0 + SEQ, c0:c0 + HEAD_DIM]                         # f32 slices,
                k = qkv[r0:r0 + SEQ, HIDDEN + c0:HIDDEN + c0 + HEAD_DIM]       # bf16 at use
                tiles.append(jax.lax.dot_general(
                    q.astype(MXU_DTYPE), k.astype(MXU_DTYPE),
                    (((1,), (1,)), ((), ())), preferred_element_type=jnp.float32))
        scores = jnp.concatenate(tiles, axis=0) * scale + add_mask             # (B*H*S, S)
        scores = scores - jnp.max(scores, axis=-1, keepdims=True)
        p = jnp.exp(scores)
        p = p * pl.reciprocal(jnp.sum(p, axis=-1, keepdims=True), approx=True)

        # per-head context; lane-concat heads, sublane-concat batches -> ONE Wo matmul
        ctx_rows = []
        for b in range(BATCH):
            r0 = b * SEQ
            heads = []
            for h in range(N_HEADS):
                c0 = h * HEAD_DIM
                p_bh = p[(b * N_HEADS + h) * SEQ:(b * N_HEADS + h + 1) * SEQ, :]  # (S, S)
                v_bh = qkv[r0:r0 + SEQ, 2 * HIDDEN + c0:2 * HIDDEN + c0 + HEAD_DIM]
                heads.append(jnp.dot(p_bh.astype(MXU_DTYPE), v_bh.astype(MXU_DTYPE),
                                     preferred_element_type=jnp.float32))         # (S, dh)
            ctx_rows.append(jnp.concatenate(heads, axis=1))                        # (S, H)
        ctx = jnp.concatenate(ctx_rows, axis=0)                                    # (B*S, H)
        attn = jnp.dot(ctx.astype(MXU_DTYPE), w_a_ref[l, :, WA_WO0:WA_WO0 + HIDDEN],
                       preferred_element_type=jnp.float32) \
               + vec_ref[base + VL_BO:base + VL_BO + 1, :HIDDEN]

        # post-LN residual #1
        h1 = _layer_norm(x + attn,
                         vec_ref[base + VL_LN1G:base + VL_LN1G + 1, :HIDDEN],
                         vec_ref[base + VL_LN1B:base + VL_LN1B + 1, :HIDDEN])

        # feed-forward with GELU
        ff = jnp.dot(h1.astype(MXU_DTYPE), w_a_ref[l, :, WA_W10:WA_W10 + FF],
                     preferred_element_type=jnp.float32) \
             + vec_ref[base + VL_B1:base + VL_B1 + 1, :FF]
        ff = _gelu(ff)
        ff = jnp.dot(ff.astype(MXU_DTYPE), w_b_ref[l],
                     preferred_element_type=jnp.float32) \
             + vec_ref[base + VL_B2:base + VL_B2 + 1, :HIDDEN]

        # post-LN residual #2
        x = _layer_norm(h1 + ff,
                        vec_ref[base + VL_LN2G:base + VL_LN2G + 1, :HIDDEN],
                        vec_ref[base + VL_LN2B:base + VL_LN2B + 1, :HIDDEN])

    # --------------- MaskedLanguageModelTask: Linear(H, V) + LogSoftmax ------------------
    logits = jnp.dot(x.astype(MXU_DTYPE), mlm_w_ref[...],
                     preferred_element_type=jnp.float32) \
             + vec_ref[VEC_MLM_B:VEC_MLM_B + 1, :VOCAB]                          # (B*S, V)
    m = jnp.max(logits, axis=-1, keepdims=True)
    lse = jnp.log(jnp.sum(jnp.exp(logits - m), axis=-1, keepdims=True)) + m
    out_ref[...] = logits - lse


# ----------------------------------- parameter setup -----------------------------------
def init_params(key):
    def nrm(k, shape, dtype=jnp.float32):
        return (0.02 * jax.random.normal(k, shape)).astype(dtype)

    keys = jax.random.split(key, 4 + N_LAYERS)

    tok_emb = nrm(keys[0], (VOCAB, HIDDEN)).at[PAD_IDX].set(0.0)   # padding_idx row = 0
    pos_emb = nrm(keys[1], (MAX_SEQ, HIDDEN))
    seg_emb = nrm(keys[2], (2, HIDDEN))
    emb_tab = jnp.concatenate(
        [tok_emb, pos_emb, seg_emb,
         jnp.zeros((EMB_ROWS_PAD - EMB_ROWS, HIDDEN), jnp.float32)], axis=0)

    mlm_w = nrm(keys[3], (HIDDEN, VOCAB), WEIGHT_DTYPE)

    # consolidated f32 bias / LayerNorm vector slab (biases zero, LN gammas one)
    vec = jnp.zeros((VEC_ROWS, VEC_COLS), jnp.float32)
    vec = vec.at[VEC_EMB_G, :HIDDEN].set(1.0)

    w_a_layers, w_b_layers = [], []
    for l in range(N_LAYERS):
        lk = jax.random.split(keys[4 + l], 6)
        wq = nrm(lk[0], (HIDDEN, HIDDEN))
        wk = nrm(lk[1], (HIDDEN, HIDDEN))
        wv = nrm(lk[2], (HIDDEN, HIDDEN))
        wo = nrm(lk[3], (HIDDEN, HIDDEN))
        w1 = nrm(lk[4], (HIDDEN, FF))
        w2 = nrm(lk[5], (FF, HIDDEN))
        w_a_layers.append(jnp.concatenate([wq, wk, wv, wo, w1], axis=1).astype(WEIGHT_DTYPE))
        w_b_layers.append(w2.astype(WEIGHT_DTYPE))
        base = VEC_LAYER_BASE + l * VEC_PER_LAYER
        vec = vec.at[base + VL_LN1G, :HIDDEN].set(1.0)
        vec = vec.at[base + VL_LN2G, :HIDDEN].set(1.0)

    return {
        "emb_tab": emb_tab,                              # (280, 128)   f32
        "vec":     vec,                                  # (19, 512)    f32
        "w_a":     jnp.stack(w_a_layers, axis=0),        # (L, 128, 1024) bf16
        "w_b":     jnp.stack(w_b_layers, axis=0),        # (L, 512, 128)  bf16
        "mlm_w":   mlm_w,                                # (128, 256)     bf16
    }


# ----------------------------------- full forward pass ---------------------------------
def bert_mlm_forward(params, x_input, x_segment=None):
    """x_input: (B, S) int32 token ids. Returns (B, S, VOCAB) log-probabilities."""
    B, S = x_input.shape
    assert B == BATCH and S == SEQ, "kernel is specialized to (BATCH, SEQ)"
    use_segment = x_segment is not None
    if x_segment is None:
        x_segment = jnp.zeros_like(x_input)

    vmem = pl.BlockSpec(memory_space=pltpu.MemorySpace.VMEM)
    smem = pl.BlockSpec(memory_space=pltpu.MemorySpace.SMEM)

    out_flat = pl.pallas_call(
        partial(bert_mlm_kernel, use_segment=use_segment),
        out_shape=jax.ShapeDtypeStruct((B * S, VOCAB), jnp.float32),
        # no grid: single invocation, everything VMEM/SMEM-resident (~1 MiB total)
        in_specs=[smem,                 # token ids   (B, S) int32
                  smem,                 # segment ids (B, S) int32
                  vmem,                 # fused [tok|pos|seg] embedding table
                  vmem,                 # f32 bias / LayerNorm vector slab
                  vmem,                 # bf16 [wqkv|wo|w1] per-layer slab
                  vmem,                 # bf16 w2 per-layer slab
                  vmem],                # bf16 MLM head weight
        out_specs=vmem,
        scratch_shapes=[pltpu.VMEM((B * S, HIDDEN), jnp.float32)],   # embedding-sum rows
    )(x_input.astype(jnp.int32), x_segment.astype(jnp.int32),
      params["emb_tab"], params["vec"], params["w_a"], params["w_b"], params["mlm_w"])

    return out_flat.reshape(B, S, VOCAB)


# ------------------------------------------ main ---------------------------------------
if __name__ == "__main__":
    key = jax.random.PRNGKey(0)
    pkey, dkey = jax.random.split(key, 2)

    params = init_params(pkey)

    # deterministic example batch: (B, S) token ids with some trailing PAD tokens
    x_input = jax.random.randint(dkey, (BATCH, SEQ), 1, VOCAB).astype(jnp.int32)
    x_input = x_input.at[:, -2:].set(PAD_IDX)          # exercise the padding mask
    x_segment = jnp.concatenate(
        [jnp.zeros((BATCH, SEQ // 2), jnp.int32),
         jnp.ones((BATCH, SEQ - SEQ // 2), jnp.int32)], axis=1)

    fwd = jax.jit(bert_mlm_forward)
    out = jax.block_until_ready(fwd(params, x_input, x_segment))

    assert out.shape == (BATCH, SEQ, VOCAB)
    assert bool(jnp.all(jnp.isfinite(out)))
    # rows of a log-softmax must sum to ~1 in prob space
    assert bool(jnp.allclose(jnp.sum(jnp.exp(out), axis=-1), 1.0, atol=1e-3))

    print("KERNEL_OK")
</pallas_src>

<mosaic_0001>
module attributes {stable_mosaic.version = 11 : i64} {
  func.func @bert_mlm_kernel(%arg0: memref<2x8xi32, #tpu.memory_space<smem>>, %arg1: memref<2x8xi32, #tpu.memory_space<smem>>, %arg2: memref<280x128xf32, #tpu.memory_space<vmem>>, %arg3: memref<19x512xf32, #tpu.memory_space<vmem>>, %arg4: memref<2x128x1024xbf16, #tpu.memory_space<vmem>>, %arg5: memref<2x512x128xbf16, #tpu.memory_space<vmem>>, %arg6: memref<128x256xbf16, #tpu.memory_space<vmem>>, %arg7: memref<16x256xf32, #tpu.memory_space<vmem>>, %arg8: memref<16x128xf32, #tpu.memory_space<vmem>>) attributes {dimension_semantics = [], scalar_prefetch = 0 : i64, scratch_operands = 1 : i64, tpu.core_type = #tpu.core_type<tc>} {
    %0 = tpu.iota {dimensions = array<i32: 0>} : vector<2x8xi32>
    %1 = tpu.iota {dimensions = array<i32: 1>} : vector<2x8xi32>
    %cst = arith.constant 0.000000e+00 : f32
    %2 = vector.broadcast %cst : f32 to vector<2x8xf32>
    %c0 = arith.constant 0 : index
    %c0_0 = arith.constant 0 : index
    %3 = memref.load %arg0[%c0, %c0_0] : memref<2x8xi32, #tpu.memory_space<smem>>
    %c0_i32 = arith.constant 0 : i32
    %4 = arith.addi %c0_i32, %3 : i32
    %5 = arith.index_cast %4 : i32 to index
    %c0_1 = arith.constant 0 : index
    %6 = vector.load %arg2[%5, %c0_1] : memref<280x128xf32, #tpu.memory_space<vmem>>, vector<1x128xf32>
    %c256 = arith.constant 256 : index
    %c0_2 = arith.constant 0 : index
    %7 = vector.load %arg2[%c256, %c0_2] : memref<280x128xf32, #tpu.memory_space<vmem>>, vector<1x128xf32>
    %8 = arith.addf %6, %7 : vector<1x128xf32>
    %c0_3 = arith.constant 0 : index
    %c0_4 = arith.constant 0 : index
    %9 = memref.load %arg1[%c0_3, %c0_4] : memref<2x8xi32, #tpu.memory_space<smem>>
    %c272_i32 = arith.constant 272 : i32
    %10 = arith.addi %c272_i32, %9 : i32
    %11 = arith.index_cast %10 : i32 to index
    %c0_5 = arith.constant 0 : index
    %12 = vector.load %arg2[%11, %c0_5] : memref<280x128xf32, #tpu.memory_space<vmem>>, vector<1x128xf32>
    %13 = arith.addf %8, %12 : vector<1x128xf32>
    %c0_6 = arith.constant 0 : index
    %c0_7 = arith.constant 0 : index
    %14 = vector.load %arg8[%c0_6, %c0_7] : memref<16x128xf32, #tpu.memory_space<vmem>>, vector<1x128xf32>
    tpu.vector_store %arg8[%c0_6, %c0_7], %13 {strides = array<i32>} : memref<16x128xf32, #tpu.memory_space<vmem>>, vector<1x128xf32>,
    %c0_i32_8 = arith.constant 0 : i32
    %15 = arith.cmpi eq, %3, %c0_i32_8 : i32
    %cst_9 = arith.constant -1.000000e+09 : f32
    %cst_10 = arith.constant 0.000000e+00 : f32
    %16 = arith.select %15, %cst_9, %cst_10 : f32
    %c0_i32_11 = arith.constant 0 : i32
    %17 = vector.broadcast %c0_i32_11 : i32 to vector<2x8xi32>
    %18 = arith.cmpi eq, %0, %17 : vector<2x8xi32>
    %c0_i32_12 = arith.constant 0 : i32
    %19 = vector.broadcast %c0_i32_12 : i32 to vector<2x8xi32>
    %20 = arith.cmpi eq, %1, %19 : vector<2x8xi32>
    %21 = arith.andi %18, %20 : vector<2x8xi1>
    %22 = vector.broadcast %16 : f32 to vector<2x8xf32>
    %23 = arith.select %21, %22, %2 : vector<2x8xi1>, vector<2x8xf32>
    %c0_13 = arith.constant 0 : index
    %c1 = arith.constant 1 : index
    %24 = memref.load %arg0[%c0_13, %c1] : memref<2x8xi32, #tpu.memory_space<smem>>
    %c0_i32_14 = arith.constant 0 : i32
    %25 = arith.addi %c0_i32_14, %24 : i32
    %26 = arith.index_cast %25 : i32 to index
    %c0_15 = arith.constant 0 : index
    %27 = vector.load %arg2[%26, %c0_15] : memref<280x128xf32, #tpu.memory_space<vmem>>, vector<1x128xf32>
    %c257 = arith.constant 257 : index
    %c0_16 = arith.constant 0 : index
    %28 = vector.load %arg2[%c257, %c0_16] : memref<280x128xf32, #tpu.memory_space<vmem>>, vector<1x128xf32>
    %29 = arith.addf %27, %28 : vector<1x128xf32>
    %c0_17 = arith.constant 0 : index
    %c1_18 = arith.constant 1 : index
    %30 = memref.load %arg1[%c0_17, %c1_18] : memref<2x8xi32, #tpu.memory_space<smem>>
    %c272_i32_19 = arith.constant 272 : i32
    %31 = arith.addi %c272_i32_19, %30 : i32
    %32 = arith.index_cast %31 : i32 to index
    %c0_20 = arith.constant 0 : index
    %33 = vector.load %arg2[%32, %c0_20] : memref<280x128xf32, #tpu.memory_space<vmem>>, vector<1x128xf32>
    %34 = arith.addf %29, %33 : vector<1x128xf32>
    %c1_21 = arith.constant 1 : index
    %c0_22 = arith.constant 0 : index
    %35 = vector.load %arg8[%c1_21, %c0_22] : memref<16x128xf32, #tpu.memory_space<vmem>>, vector<1x128xf32>
    tpu.vector_store %arg8[%c1_21, %c0_22], %34 {strides = array<i32>} : memref<16x128xf32, #tpu.memory_space<vmem>>, vector<1x128xf32>,
    %c0_i32_23 = arith.constant 0 : i32
    %36 = arith.cmpi eq, %24, %c0_i32_23 : i32
    %cst_24 = arith.constant -1.000000e+09 : f32
    %cst_25 = arith.constant 0.000000e+00 : f32
    %37 = arith.select %36, %cst_24, %cst_25 : f32
    %c0_i32_26 = arith.constant 0 : i32
    %38 = vector.broadcast %c0_i32_26 : i32 to vector<2x8xi32>
    %39 = arith.cmpi eq, %0, %38 : vector<2x8xi32>
    %c1_i32 = arith.constant 1 : i32
    %40 = vector.broadcast %c1_i32 : i32 to vector<2x8xi32>
    %41 = arith.cmpi eq, %1, %40 : vector<2x8xi32>
    %42 = arith.andi %39, %41 : vector<2x8xi1>
    %43 = vector.broadcast %37 : f32 to vector<2x8xf32>
    %44 = arith.select %42, %43, %23 : vector<2x8xi1>, vector<2x8xf32>
    %c0_27 = arith.constant 0 : index
    %c2 = arith.constant 2 : index
    %45 = memref.load %arg0[%c0_27, %c2] : memref<2x8xi32, #tpu.memory_space<smem>>
    %c0_i32_28 = arith.constant 0 : i32
    %46 = arith.addi %c0_i32_28, %45 : i32
    %47 = arith.index_cast %46 : i32 to index
    %c0_29 = arith.constant 0 : index
    %48 = vector.load %arg2[%47, %c0_29] : memref<280x128xf32, #tpu.memory_space<vmem>>, vector<1x128xf32>
    %c258 = arith.constant 258 : index
    %c0_30 = arith.constant 0 : index
    %49 = vector.load %arg2[%c258, %c0_30] : memref<280x128xf32, #tpu.memory_space<vmem>>, vector<1x128xf32>
    %50 = arith.addf %48, %49 : vector<1x128xf32>
    %c0_31 = arith.constant 0 : index
    %c2_32 = arith.constant 2 : index
    %51 = memref.load %arg1[%c0_31, %c2_32] : memref<2x8xi32, #tpu.memory_space<smem>>
    %c272_i32_33 = arith.constant 272 : i32
    %52 = arith.addi %c272_i32_33, %51 : i32
    %53 = arith.index_cast %52 : i32 to index
    %c0_34 = arith.constant 0 : index
    %54 = vector.load %arg2[%53, %c0_34] : memref<280x128xf32, #tpu.memory_space<vmem>>, vector<1x128xf32>
    %55 = arith.addf %50, %54 : vector<1x128xf32>
    %c2_35 = arith.constant 2 : index
    %c0_36 = arith.constant 0 : index
    %56 = vector.load %arg8[%c2_35, %c0_36] : memref<16x128xf32, #tpu.memory_space<vmem>>, vector<1x128xf32>
    tpu.vector_store %arg8[%c2_35, %c0_36], %55 {strides = array<i32>} : memref<16x128xf32, #tpu.memory_space<vmem>>, vector<1x128xf32>,
    %c0_i32_37 = arith.constant 0 : i32
    %57 = arith.cmpi eq, %45, %c0_i32_37 : i32
    %cst_38 = arith.constant -1.000000e+09 : f32
    %cst_39 = arith.constant 0.000000e+00 : f32
    %58 = arith.select %57, %cst_38, %cst_39 : f32
    %c0_i32_40 = arith.constant 0 : i32
    %59 = vector.broadcast %c0_i32_40 : i32 to vector<2x8xi32>
    %60 = arith.cmpi eq, %0, %59 : vector<2x8xi32>
    %c2_i32 = arith.constant 2 : i32
    %61 = vector.broadcast %c2_i32 : i32 to vector<2x8xi32>
    %62 = arith.cmpi eq, %1, %61 : vector<2x8xi32>
    %63 = arith.andi %60, %62 : vector<2x8xi1>
    %64 = vector.broadcast %58 : f32 to vector<2x8xf32>
    %65 = arith.select %63, %64, %44 : vector<2x8xi1>, vector<2x8xf32>
    %c0_41 = arith.constant 0 : index
    %c3 = arith.constant 3 : index
    %66 = memref.load %arg0[%c0_41, %c3] : memref<2x8xi32, #tpu.memory_space<smem>>
    %c0_i32_42 = arith.constant 0 : i32
    %67 = arith.addi %c0_i32_42, %66 : i32
    %68 = arith.index_cast %67 : i32 to index
    %c0_43 = arith.constant 0 : index
    %69 = vector.load %arg2[%68, %c0_43] : memref<280x128xf32, #tpu.memory_space<vmem>>, vector<1x128xf32>
    %c259 = arith.constant 259 : index
    %c0_44 = arith.constant 0 : index
    %70 = vector.load %arg2[%c259, %c0_44] : memref<280x128xf32, #tpu.memory_space<vmem>>, vector<1x128xf32>
    %71 = arith.addf %69, %70 : vector<1x128xf32>
    %c0_45 = arith.constant 0 : index
    %c3_46 = arith.constant 3 : index
    %72 = memref.load %arg1[%c0_45, %c3_46] : memref<2x8xi32, #tpu.memory_space<smem>>
    %c272_i32_47 = arith.constant 272 : i32
    %73 = arith.addi %c272_i32_47, %72 : i32
    %74 = arith.index_cast %73 : i32 to index
    %c0_48 = arith.constant 0 : index
    %75 = vector.load %arg2[%74, %c0_48] : memref<280x128xf32, #tpu.memory_space<vmem>>, vector<1x128xf32>
    %76 = arith.addf %71, %75 : vector<1x128xf32>
    %c3_49 = arith.constant 3 : index
    %c0_50 = arith.constant 0 : index
    %77 = vector.load %arg8[%c3_49, %c0_50] : memref<16x128xf32, #tpu.memory_space<vmem>>, vector<1x128xf32>
    tpu.vector_store %arg8[%c3_49, %c0_50], %76 {strides = array<i32>} : memref<16x128xf32, #tpu.memory_space<vmem>>, vector<1x128xf32>,
    %c0_i32_51 = arith.constant 0 : i32
    %78 = arith.cmpi eq, %66, %c0_i32_51 : i32
    %cst_52 = arith.constant -1.000000e+09 : f32
    %cst_53 = arith.constant 0.000000e+00 : f32
    %79 = arith.select %78, %cst_52, %cst_53 : f32
    %c0_i32_54 = arith.constant 0 : i32
    %80 = vector.broadcast %c0_i32_54 : i32 to vector<2x8xi32>
    %81 = arith.cmpi eq, %0, %80 : vector<2x8xi32>
    %c3_i32 = arith.constant 3 : i32
    %82 = vector.broadcast %c3_i32 : i32 to vector<2x8xi32>
    %83 = arith.cmpi eq, %1, %82 : vector<2x8xi32>
    %84 = arith.andi %81, %83 : vector<2x8xi1>
    %85 = vector.broadcast %79 : f32 to vector<2x8xf32>
    %86 = arith.select %84, %85, %65 : vector<2x8xi1>, vector<2x8xf32>
    %c0_55 = arith.constant 0 : index
    %c4 = arith.constant 4 : index
    %87 = memref.load %arg0[%c0_55, %c4] : memref<2x8xi32, #tpu.memory_space<smem>>
    %c0_i32_56 = arith.constant 0 : i32
    %88 = arith.addi %c0_i32_56, %87 : i32
    %89 = arith.index_cast %88 : i32 to index
    %c0_57 = arith.constant 0 : index
    %90 = vector.load %arg2[%89, %c0_57] : memref<280x128xf32, #tpu.memory_space<vmem>>, vector<1x128xf32>
    %c260 = arith.constant 260 : index
    %c0_58 = arith.constant 0 : index
    %91 = vector.load %arg2[%c260, %c0_58] : memref<280x128xf32, #tpu.memory_space<vmem>>, vector<1x128xf32>
    %92 = arith.addf %90, %91 : vector<1x128xf32>
    %c0_59 = arith.constant 0 : index
    %c4_60 = arith.constant 4 : index
    %93 = memref.load %arg1[%c0_59, %c4_60] : memref<2x8xi32, #tpu.memory_space<smem>>
    %c272_i32_61 = arith.constant 272 : i32
    %94 = arith.addi %c272_i32_61, %93 : i32
    %95 = arith.index_cast %94 : i32 to index
    %c0_62 = arith.constant 0 : index
    %96 = vector.load %arg2[%95, %c0_62] : memref<280x128xf32, #tpu.memory_space<vmem>>, vector<1x128xf32>
    %97 = arith.addf %92, %96 : vector<1x128xf32>
    %c4_63 = arith.constant 4 : index
    %c0_64 = arith.constant 0 : index
    %98 = vector.load %arg8[%c4_63, %c0_64] : memref<16x128xf32, #tpu.memory_space<vmem>>, vector<1x128xf32>
    tpu.vector_store %arg8[%c4_63, %c0_64], %97 {strides = array<i32>} : memref<16x128xf32, #tpu.memory_space<vmem>>, vector<1x128xf32>,
    %c0_i32_65 = arith.constant 0 : i32
    %99 = arith.cmpi eq, %87, %c0_i32_65 : i32
    %cst_66 = arith.constant -1.000000e+09 : f32
    %cst_67 = arith.constant 0.000000e+00 : f32
    %100 = arith.select %99, %cst_66, %cst_67 : f32
    %c0_i32_68 = arith.constant 0 : i32
    %101 = vector.broadcast %c0_i32_68 : i32 to vector<2x8xi32>
    %102 = arith.cmpi eq, %0, %101 : vector<2x8xi32>
    %c4_i32 = arith.constant 4 : i32
    %103 = vector.broadcast %c4_i32 : i32 to vector<2x8xi32>
    %104 = arith.cmpi eq, %1, %103 : vector<2x8xi32>
    %105 = arith.andi %102, %104 : vector<2x8xi1>
    %106 = vector.broadcast %100 : f32 to vector<2x8xf32>
    %107 = arith.select %105, %106, %86 : vector<2x8xi1>, vector<2x8xf32>
    %c0_69 = arith.constant 0 : index
    %c5 = arith.constant 5 : index
    %108 = memref.load %arg0[%c0_69, %c5] : memref<2x8xi32, #tpu.memory_space<smem>>
    %c0_i32_70 = arith.constant 0 : i32
    %109 = arith.addi %c0_i32_70, %108 : i32
    %110 = arith.index_cast %109 : i32 to index
    %c0_71 = arith.constant 0 : index
    %111 = vector.load %arg2[%110, %c0_71] : memref<280x128xf32, #tpu.memory_space<vmem>>, vector<1x128xf32>
    %c261 = arith.constant 261 : index
    %c0_72 = arith.constant 0 : index
    %112 = vector.load %arg2[%c261, %c0_72] : memref<280x128xf32, #tpu.memory_space<vmem>>, vector<1x128xf32>
    %113 = arith.addf %111, %112 : vector<1x128xf32>
    %c0_73 = arith.constant 0 : index
    %c5_74 = arith.constant 5 : index
    %114 = memref.load %arg1[%c0_73, %c5_74] : memref<2x8xi32, #tpu.memory_space<smem>>
    %c272_i32_75 = arith.constant 272 : i32
    %115 = arith.addi %c272_i32_75, %114 : i32
    %116 = arith.index_cast %115 : i32 to index
    %c0_76 = arith.constant 0 : index
    %117 = vector.load %arg2[%116, %c0_76] : memref<280x128xf32, #tpu.memory_space<vmem>>, vector<1x128xf32>
    %118 = arith.addf %113, %117 : vector<1x128xf32>
    %c5_77 = arith.constant 5 : index
    %c0_78 = arith.constant 0 : index
    %119 = vector.load %arg8[%c5_77, %c0_78] : memref<16x128xf32, #tpu.memory_space<vmem>>, vector<1x128xf32>
    tpu.vector_store %arg8[%c5_77, %c0_78], %118 {strides = array<i32>} : memref<16x128xf32, #tpu.memory_space<vmem>>, vector<1x128xf32>,
    %c0_i32_79 = arith.constant 0 : i32
    %120 = arith.cmpi eq, %108, %c0_i32_79 : i32
    %cst_80 = arith.constant -1.000000e+09 : f32
    %cst_81 = arith.constant 0.000000e+00 : f32
    %121 = arith.select %120, %cst_80, %cst_81 : f32
    %c0_i32_82 = arith.constant 0 : i32
    %122 = vector.broadcast %c0_i32_82 : i32 to vector<2x8xi32>
    %123 = arith.cmpi eq, %0, %122 : vector<2x8xi32>
    %c5_i32 = arith.constant 5 : i32
    %124 = vector.broadcast %c5_i32 : i32 to vector<2x8xi32>
    %125 = arith.cmpi eq, %1, %124 : vector<2x8xi32>
    %126 = arith.andi %123, %125 : vector<2x8xi1>
    %127 = vector.broadcast %121 : f32 to vector<2x8xf32>
    %128 = arith.select %126, %127, %107 : vector<2x8xi1>, vector<2x8xf32>
    %c0_83 = arith.constant 0 : index
    %c6 = arith.constant 6 : index
    %129 = memref.load %arg0[%c0_83, %c6] : memref<2x8xi32, #tpu.memory_space<smem>>
    %c0_i32_84 = arith.constant 0 : i32
    %130 = arith.addi %c0_i32_84, %129 : i32
    %131 = arith.index_cast %130 : i32 to index
    %c0_85 = arith.constant 0 : index
    %132 = vector.load %arg2[%131, %c0_85] : memref<280x128xf32, #tpu.memory_space<vmem>>, vector<1x128xf32>
    %c262 = arith.constant 262 : index
    %c0_86 = arith.constant 0 : index
    %133 = vector.load %arg2[%c262, %c0_86] : memref<280x128xf32, #tpu.memory_space<vmem>>, vector<1x128xf32>
    %134 = arith.addf %132, %133 : vector<1x128xf32>
    %c0_87 = arith.constant 0 : index
    %c6_88 = arith.constant 6 : index
    %135 = memref.load %arg1[%c0_87, %c6_88] : memref<2x8xi32, #tpu.memory_space<smem>>
    %c272_i32_89 = arith.constant 272 : i32
    %136 = arith.addi %c272_i32_89, %135 : i32
    %137 = arith.index_cast %136 : i32 to index
    %c0_90 = arith.constant 0 : index
    %138 = vector.load %arg2[%137, %c0_90] : memref<280x128xf32, #tpu.memory_space<vmem>>, vector<1x128xf32>
    %139 = arith.addf %134, %138 : vector<1x128xf32>
    %c6_91 = arith.constant 6 : index
    %c0_92 = arith.constant 0 : index
    %140 = vector.load %arg8[%c6_91, %c0_92] : memref<16x128xf32, #tpu.memory_space<vmem>>, vector<1x128xf32>
    tpu.vector_store %arg8[%c6_91, %c0_92], %139 {strides = array<i32>} : memref<16x128xf32, #tpu.memory_space<vmem>>, vector<1x128xf32>,
    %c0_i32_93 = arith.constant 0 : i32
    %141 = arith.cmpi eq, %129, %c0_i32_93 : i32
    %cst_94 = arith.constant -1.000000e+09 : f32
    %cst_95 = arith.constant 0.000000e+00 : f32
    %142 = arith.select %141, %cst_94, %cst_95 : f32
    %c0_i32_96 = arith.constant 0 : i32
    %143 = vector.broadcast %c0_i32_96 : i32 to vector<2x8xi32>
    %144 = arith.cmpi eq, %0, %143 : vector<2x8xi32>
    %c6_i32 = arith.constant 6 : i32
    %145 = vector.broadcast %c6_i32 : i32 to vector<2x8xi32>
    %146 = arith.cmpi eq, %1, %145 : vector<2x8xi32>
    %147 = arith.andi %144, %146 : vector<2x8xi1>
    %148 = vector.broadcast %142 : f32 to vector<2x8xf32>
    %149 = arith.select %147, %148, %128 : vector<2x8xi1>, vector<2x8xf32>
    %c0_97 = arith.constant 0 : index
    %c7 = arith.constant 7 : index
    %150 = memref.load %arg0[%c0_97, %c7] : memref<2x8xi32, #tpu.memory_space<smem>>
    %c0_i32_98 = arith.constant 0 : i32
    %151 = arith.addi %c0_i32_98, %150 : i32
    %152 = arith.index_cast %151 : i32 to index
    %c0_99 = arith.constant 0 : index
    %153 = vector.load %arg2[%152, %c0_99] : memref<280x128xf32, #tpu.memory_space<vmem>>, vector<1x128xf32>
    %c263 = arith.constant 263 : index
    %c0_100 = arith.constant 0 : index
    %154 = vector.load %arg2[%c263, %c0_100] : memref<280x128xf32, #tpu.memory_space<vmem>>, vector<1x128xf32>
    %155 = arith.addf %153, %154 : vector<1x128xf32>
    %c0_101 = arith.constant 0 : index
    %c7_102 = arith.constant 7 : index
    %156 = memref.load %arg1[%c0_101, %c7_102] : memref<2x8xi32, #tpu.memory_space<smem>>
    %c272_i32_103 = arith.constant 272 : i32
    %157 = arith.addi %c272_i32_103, %156 : i32
    %158 = arith.index_cast %157 : i32 to index
    %c0_104 = arith.constant 0 : index
    %159 = vector.load %arg2[%158, %c0_104] : memref<280x128xf32, #tpu.memory_space<vmem>>, vector<1x128xf32>
    %160 = arith.addf %155, %159 : vector<1x128xf32>
    %c7_105 = arith.constant 7 : index
    %c0_106 = arith.constant 0 : index
    %161 = vector.load %arg8[%c7_105, %c0_106] : memref<16x128xf32, #tpu.memory_space<vmem>>, vector<1x128xf32>
    tpu.vector_store %arg8[%c7_105, %c0_106], %160 {strides = array<i32>} : memref<16x128xf32, #tpu.memory_space<vmem>>, vector<1x128xf32>,
    %c0_i32_107 = arith.constant 0 : i32
    %162 = arith.cmpi eq, %150, %c0_i32_107 : i32
    %cst_108 = arith.constant -1.000000e+09 : f32
    %cst_109 = arith.constant 0.000000e+00 : f32
    %163 = arith.select %162, %cst_108, %cst_109 : f32
    %c0_i32_110 = arith.constant 0 : i32
    %164 = vector.broadcast %c0_i32_110 : i32 to vector<2x8xi32>
    %165 = arith.cmpi eq, %0, %164 : vector<2x8xi32>
    %c7_i32 = arith.constant 7 : i32
    %166 = vector.broadcast %c7_i32 : i32 to vector<2x8xi32>
    %167 = arith.cmpi eq, %1, %166 : vector<2x8xi32>
    %168 = arith.andi %165, %167 : vector<2x8xi1>
    %169 = vector.broadcast %163 : f32 to vector<2x8xf32>
    %170 = arith.select %168, %169, %149 : vector<2x8xi1>, vector<2x8xf32>
    %c1_111 = arith.constant 1 : index
    %c0_112 = arith.constant 0 : index
    %171 = memref.load %arg0[%c1_111, %c0_112] : memref<2x8xi32, #tpu.memory_space<smem>>
    %c0_i32_113 = arith.constant 0 : i32
    %172 = arith.addi %c0_i32_113, %171 : i32
    %173 = arith.index_cast %172 : i32 to index
    %c0_114 = arith.constant 0 : index
    %174 = vector.load %arg2[%173, %c0_114] : memref<280x128xf32, #tpu.memory_space<vmem>>, vector<1x128xf32>
    %c256_115 = arith.constant 256 : index
    %c0_116 = arith.constant 0 : index
    %175 = vector.load %arg2[%c256_115, %c0_116] : memref<280x128xf32, #tpu.memory_space<vmem>>, vector<1x128xf32>
    %176 = arith.addf %174, %175 : vector<1x128xf32>
    %c1_117 = arith.constant 1 : index
    %c0_118 = arith.constant 0 : index
    %177 = memref.load %arg1[%c1_117, %c0_118] : memref<2x8xi32, #tpu.memory_space<smem>>
    %c272_i32_119 = arith.constant 272 : i32
    %178 = arith.addi %c272_i32_119, %177 : i32
    %179 = arith.index_cast %178 : i32 to index
    %c0_120 = arith.constant 0 : index
    %180 = vector.load %arg2[%179, %c0_120] : memref<280x128xf32, #tpu.memory_space<vmem>>, vector<1x128xf32>
    %181 = arith.addf %176, %180 : vector<1x128xf32>
    %c8 = arith.constant 8 : index
    %c0_121 = arith.constant 0 : index
    %182 = vector.load %arg8[%c8, %c0_121] : memref<16x128xf32, #tpu.memory_space<vmem>>, vector<1x128xf32>
    tpu.vector_store %arg8[%c8, %c0_121], %181 {strides = array<i32>} : memref<16x128xf32, #tpu.memory_space<vmem>>, vector<1x128xf32>,
    %c0_i32_122 = arith.constant 0 : i32
    %183 = arith.cmpi eq, %171, %c0_i32_122 : i32
    %cst_123 = arith.constant -1.000000e+09 : f32
    %cst_124 = arith.constant 0.000000e+00 : f32
    %184 = arith.select %183, %cst_123, %cst_124 : f32
    %c1_i32_125 = arith.constant 1 : i32
    %185 = vector.broadcast %c1_i32_125 : i32 to vector<2x8xi32>
    %186 = arith.cmpi eq, %0, %185 : vector<2x8xi32>
    %c0_i32_126 = arith.constant 0 : i32
    %187 = vector.broadcast %c0_i32_126 : i32 to vector<2x8xi32>
    %188 = arith.cmpi eq, %1, %187 : vector<2x8xi32>
    %189 = arith.andi %186, %188 : vector<2x8xi1>
    %190 = vector.broadcast %184 : f32 to vector<2x8xf32>
    %191 = arith.select %189, %190, %170 : vector<2x8xi1>, vector<2x8xf32>
    %c1_127 = arith.constant 1 : index
    %c1_128 = arith.constant 1 : index
    %192 = memref.load %arg0[%c1_127, %c1_128] : memref<2x8xi32, #tpu.memory_space<smem>>
    %c0_i32_129 = arith.constant 0 : i32
    %193 = arith.addi %c0_i32_129, %192 : i32
    %194 = arith.index_cast %193 : i32 to index
    %c0_130 = arith.constant 0 : index
    %195 = vector.load %arg2[%194, %c0_130] : memref<280x128xf32, #tpu.memory_space<vmem>>, vector<1x128xf32>
    %c257_131 = arith.constant 257 : index
    %c0_132 = arith.constant 0 : index
    %196 = vector.load %arg2[%c257_131, %c0_132] : memref<280x128xf32, #tpu.memory_space<vmem>>, vector<1x128xf32>
    %197 = arith.addf %195, %196 : vector<1x128xf32>
    %c1_133 = arith.constant 1 : index
    %c1_134 = arith.constant 1 : index
    %198 = memref.load %arg1[%c1_133, %c1_134] : memref<2x8xi32, #tpu.memory_space<smem>>
    %c272_i32_135 = arith.constant 272 : i32
    %199 = arith.addi %c272_i32_135, %198 : i32
    %200 = arith.index_cast %199 : i32 to index
    %c0_136 = arith.constant 0 : index
    %201 = vector.load %arg2[%200, %c0_136] : memref<280x128xf32, #tpu.memory_space<vmem>>, vector<1x128xf32>
    %202 = arith.addf %197, %201 : vector<1x128xf32>
    %c9 = arith.constant 9 : index
    %c0_137 = arith.constant 0 : index
    %203 = vector.load %arg8[%c9, %c0_137] : memref<16x128xf32, #tpu.memory_space<vmem>>, vector<1x128xf32>
    tpu.vector_store %arg8[%c9, %c0_137], %202 {strides = array<i32>} : memref<16x128xf32, #tpu.memory_space<vmem>>, vector<1x128xf32>,
    %c0_i32_138 = arith.constant 0 : i32
    %204 = arith.cmpi eq, %192, %c0_i32_138 : i32
    %cst_139 = arith.constant -1.000000e+09 : f32
    %cst_140 = arith.constant 0.000000e+00 : f32
    %205 = arith.select %204, %cst_139, %cst_140 : f32
    %c1_i32_141 = arith.constant 1 : i32
    %206 = vector.broadcast %c1_i32_141 : i32 to vector<2x8xi32>
    %207 = arith.cmpi eq, %0, %206 : vector<2x8xi32>
    %c1_i32_142 = arith.constant 1 : i32
    %208 = vector.broadcast %c1_i32_142 : i32 to vector<2x8xi32>
    %209 = arith.cmpi eq, %1, %208 : vector<2x8xi32>
    %210 = arith.andi %207, %209 : vector<2x8xi1>
    %211 = vector.broadcast %205 : f32 to vector<2x8xf32>
    %212 = arith.select %210, %211, %191 : vector<2x8xi1>, vector<2x8xf32>
    %c1_143 = arith.constant 1 : index
    %c2_144 = arith.constant 2 : index
    %213 = memref.load %arg0[%c1_143, %c2_144] : memref<2x8xi32, #tpu.memory_space<smem>>
    %c0_i32_145 = arith.constant 0 : i32
    %214 = arith.addi %c0_i32_145, %213 : i32
    %215 = arith.index_cast %214 : i32 to index
    %c0_146 = arith.constant 0 : index
    %216 = vector.load %arg2[%215, %c0_146] : memref<280x128xf32, #tpu.memory_space<vmem>>, vector<1x128xf32>
    %c258_147 = arith.constant 258 : index
    %c0_148 = arith.constant 0 : index
    %217 = vector.load %arg2[%c258_147, %c0_148] : memref<280x128xf32, #tpu.memory_space<vmem>>, vector<1x128xf32>
    %218 = arith.addf %216, %217 : vector<1x128xf32>
    %c1_149 = arith.constant 1 : index
    %c2_150 = arith.constant 2 : index
    %219 = memref.load %arg1[%c1_149, %c2_150] : memref<2x8xi32, #tpu.memory_space<smem>>
    %c272_i32_151 = arith.constant 272 : i32
    %220 = arith.addi %c272_i32_151, %219 : i32
    %221 = arith.index_cast %220 : i32 to index
    %c0_152 = arith.constant 0 : index
    %222 = vector.load %arg2[%221, %c0_152] : memref<280x128xf32, #tpu.memory_space<vmem>>, vector<1x128xf32>
    %223 = arith.addf %218, %222 : vector<1x128xf32>
    %c10 = arith.constant 10 : index
    %c0_153 = arith.constant 0 : index
    %224 = vector.load %arg8[%c10, %c0_153] : memref<16x128xf32, #tpu.memory_space<vmem>>, vector<1x128xf32>
    tpu.vector_store %arg8[%c10, %c0_153], %223 {strides = array<i32>} : memref<16x128xf32, #tpu.memory_space<vmem>>, vector<1x128xf32>,
    %c0_i32_154 = arith.constant 0 : i32
    %225 = arith.cmpi eq, %213, %c0_i32_154 : i32
    %cst_155 = arith.constant -1.000000e+09 : f32
    %cst_156 = arith.constant 0.000000e+00 : f32
    %226 = arith.select %225, %cst_155, %cst_156 : f32
    %c1_i32_157 = arith.constant 1 : i32
    %227 = vector.broadcast %c1_i32_157 : i32 to vector<2x8xi32>
    %228 = arith.cmpi eq, %0, %227 : vector<2x8xi32>
    %c2_i32_158 = arith.constant 2 : i32
    %229 = vector.broadcast %c2_i32_158 : i32 to vector<2x8xi32>
    %230 = arith.cmpi eq, %1, %229 : vector<2x8xi32>
    %231 = arith.andi %228, %230 : vector<2x8xi1>
    %232 = vector.broadcast %226 : f32 to vector<2x8xf32>
    %233 = arith.select %231, %232, %212 : vector<2x8xi1>, vector<2x8xf32>
    %c1_159 = arith.constant 1 : index
    %c3_160 = arith.constant 3 : index
    %234 = memref.load %arg0[%c1_159, %c3_160] : memref<2x8xi32, #tpu.memory_space<smem>>
    %c0_i32_161 = arith.constant 0 : i32
    %235 = arith.addi %c0_i32_161, %234 : i32
    %236 = arith.index_cast %235 : i32 to index
    %c0_162 = arith.constant 0 : index
    %237 = vector.load %arg2[%236, %c0_162] : memref<280x128xf32, #tpu.memory_space<vmem>>, vector<1x128xf32>
    %c259_163 = arith.constant 259 : index
    %c0_164 = arith.constant 0 : index
    %238 = vector.load %arg2[%c259_163, %c0_164] : memref<280x128xf32, #tpu.memory_space<vmem>>, vector<1x128xf32>
    %239 = arith.addf %237, %238 : vector<1x128xf32>
    %c1_165 = arith.constant 1 : index
    %c3_166 = arith.constant 3 : index
    %240 = memref.load %arg1[%c1_165, %c3_166] : memref<2x8xi32, #tpu.memory_space<smem>>
    %c272_i32_167 = arith.constant 272 : i32
    %241 = arith.addi %c272_i32_167, %240 : i32
    %242 = arith.index_cast %241 : i32 to index
    %c0_168 = arith.constant 0 : index
    %243 = vector.load %arg2[%242, %c0_168] : memref<280x128xf32, #tpu.memory_space<vmem>>, vector<1x128xf32>
    %244 = arith.addf %239, %243 : vector<1x128xf32>
    %c11 = arith.constant 11 : index
    %c0_169 = arith.constant 0 : index
    %245 = vector.load %arg8[%c11, %c0_169] : memref<16x128xf32, #tpu.memory_space<vmem>>, vector<1x128xf32>
    tpu.vector_store %arg8[%c11, %c0_169], %244 {strides = array<i32>} : memref<16x128xf32, #tpu.memory_space<vmem>>, vector<1x128xf32>,
    %c0_i32_170 = arith.constant 0 : i32
    %246 = arith.cmpi eq, %234, %c0_i32_170 : i32
    %cst_171 = arith.constant -1.000000e+09 : f32
    %cst_172 = arith.constant 0.000000e+00 : f32
    %247 = arith.select %246, %cst_171, %cst_172 : f32
    %c1_i32_173 = arith.constant 1 : i32
    %248 = vector.broadcast %c1_i32_173 : i32 to vector<2x8xi32>
    %249 = arith.cmpi eq, %0, %248 : vector<2x8xi32>
    %c3_i32_174 = arith.constant 3 : i32
    %250 = vector.broadcast %c3_i32_174 : i32 to vector<2x8xi32>
    %251 = arith.cmpi eq, %1, %250 : vector<2x8xi32>
    %252 = arith.andi %249, %251 : vector<2x8xi1>
    %253 = vector.broadcast %247 : f32 to vector<2x8xf32>
    %254 = arith.select %252, %253, %233 : vector<2x8xi1>, vector<2x8xf32>
    %c1_175 = arith.constant 1 : index
    %c4_176 = arith.constant 4 : index
    %255 = memref.load %arg0[%c1_175, %c4_176] : memref<2x8xi32, #tpu.memory_space<smem>>
    %c0_i32_177 = arith.constant 0 : i32
    %256 = arith.addi %c0_i32_177, %255 : i32
    %257 = arith.index_cast %256 : i32 to index
    %c0_178 = arith.constant 0 : index
    %258 = vector.load %arg2[%257, %c0_178] : memref<280x128xf32, #tpu.memory_space<vmem>>, vector<1x128xf32>
    %c260_179 = arith.constant 260 : index
    %c0_180 = arith.constant 0 : index
    %259 = vector.load %arg2[%c260_179, %c0_180] : memref<280x128xf32, #tpu.memory_space<vmem>>, vector<1x128xf32>
    %260 = arith.addf %258, %259 : vector<1x128xf32>
    %c1_181 = arith.constant 1 : index
    %c4_182 = arith.constant 4 : index
    %261 = memref.load %arg1[%c1_181, %c4_182] : memref<2x8xi32, #tpu.memory_space<smem>>
    %c272_i32_183 = arith.constant 272 : i32
    %262 = arith.addi %c272_i32_183, %261 : i32
    %263 = arith.index_cast %262 : i32 to index
    %c0_184 = arith.constant 0 : index
    %264 = vector.load %arg2[%263, %c0_184] : memref<280x128xf32, #tpu.memory_space<vmem>>, vector<1x128xf32>
    %265 = arith.addf %260, %264 : vector<1x128xf32>
    %c12 = arith.constant 12 : index
    %c0_185 = arith.constant 0 : index
    %266 = vector.load %arg8[%c12, %c0_185] : memref<16x128xf32, #tpu.memory_space<vmem>>, vector<1x128xf32>
    tpu.vector_store %arg8[%c12, %c0_185], %265 {strides = array<i32>} : memref<16x128xf32, #tpu.memory_space<vmem>>, vector<1x128xf32>,
    %c0_i32_186 = arith.constant 0 : i32
    %267 = arith.cmpi eq, %255, %c0_i32_186 : i32
    %cst_187 = arith.constant -1.000000e+09 : f32
    %cst_188 = arith.constant 0.000000e+00 : f32
    %268 = arith.select %267, %cst_187, %cst_188 : f32
    %c1_i32_189 = arith.constant 1 : i32
    %269 = vector.broadcast %c1_i32_189 : i32 to vector<2x8xi32>
    %270 = arith.cmpi eq, %0, %269 : vector<2x8xi32>
    %c4_i32_190 = arith.constant 4 : i32
    %271 = vector.broadcast %c4_i32_190 : i32 to vector<2x8xi32>
    %272 = arith.cmpi eq, %1, %271 : vector<2x8xi32>
    %273 = arith.andi %270, %272 : vector<2x8xi1>
    %274 = vector.broadcast %268 : f32 to vector<2x8xf32>
    %275 = arith.select %273, %274, %254 : vector<2x8xi1>, vector<2x8xf32>
    %c1_191 = arith.constant 1 : index
    %c5_192 = arith.constant 5 : index
    %276 = memref.load %arg0[%c1_191, %c5_192] : memref<2x8xi32, #tpu.memory_space<smem>>
    %c0_i32_193 = arith.constant 0 : i32
    %277 = arith.addi %c0_i32_193, %276 : i32
    %278 = arith.index_cast %277 : i32 to index
    %c0_194 = arith.constant 0 : index
    %279 = vector.load %arg2[%278, %c0_194] : memref<280x128xf32, #tpu.memory_space<vmem>>, vector<1x128xf32>
    %c261_195 = arith.constant 261 : index
    %c0_196 = arith.constant 0 : index
    %280 = vector.load %arg2[%c261_195, %c0_196] : memref<280x128xf32, #tpu.memory_space<vmem>>, vector<1x128xf32>
    %281 = arith.addf %279, %280 : vector<1x128xf32>
    %c1_197 = arith.constant 1 : index
    %c5_198 = arith.constant 5 : index
    %282 = memref.load %arg1[%c1_197, %c5_198] : memref<2x8xi32, #tpu.memory_space<smem>>
    %c272_i32_199 = arith.constant 272 : i32
    %283 = arith.addi %c272_i32_199, %282 : i32
    %284 = arith.index_cast %283 : i32 to index
    %c0_200 = arith.constant 0 : index
    %285 = vector.load %arg2[%284, %c0_200] : memref<280x128xf32, #tpu.memory_space<vmem>>, vector<1x128xf32>
    %286 = arith.addf %281, %285 : vector<1x128xf32>
    %c13 = arith.constant 13 : index
    %c0_201 = arith.constant 0 : index
    %287 = vector.load %arg8[%c13, %c0_201] : memref<16x128xf32, #tpu.memory_space<vmem>>, vector<1x128xf32>
    tpu.vector_store %arg8[%c13, %c0_201], %286 {strides = array<i32>} : memref<16x128xf32, #tpu.memory_space<vmem>>, vector<1x128xf32>,
    %c0_i32_202 = arith.constant 0 : i32
    %288 = arith.cmpi eq, %276, %c0_i32_202 : i32
    %cst_203 = arith.constant -1.000000e+09 : f32
    %cst_204 = arith.constant 0.000000e+00 : f32
    %289 = arith.select %288, %cst_203, %cst_204 : f32
    %c1_i32_205 = arith.constant 1 : i32
    %290 = vector.broadcast %c1_i32_205 : i32 to vector<2x8xi32>
    %291 = arith.cmpi eq, %0, %290 : vector<2x8xi32>
    %c5_i32_206 = arith.constant 5 : i32
    %292 = vector.broadcast %c5_i32_206 : i32 to vector<2x8xi32>
    %293 = arith.cmpi eq, %1, %292 : vector<2x8xi32>
    %294 = arith.andi %291, %293 : vector<2x8xi1>
    %295 = vector.broadcast %289 : f32 to vector<2x8xf32>
    %296 = arith.select %294, %295, %275 : vector<2x8xi1>, vector<2x8xf32>
    %c1_207 = arith.constant 1 : index
    %c6_208 = arith.constant 6 : index
    %297 = memref.load %arg0[%c1_207, %c6_208] : memref<2x8xi32, #tpu.memory_space<smem>>
    %c0_i32_209 = arith.constant 0 : i32
    %298 = arith.addi %c0_i32_209, %297 : i32
    %299 = arith.index_cast %298 : i32 to index
    %c0_210 = arith.constant 0 : index
    %300 = vector.load %arg2[%299, %c0_210] : memref<280x128xf32, #tpu.memory_space<vmem>>, vector<1x128xf32>
    %c262_211 = arith.constant 262 : index
    %c0_212 = arith.constant 0 : index
    %301 = vector.load %arg2[%c262_211, %c0_212] : memref<280x128xf32, #tpu.memory_space<vmem>>, vector<1x128xf32>
    %302 = arith.addf %300, %301 : vector<1x128xf32>
    %c1_213 = arith.constant 1 : index
    %c6_214 = arith.constant 6 : index
    %303 = memref.load %arg1[%c1_213, %c6_214] : memref<2x8xi32, #tpu.memory_space<smem>>
    %c272_i32_215 = arith.constant 272 : i32
    %304 = arith.addi %c272_i32_215, %303 : i32
    %305 = arith.index_cast %304 : i32 to index
    %c0_216 = arith.constant 0 : index
    %306 = vector.load %arg2[%305, %c0_216] : memref<280x128xf32, #tpu.memory_space<vmem>>, vector<1x128xf32>
    %307 = arith.addf %302, %306 : vector<1x128xf32>
    %c14 = arith.constant 14 : index
    %c0_217 = arith.constant 0 : index
    %308 = vector.load %arg8[%c14, %c0_217] : memref<16x128xf32, #tpu.memory_space<vmem>>, vector<1x128xf32>
    tpu.vector_store %arg8[%c14, %c0_217], %307 {strides = array<i32>} : memref<16x128xf32, #tpu.memory_space<vmem>>, vector<1x128xf32>,
    %c0_i32_218 = arith.constant 0 : i32
    %309 = arith.cmpi eq, %297, %c0_i32_218 : i32
    %cst_219 = arith.constant -1.000000e+09 : f32
    %cst_220 = arith.constant 0.000000e+00 : f32
    %310 = arith.select %309, %cst_219, %cst_220 : f32
    %c1_i32_221 = arith.constant 1 : i32
    %311 = vector.broadcast %c1_i32_221 : i32 to vector<2x8xi32>
    %312 = arith.cmpi eq, %0, %311 : vector<2x8xi32>
    %c6_i32_222 = arith.constant 6 : i32
    %313 = vector.broadcast %c6_i32_222 : i32 to vector<2x8xi32>
    %314 = arith.cmpi eq, %1, %313 : vector<2x8xi32>
    %315 = arith.andi %312, %314 : vector<2x8xi1>
    %316 = vector.broadcast %310 : f32 to vector<2x8xf32>
    %317 = arith.select %315, %316, %296 : vector<2x8xi1>, vector<2x8xf32>
    %c1_223 = arith.constant 1 : index
    %c7_224 = arith.constant 7 : index
    %318 = memref.load %arg0[%c1_223, %c7_224] : memref<2x8xi32, #tpu.memory_space<smem>>
    %c0_i32_225 = arith.constant 0 : i32
    %319 = arith.addi %c0_i32_225, %318 : i32
    %320 = arith.index_cast %319 : i32 to index
    %c0_226 = arith.constant 0 : index
    %321 = vector.load %arg2[%320, %c0_226] : memref<280x128xf32, #tpu.memory_space<vmem>>, vector<1x128xf32>
    %c263_227 = arith.constant 263 : index
    %c0_228 = arith.constant 0 : index
    %322 = vector.load %arg2[%c263_227, %c0_228] : memref<280x128xf32, #tpu.memory_space<vmem>>, vector<1x128xf32>
    %323 = arith.addf %321, %322 : vector<1x128xf32>
    %c1_229 = arith.constant 1 : index
    %c7_230 = arith.constant 7 : index
    %324 = memref.load %arg1[%c1_229, %c7_230] : memref<2x8xi32, #tpu.memory_space<smem>>
    %c272_i32_231 = arith.constant 272 : i32
    %325 = arith.addi %c272_i32_231, %324 : i32
    %326 = arith.index_cast %325 : i32 to index
    %c0_232 = arith.constant 0 : index
    %327 = vector.load %arg2[%326, %c0_232] : memref<280x128xf32, #tpu.memory_space<vmem>>, vector<1x128xf32>
    %328 = arith.addf %323, %327 : vector<1x128xf32>
    %c15 = arith.constant 15 : index
    %c0_233 = arith.constant 0 : index
    %329 = vector.load %arg8[%c15, %c0_233] : memref<16x128xf32, #tpu.memory_space<vmem>>, vector<1x128xf32>
    tpu.vector_store %arg8[%c15, %c0_233], %328 {strides = array<i32>} : memref<16x128xf32, #tpu.memory_space<vmem>>, vector<1x128xf32>,
    %c0_i32_234 = arith.constant 0 : i32
    %330 = arith.cmpi eq, %318, %c0_i32_234 : i32
    %cst_235 = arith.constant -1.000000e+09 : f32
    %cst_236 = arith.constant 0.000000e+00 : f32
    %331 = arith.select %330, %cst_235, %cst_236 : f32
    %c1_i32_237 = arith.constant 1 : i32
    %332 = vector.broadcast %c1_i32_237 : i32 to vector<2x8xi32>
    %333 = arith.cmpi eq, %0, %332 : vector<2x8xi32>
    %c7_i32_238 = arith.constant 7 : i32
    %334 = vector.broadcast %c7_i32_238 : i32 to vector<2x8xi32>
    %335 = arith.cmpi eq, %1, %334 : vector<2x8xi32>
    %336 = arith.andi %333, %335 : vector<2x8xi1>
    %337 = vector.broadcast %331 : f32 to vector<2x8xf32>
    %338 = arith.select %336, %337, %317 : vector<2x8xi1>, vector<2x8xf32>
    %c0_239 = arith.constant 0 : index
    %c0_240 = arith.constant 0 : index
    %339 = vector.load %arg8[%c0_239, %c0_240] : memref<16x128xf32, #tpu.memory_space<vmem>>, vector<16x128xf32>
    %c0_241 = arith.constant 0 : index
    %c0_242 = arith.constant 0 : index
    %340 = vector.load %arg3[%c0_241, %c0_242] : memref<19x512xf32, #tpu.memory_space<vmem>>, vector<1x128xf32>
    %c1_243 = arith.constant 1 : index
    %c0_244 = arith.constant 0 : index
    %341 = vector.load %arg3[%c1_243, %c0_244] : memref<19x512xf32, #tpu.memory_space<vmem>>, vector<1x128xf32>
    %cst_245 = arith.constant dense<0.000000e+00> : vector<16xf32>
    %342 = vector.multi_reduction <add>, %339, %cst_245 [1] : vector<16x128xf32> to vector<16xf32>
    %343 = vector.shape_cast %342 : vector<16xf32> to vector<16x1xf32>
    %cst_246 = arith.constant 1.280000e+02 : f32
    %344 = vector.broadcast %cst_246 : f32 to vector<16x1xf32>
    %345 = arith.divf %343, %344 : vector<16x1xf32>
    %346 = vector.broadcast %345 : vector<16x1xf32> to vector<16x128xf32>
    %347 = arith.subf %339, %346 : vector<16x128xf32>
    %348 = arith.mulf %347, %347 : vector<16x128xf32>
    %cst_247 = arith.constant dense<0.000000e+00> : vector<16xf32>
    %349 = vector.multi_reduction <add>, %348, %cst_247 [1] : vector<16x128xf32> to vector<16xf32>
    %350 = vector.shape_cast %349 : vector<16xf32> to vector<16x1xf32>
    %cst_248 = arith.constant 1.280000e+02 : f32
    %351 = vector.broadcast %cst_248 : f32 to vector<16x1xf32>
    %352 = arith.divf %350, %351 : vector<16x1xf32>
    %353 = vector.broadcast %345 : vector<16x1xf32> to vector<16x128xf32>
    %354 = arith.subf %339, %353 : vector<16x128xf32>
    %cst_249 = arith.constant 9.99999974E-6 : f32
    %355 = vector.broadcast %cst_249 : f32 to vector<16x1xf32>
    %356 = arith.addf %352, %355 : vector<16x1xf32>
    %357 = math.rsqrt %356 : vector<16x1xf32>
    %358 = vector.broadcast %357 : vector<16x1xf32> to vector<16x128xf32>
    %359 = arith.mulf %354, %358 : vector<16x128xf32>
    %360 = vector.broadcast %340 : vector<1x128xf32> to vector<16x128xf32>
    %361 = arith.mulf %359, %360 : vector<16x128xf32>
    %362 = vector.broadcast %341 : vector<1x128xf32> to vector<16x128xf32>
    %363 = arith.addf %361, %362 : vector<16x128xf32>
    %364 = vector.extract_strided_slice %338 {offsets = [0, 0], sizes = [1, 8], strides = [1, 1]} : vector<2x8xf32> to vector<1x8xf32>
    %365 = vector.shape_cast %364 : vector<1x8xf32> to vector<1x8xf32>
    %366 = vector.broadcast %365 : vector<1x8xf32> to vector<32x8xf32>
    %367 = vector.extract_strided_slice %338 {offsets = [1, 0], sizes = [1, 8], strides = [1, 1]} : vector<2x8xf32> to vector<1x8xf32>
    %368 = vector.shape_cast %367 : vector<1x8xf32> to vector<1x8xf32>
    %369 = vector.broadcast %368 : vector<1x8xf32> to vector<32x8xf32>
    %370 = tpu.concatenate %366, %369 in 0 : vector<32x8xf32>, vector<32x8xf32> -> vector<64x8xf32>
    %371 = arith.truncf %363 : vector<16x128xf32> to vector<16x128xbf16>
    %c0_250 = arith.constant 0 : index
    %c0_251 = arith.constant 0 : index
    %c0_252 = arith.constant 0 : index
    %372 = vector.load %arg4[%c0_250, %c0_251, %c0_252] : memref<2x128x1024xbf16, #tpu.memory_space<vmem>>, vector<1x128x384xbf16>
    %373 = vector.shape_cast %372 : vector<1x128x384xbf16> to vector<128x384xbf16>
    %cst_253 = arith.constant dense<0.000000e+00> : vector<16x384xf32>
    %374 = tpu.matmul %371, %373, %cst_253 {dimension_numbers = #tpu.dot_dimension_numbers<[1], [0], [0], [1], [0, 0, 1, 1], [], []>} : vector<16x128xbf16>, vector<128x384xbf16>, vector<16x384xf32> -> vector<16x384xf32>
    %c3_254 = arith.constant 3 : index
    %c0_255 = arith.constant 0 : index
    %375 = vector.load %arg3[%c3_254, %c0_255] : memref<19x512xf32, #tpu.memory_space<vmem>>, vector<1x384xf32>
    %376 = vector.broadcast %375 : vector<1x384xf32> to vector<16x384xf32>
    %377 = arith.addf %374, %376 : vector<16x384xf32>
    %378 = vector.extract_strided_slice %377 {offsets = [0, 0], sizes = [8, 32], strides = [1, 1]} : vector<16x384xf32> to vector<8x32xf32>
    %379 = vector.extract_strided_slice %377 {offsets = [0, 128], sizes = [8, 32], strides = [1, 1]} : vector<16x384xf32> to vector<8x32xf32>
    %380 = arith.truncf %378 : vector<8x32xf32> to vector<8x32xbf16>
    %381 = arith.truncf %379 : vector<8x32xf32> to vector<8x32xbf16>
    %cst_256 = arith.constant dense<0.000000e+00> : vector<8x8xf32>
    %382 = tpu.matmul %380, %381, %cst_256 {dimension_numbers = #tpu.dot_dimension_numbers<[1], [1], [0], [0], [0, 0, 1, 0], [], []>} : vector<8x32xbf16>, vector<8x32xbf16>, vector<8x8xf32> -> vector<8x8xf32>
    %383 = vector.extract_strided_slice %377 {offsets = [0, 32], sizes = [8, 32], strides = [1, 1]} : vector<16x384xf32> to vector<8x32xf32>
    %384 = vector.extract_strided_slice %377 {offsets = [0, 160], sizes = [8, 32], strides = [1, 1]} : vector<16x384xf32> to vector<8x32xf32>
    %385 = arith.truncf %383 : vector<8x32xf32> to vector<8x32xbf16>
    %386 = arith.truncf %384 : vector<8x32xf32> to vector<8x32xbf16>
    %cst_257 = arith.constant dense<0.000000e+00> : vector<8x8xf32>
    %387 = tpu.matmul %385, %386, %cst_257 {dimension_numbers = #tpu.dot_dimension_numbers<[1], [1], [0], [0], [0, 0, 1, 0], [], []>} : vector<8x32xbf16>, vector<8x32xbf16>, vector<8x8xf32> -> vector<8x8xf32>
    %388 = vector.extract_strided_slice %377 {offsets = [0, 64], sizes = [8, 32], strides = [1, 1]} : vector<16x384xf32> to vector<8x32xf32>
    %389 = vector.extract_strided_slice %377 {offsets = [0, 192], sizes = [8, 32], strides = [1, 1]} : vector<16x384xf32> to vector<8x32xf32>
    %390 = arith.truncf %388 : vector<8x32xf32> to vector<8x32xbf16>
    %391 = arith.truncf %389 : vector<8x32xf32> to vector<8x32xbf16>
    %cst_258 = arith.constant dense<0.000000e+00> : vector<8x8xf32>
    %392 = tpu.matmul %390, %391, %cst_258 {dimension_numbers = #tpu.dot_dimension_numbers<[1], [1], [0], [0], [0, 0, 1, 0], [], []>} : vector<8x32xbf16>, vector<8x32xbf16>, vector<8x8xf32> -> vector<8x8xf32>
    %393 = vector.extract_strided_slice %377 {offsets = [0, 96], sizes = [8, 32], strides = [1, 1]} : vector<16x384xf32> to vector<8x32xf32>
    %394 = vector.extract_strided_slice %377 {offsets = [0, 224], sizes = [8, 32], strides = [1, 1]} : vector<16x384xf32> to vector<8x32xf32>
    %395 = arith.truncf %393 : vector<8x32xf32> to vector<8x32xbf16>
    %396 = arith.truncf %394 : vector<8x32xf32> to vector<8x32xbf16>
    %cst_259 = arith.constant dense<0.000000e+00> : vector<8x8xf32>
    %397 = tpu.matmul %395, %396, %cst_259 {dimension_numbers = #tpu.dot_dimension_numbers<[1], [1], [0], [0], [0, 0, 1, 0], [], []>} : vector<8x32xbf16>, vector<8x32xbf16>, vector<8x8xf32> -> vector<8x8xf32>
    %398 = vector.extract_strided_slice %377 {offsets = [8, 0], sizes = [8, 32], strides = [1, 1]} : vector<16x384xf32> to vector<8x32xf32>
    %399 = vector.extract_strided_slice %377 {offsets = [8, 128], sizes = [8, 32], strides = [1, 1]} : vector<16x384xf32> to vector<8x32xf32>
    %400 = arith.truncf %398 : vector<8x32xf32> to vector<8x32xbf16>
    %401 = arith.truncf %399 : vector<8x32xf32> to vector<8x32xbf16>
    %cst_260 = arith.constant dense<0.000000e+00> : vector<8x8xf32>
    %402 = tpu.matmul %400, %401, %cst_260 {dimension_numbers = #tpu.dot_dimension_numbers<[1], [1], [0], [0], [0, 0, 1, 0], [], []>} : vector<8x32xbf16>, vector<8x32xbf16>, vector<8x8xf32> -> vector<8x8xf32>
    %403 = vector.extract_strided_slice %377 {offsets = [8, 32], sizes = [8, 32], strides = [1, 1]} : vector<16x384xf32> to vector<8x32xf32>
    %404 = vector.extract_strided_slice %377 {offsets = [8, 160], sizes = [8, 32], strides = [1, 1]} : vector<16x384xf32> to vector<8x32xf32>
    %405 = arith.truncf %403 : vector<8x32xf32> to vector<8x32xbf16>
    %406 = arith.truncf %404 : vector<8x32xf32> to vector<8x32xbf16>
    %cst_261 = arith.constant dense<0.000000e+00> : vector<8x8xf32>
    %407 = tpu.matmul %405, %406, %cst_261 {dimension_numbers = #tpu.dot_dimension_numbers<[1], [1], [0], [0], [0, 0, 1, 0], [], []>} : vector<8x32xbf16>, vector<8x32xbf16>, vector<8x8xf32> -> vector<8x8xf32>
    %408 = vector.extract_strided_slice %377 {offsets = [8, 64], sizes = [8, 32], strides = [1, 1]} : vector<16x384xf32> to vector<8x32xf32>
    %409 = vector.extract_strided_slice %377 {offsets = [8, 192], sizes = [8, 32], strides = [1, 1]} : vector<16x384xf32> to vector<8x32xf32>
    %410 = arith.truncf %408 : vector<8x32xf32> to vector<8x32xbf16>
    %411 = arith.truncf %409 : vector<8x32xf32> to vector<8x32xbf16>
    %cst_262 = arith.constant dense<0.000000e+00> : vector<8x8xf32>
    %412 = tpu.matmul %410, %411, %cst_262 {dimension_numbers = #tpu.dot_dimension_numbers<[1], [1], [0], [0], [0, 0, 1, 0], [], []>} : vector<8x32xbf16>, vector<8x32xbf16>, vector<8x8xf32> -> vector<8x8xf32>
    %413 = vector.extract_strided_slice %377 {offsets = [8, 96], sizes = [8, 32], strides = [1, 1]} : vector<16x384xf32> to vector<8x32xf32>
    %414 = vector.extract_strided_slice %377 {offsets = [8, 224], sizes = [8, 32], strides = [1, 1]} : vector<16x384xf32> to vector<8x32xf32>
    %415 = arith.truncf %413 : vector<8x32xf32> to vector<8x32xbf16>
    %416 = arith.truncf %414 : vector<8x32xf32> to vector<8x32xbf16>
    %cst_263 = arith.constant dense<0.000000e+00> : vector<8x8xf32>
    %417 = tpu.matmul %415, %416, %cst_263 {dimension_numbers = #tpu.dot_dimension_numbers<[1], [1], [0], [0], [0, 0, 1, 0], [], []>} : vector<8x32xbf16>, vector<8x32xbf16>, vector<8x8xf32> -> vector<8x8xf32>
    %418 = tpu.concatenate %382, %387, %392, %397, %402, %407, %412, %417 in 0 : vector<8x8xf32>, vector<8x8xf32>, vector<8x8xf32>, vector<8x8xf32>, vector<8x8xf32>, vector<8x8xf32>, vector<8x8xf32>, vector<8x8xf32> -> vector<64x8xf32>
    %cst_264 = arith.constant 0.176776692 : f32
    %419 = vector.broadcast %cst_264 : f32 to vector<64x8xf32>
    %420 = arith.mulf %418, %419 : vector<64x8xf32>
    %421 = arith.addf %420, %370 : vector<64x8xf32>
    %cst_265 = arith.constant dense<0xFF800000> : vector<64xf32>
    %422 = vector.multi_reduction <maximumf>, %421, %cst_265 [1] : vector<64x8xf32> to vector<64xf32>
    %423 = vector.shape_cast %422 : vector<64xf32> to vector<64x1xf32>
    %424 = vector.broadcast %423 : vector<64x1xf32> to vector<64x8xf32>
    %425 = arith.subf %421, %424 : vector<64x8xf32>
    %426 = math.exp %425 : vector<64x8xf32>
    %cst_266 = arith.constant dense<0.000000e+00> : vector<64xf32>
    %427 = vector.multi_reduction <add>, %426, %cst_266 [1] : vector<64x8xf32> to vector<64xf32>
    %428 = vector.shape_cast %427 : vector<64xf32> to vector<64x1xf32>
    %429 = tpu.reciprocal %428 {approx = true} : vector<64x1xf32> -> vector<64x1xf32>
    %430 = vector.broadcast %429 : vector<64x1xf32> to vector<64x8xf32>
    %431 = arith.mulf %426, %430 : vector<64x8xf32>
    %432 = vector.extract_strided_slice %431 {offsets = [0, 0], sizes = [8, 8], strides = [1, 1]} : vector<64x8xf32> to vector<8x8xf32>
    %433 = vector.extract_strided_slice %377 {offsets = [0, 256], sizes = [8, 32], strides = [1, 1]} : vector<16x384xf32> to vector<8x32xf32>
    %434 = arith.truncf %432 : vector<8x8xf32> to vector<8x8xbf16>
    %435 = arith.truncf %433 : vector<8x32xf32> to vector<8x32xbf16>
    %cst_267 = arith.constant dense<0.000000e+00> : vector<8x32xf32>
    %436 = tpu.matmul %434, %435, %cst_267 {dimension_numbers = #tpu.dot_dimension_numbers<[1], [0], [0], [1], [0, 0, 1, 1], [], []>} : vector<8x8xbf16>, vector<8x32xbf16>, vector<8x32xf32> -> vector<8x32xf32>
    %437 = vector.extract_strided_slice %431 {offsets = [8, 0], sizes = [8, 8], strides = [1, 1]} : vector<64x8xf32> to vector<8x8xf32>
    %438 = vector.extract_strided_slice %377 {offsets = [0, 288], sizes = [8, 32], strides = [1, 1]} : vector<16x384xf32> to vector<8x32xf32>
    %439 = arith.truncf %437 : vector<8x8xf32> to vector<8x8xbf16>
    %440 = arith.truncf %438 : vector<8x32xf32> to vector<8x32xbf16>
    %cst_268 = arith.constant dense<0.000000e+00> : vector<8x32xf32>
    %441 = tpu.matmul %439, %440, %cst_268 {dimension_numbers = #tpu.dot_dimension_numbers<[1], [0], [0], [1], [0, 0, 1, 1], [], []>} : vector<8x8xbf16>, vector<8x32xbf16>, vector<8x32xf32> -> vector<8x32xf32>
    %442 = vector.extract_strided_slice %431 {offsets = [16, 0], sizes = [8, 8], strides = [1, 1]} : vector<64x8xf32> to vector<8x8xf32>
    %443 = vector.extract_strided_slice %377 {offsets = [0, 320], sizes = [8, 32], strides = [1, 1]} : vector<16x384xf32> to vector<8x32xf32>
    %444 = arith.truncf %442 : vector<8x8xf32> to vector<8x8xbf16>
    %445 = arith.truncf %443 : vector<8x32xf32> to vector<8x32xbf16>
    %cst_269 = arith.constant dense<0.000000e+00> : vector<8x32xf32>
    %446 = tpu.matmul %444, %445, %cst_269 {dimension_numbers = #tpu.dot_dimension_numbers<[1], [0], [0], [1], [0, 0, 1, 1], [], []>} : vector<8x8xbf16>, vector<8x32xbf16>, vector<8x32xf32> -> vector<8x32xf32>
    %447 = vector.extract_strided_slice %431 {offsets = [24, 0], sizes = [8, 8], strides = [1, 1]} : vector<64x8xf32> to vector<8x8xf32>
    %448 = vector.extract_strided_slice %377 {offsets = [0, 352], sizes = [8, 32], strides = [1, 1]} : vector<16x384xf32> to vector<8x32xf32>
    %449 = arith.truncf %447 : vector<8x8xf32> to vector<8x8xbf16>
    %450 = arith.truncf %448 : vector<8x32xf32> to vector<8x32xbf16>
    %cst_270 = arith.constant dense<0.000000e+00> : vector<8x32xf32>
    %451 = tpu.matmul %449, %450, %cst_270 {dimension_numbers = #tpu.dot_dimension_numbers<[1], [0], [0], [1], [0, 0, 1, 1], [], []>} : vector<8x8xbf16>, vector<8x32xbf16>, vector<8x32xf32> -> vector<8x32xf32>
    %452 = tpu.concatenate %436, %441, %446, %451 in 1 : vector<8x32xf32>, vector<8x32xf32>, vector<8x32xf32>, vector<8x32xf32> -> vector<8x128xf32>
    %453 = vector.extract_strided_slice %431 {offsets = [32, 0], sizes = [8, 8], strides = [1, 1]} : vector<64x8xf32> to vector<8x8xf32>
    %454 = vector.extract_strided_slice %377 {offsets = [8, 256], sizes = [8, 32], strides = [1, 1]} : vector<16x384xf32> to vector<8x32xf32>
    %455 = arith.truncf %453 : vector<8x8xf32> to vector<8x8xbf16>
    %456 = arith.truncf %454 : vector<8x32xf32> to vector<8x32xbf16>
    %cst_271 = arith.constant dense<0.000000e+00> : vector<8x32xf32>
    %457 = tpu.matmul %455, %456, %cst_271 {dimension_numbers = #tpu.dot_dimension_numbers<[1], [0], [0], [1], [0, 0, 1, 1], [], []>} : vector<8x8xbf16>, vector<8x32xbf16>, vector<8x32xf32> -> vector<8x32xf32>
    %458 = vector.extract_strided_slice %431 {offsets = [40, 0], sizes = [8, 8], strides = [1, 1]} : vector<64x8xf32> to vector<8x8xf32>
    %459 = vector.extract_strided_slice %377 {offsets = [8, 288], sizes = [8, 32], strides = [1, 1]} : vector<16x384xf32> to vector<8x32xf32>
    %460 = arith.truncf %458 : vector<8x8xf32> to vector<8x8xbf16>
    %461 = arith.truncf %459 : vector<8x32xf32> to vector<8x32xbf16>
    %cst_272 = arith.constant dense<0.000000e+00> : vector<8x32xf32>
    %462 = tpu.matmul %460, %461, %cst_272 {dimension_numbers = #tpu.dot_dimension_numbers<[1], [0], [0], [1], [0, 0, 1, 1], [], []>} : vector<8x8xbf16>, vector<8x32xbf16>, vector<8x32xf32> -> vector<8x32xf32>
    %463 = vector.extract_strided_slice %431 {offsets = [48, 0], sizes = [8, 8], strides = [1, 1]} : vector<64x8xf32> to vector<8x8xf32>
    %464 = vector.extract_strided_slice %377 {offsets = [8, 320], sizes = [8, 32], strides = [1, 1]} : vector<16x384xf32> to vector<8x32xf32>
    %465 = arith.truncf %463 : vector<8x8xf32> to vector<8x8xbf16>
    %466 = arith.truncf %464 : vector<8x32xf32> to vector<8x32xbf16>
    %cst_273 = arith.constant dense<0.000000e+00> : vector<8x32xf32>
    %467 = tpu.matmul %465, %466, %cst_273 {dimension_numbers = #tpu.dot_dimension_numbers<[1], [0], [0], [1], [0, 0, 1, 1], [], []>} : vector<8x8xbf16>, vector<8x32xbf16>, vector<8x32xf32> -> vector<8x32xf32>
    %468 = vector.extract_strided_slice %431 {offsets = [56, 0], sizes = [8, 8], strides = [1, 1]} : vector<64x8xf32> to vector<8x8xf32>
    %469 = vector.extract_strided_slice %377 {offsets = [8, 352], sizes = [8, 32], strides = [1, 1]} : vector<16x384xf32> to vector<8x32xf32>
    %470 = arith.truncf %468 : vector<8x8xf32> to vector<8x8xbf16>
    %471 = arith.truncf %469 : vector<8x32xf32> to vector<8x32xbf16>
    %cst_274 = arith.constant dense<0.000000e+00> : vector<8x32xf32>
    %472 = tpu.matmul %470, %471, %cst_274 {dimension_numbers = #tpu.dot_dimension_numbers<[1], [0], [0], [1], [0, 0, 1, 1], [], []>} : vector<8x8xbf16>, vector<8x32xbf16>, vector<8x32xf32> -> vector<8x32xf32>
    %473 = tpu.concatenate %457, %462, %467, %472 in 1 : vector<8x32xf32>, vector<8x32xf32>, vector<8x32xf32>, vector<8x32xf32> -> vector<8x128xf32>
    %474 = tpu.concatenate %452, %473 in 0 : vector<8x128xf32>, vector<8x128xf32> -> vector<16x128xf32>
    %475 = arith.truncf %474 : vector<16x128xf32> to vector<16x128xbf16>
    %c0_275 = arith.constant 0 : index
    %c0_276 = arith.constant 0 : index
    %c384 = arith.constant 384 : index
    %476 = vector.load %arg4[%c0_275, %c0_276, %c384] : memref<2x128x1024xbf16, #tpu.memory_space<vmem>>, vector<1x128x128xbf16>
    %477 = vector.shape_cast %476 : vector<1x128x128xbf16> to vector<128x128xbf16>
    %cst_277 = arith.constant dense<0.000000e+00> : vector<16x128xf32>
    %478 = tpu.matmul %475, %477, %cst_277 {dimension_numbers = #tpu.dot_dimension_numbers<[1], [0], [0], [1], [0, 0, 1, 1], [], []>} : vector<16x128xbf16>, vector<128x128xbf16>, vector<16x128xf32> -> vector<16x128xf32>
    %c4_278 = arith.constant 4 : index
    %c0_279 = arith.constant 0 : index
    %479 = vector.load %arg3[%c4_278, %c0_279] : memref<19x512xf32, #tpu.memory_space<vmem>>, vector<1x128xf32>
    %480 = vector.broadcast %479 : vector<1x128xf32> to vector<16x128xf32>
    %481 = arith.addf %478, %480 : vector<16x128xf32>
    %482 = arith.addf %363, %481 : vector<16x128xf32>
    %c5_280 = arith.constant 5 : index
    %c0_281 = arith.constant 0 : index
    %483 = vector.load %arg3[%c5_280, %c0_281] : memref<19x512xf32, #tpu.memory_space<vmem>>, vector<1x128xf32>
    %c6_282 = arith.constant 6 : index
    %c0_283 = arith.constant 0 : index
    %484 = vector.load %arg3[%c6_282, %c0_283] : memref<19x512xf32, #tpu.memory_space<vmem>>, vector<1x128xf32>
    %cst_284 = arith.constant dense<0.000000e+00> : vector<16xf32>
    %485 = vector.multi_reduction <add>, %482, %cst_284 [1] : vector<16x128xf32> to vector<16xf32>
    %486 = vector.shape_cast %485 : vector<16xf32> to vector<16x1xf32>
    %cst_285 = arith.constant 1.280000e+02 : f32
    %487 = vector.broadcast %cst_285 : f32 to vector<16x1xf32>
    %488 = arith.divf %486, %487 : vector<16x1xf32>
    %489 = vector.broadcast %488 : vector<16x1xf32> to vector<16x128xf32>
    %490 = arith.subf %482, %489 : vector<16x128xf32>
    %491 = arith.mulf %490, %490 : vector<16x128xf32>
    %cst_286 = arith.constant dense<0.000000e+00> : vector<16xf32>
    %492 = vector.multi_reduction <add>, %491, %cst_286 [1] : vector<16x128xf32> to vector<16xf32>
    %493 = vector.shape_cast %492 : vector<16xf32> to vector<16x1xf32>
    %cst_287 = arith.constant 1.280000e+02 : f32
    %494 = vector.broadcast %cst_287 : f32 to vector<16x1xf32>
    %495 = arith.divf %493, %494 : vector<16x1xf32>
    %496 = vector.broadcast %488 : vector<16x1xf32> to vector<16x128xf32>
    %497 = arith.subf %482, %496 : vector<16x128xf32>
    %cst_288 = arith.constant 9.99999974E-6 : f32
    %498 = vector.broadcast %cst_288 : f32 to vector<16x1xf32>
    %499 = arith.addf %495, %498 : vector<16x1xf32>
    %500 = math.rsqrt %499 : vector<16x1xf32>
    %501 = vector.broadcast %500 : vector<16x1xf32> to vector<16x128xf32>
    %502 = arith.mulf %497, %501 : vector<16x128xf32>
    %503 = vector.broadcast %483 : vector<1x128xf32> to vector<16x128xf32>
    %504 = arith.mulf %502, %503 : vector<16x128xf32>
    %505 = vector.broadcast %484 : vector<1x128xf32> to vector<16x128xf32>
    %506 = arith.addf %504, %505 : vector<16x128xf32>
    %507 = arith.truncf %506 : vector<16x128xf32> to vector<16x128xbf16>
    %c0_289 = arith.constant 0 : index
    %c0_290 = arith.constant 0 : index
    %c512 = arith.constant 512 : index
    %508 = vector.load %arg4[%c0_289, %c0_290, %c512] : memref<2x128x1024xbf16, #tpu.memory_space<vmem>>, vector<1x128x512xbf16>
    %509 = vector.shape_cast %508 : vector<1x128x512xbf16> to vector<128x512xbf16>
    %cst_291 = arith.constant dense<0.000000e+00> : vector<16x512xf32>
    %510 = tpu.matmul %507, %509, %cst_291 {dimension_numbers = #tpu.dot_dimension_numbers<[1], [0], [0], [1], [0, 0, 1, 1], [], []>} : vector<16x128xbf16>, vector<128x512xbf16>, vector<16x512xf32> -> vector<16x512xf32>
    %c7_292 = arith.constant 7 : index
    %c0_293 = arith.constant 0 : index
    %511 = vector.load %arg3[%c7_292, %c0_293] : memref<19x512xf32, #tpu.memory_space<vmem>>, vector<1x512xf32>
    %512 = vector.broadcast %511 : vector<1x512xf32> to vector<16x512xf32>
    %513 = arith.addf %510, %512 : vector<16x512xf32>
    %cst_294 = arith.constant 5.000000e-01 : f32
    %514 = vector.broadcast %cst_294 : f32 to vector<16x512xf32>
    %515 = arith.mulf %514, %513 : vector<16x512xf32>
    %cst_295 = arith.constant 4.471500e-02 : f32
    %516 = vector.broadcast %cst_295 : f32 to vector<16x512xf32>
    %517 = arith.mulf %516, %513 : vector<16x512xf32>
    %518 = arith.mulf %517, %513 : vector<16x512xf32>
    %519 = arith.mulf %518, %513 : vector<16x512xf32>
    %520 = arith.addf %513, %519 : vector<16x512xf32>
    %cst_296 = arith.constant 0.797884583 : f32
    %521 = vector.broadcast %cst_296 : f32 to vector<16x512xf32>
    %522 = arith.mulf %521, %520 : vector<16x512xf32>
    %523 = math.tanh %522 : vector<16x512xf32>
    %cst_297 = arith.constant 1.000000e+00 : f32
    %524 = vector.broadcast %cst_297 : f32 to vector<16x512xf32>
    %525 = arith.addf %524, %523 : vector<16x512xf32>
    %526 = arith.mulf %515, %525 : vector<16x512xf32>
    %527 = arith.truncf %526 : vector<16x512xf32> to vector<16x512xbf16>
    %c0_298 = arith.constant 0 : index
    %c0_299 = arith.constant 0 : index
    %c0_300 = arith.constant 0 : index
    %528 = vector.load %arg5[%c0_298, %c0_299, %c0_300] : memref<2x512x128xbf16, #tpu.memory_space<vmem>>, vector<1x512x128xbf16>
    %529 = vector.shape_cast %528 : vector<1x512x128xbf16> to vector<512x128xbf16>
    %cst_301 = arith.constant dense<0.000000e+00> : vector<16x128xf32>
    %530 = tpu.matmul %527, %529, %cst_301 {dimension_numbers = #tpu.dot_dimension_numbers<[1], [0], [0], [1], [0, 0, 1, 1], [], []>} : vector<16x512xbf16>, vector<512x128xbf16>, vector<16x128xf32> -> vector<16x128xf32>
    %c8_302 = arith.constant 8 : index
    %c0_303 = arith.constant 0 : index
    %531 = vector.load %arg3[%c8_302, %c0_303] : memref<19x512xf32, #tpu.memory_space<vmem>>, vector<1x128xf32>
    %532 = vector.broadcast %531 : vector<1x128xf32> to vector<16x128xf32>
    %533 = arith.addf %530, %532 : vector<16x128xf32>
    %534 = arith.addf %506, %533 : vector<16x128xf32>
    %c9_304 = arith.constant 9 : index
    %c0_305 = arith.constant 0 : index
    %535 = vector.load %arg3[%c9_304, %c0_305] : memref<19x512xf32, #tpu.memory_space<vmem>>, vector<1x128xf32>
    %c10_306 = arith.constant 10 : index
    %c0_307 = arith.constant 0 : index
    %536 = vector.load %arg3[%c10_306, %c0_307] : memref<19x512xf32, #tpu.memory_space<vmem>>, vector<1x128xf32>
    %cst_308 = arith.constant dense<0.000000e+00> : vector<16xf32>
    %537 = vector.multi_reduction <add>, %534, %cst_308 [1] : vector<16x128xf32> to vector<16xf32>
    %538 = vector.shape_cast %537 : vector<16xf32> to vector<16x1xf32>
    %cst_309 = arith.constant 1.280000e+02 : f32
    %539 = vector.broadcast %cst_309 : f32 to vector<16x1xf32>
    %540 = arith.divf %538, %539 : vector<16x1xf32>
    %541 = vector.broadcast %540 : vector<16x1xf32> to vector<16x128xf32>
    %542 = arith.subf %534, %541 : vector<16x128xf32>
    %543 = arith.mulf %542, %542 : vector<16x128xf32>
    %cst_310 = arith.constant dense<0.000000e+00> : vector<16xf32>
    %544 = vector.multi_reduction <add>, %543, %cst_310 [1] : vector<16x128xf32> to vector<16xf32>
    %545 = vector.shape_cast %544 : vector<16xf32> to vector<16x1xf32>
    %cst_311 = arith.constant 1.280000e+02 : f32
    %546 = vector.broadcast %cst_311 : f32 to vector<16x1xf32>
    %547 = arith.divf %545, %546 : vector<16x1xf32>
    %548 = vector.broadcast %540 : vector<16x1xf32> to vector<16x128xf32>
    %549 = arith.subf %534, %548 : vector<16x128xf32>
    %cst_312 = arith.constant 9.99999974E-6 : f32
    %550 = vector.broadcast %cst_312 : f32 to vector<16x1xf32>
    %551 = arith.addf %547, %550 : vector<16x1xf32>
    %552 = math.rsqrt %551 : vector<16x1xf32>
    %553 = vector.broadcast %552 : vector<16x1xf32> to vector<16x128xf32>
    %554 = arith.mulf %549, %553 : vector<16x128xf32>
    %555 = vector.broadcast %535 : vector<1x128xf32> to vector<16x128xf32>
    %556 = arith.mulf %554, %555 : vector<16x128xf32>
    %557 = vector.broadcast %536 : vector<1x128xf32> to vector<16x128xf32>
    %558 = arith.addf %556, %557 : vector<16x128xf32>
    %559 = arith.truncf %558 : vector<16x128xf32> to vector<16x128xbf16>
    %c1_313 = arith.constant 1 : index
    %c0_314 = arith.constant 0 : index
    %c0_315 = arith.constant 0 : index
    %560 = vector.load %arg4[%c1_313, %c0_314, %c0_315] : memref<2x128x1024xbf16, #tpu.memory_space<vmem>>, vector<1x128x384xbf16>
    %561 = vector.shape_cast %560 : vector<1x128x384xbf16> to vector<128x384xbf16>
    %cst_316 = arith.constant dense<0.000000e+00> : vector<16x384xf32>
    %562 = tpu.matmul %559, %561, %cst_316 {dimension_numbers = #tpu.dot_dimension_numbers<[1], [0], [0], [1], [0, 0, 1, 1], [], []>} : vector<16x128xbf16>, vector<128x384xbf16>, vector<16x384xf32> -> vector<16x384xf32>
    %c11_317 = arith.constant 11 : index
    %c0_318 = arith.constant 0 : index
    %563 = vector.load %arg3[%c11_317, %c0_318] : memref<19x512xf32, #tpu.memory_space<vmem>>, vector<1x384xf32>
    %564 = vector.broadcast %563 : vector<1x384xf32> to vector<16x384xf32>
    %565 = arith.addf %562, %564 : vector<16x384xf32>
    %566 = vector.extract_strided_slice %565 {offsets = [0, 0], sizes = [8, 32], strides = [1, 1]} : vector<16x384xf32> to vector<8x32xf32>
    %567 = vector.extract_strided_slice %565 {offsets = [0, 128], sizes = [8, 32], strides = [1, 1]} : vector<16x384xf32> to vector<8x32xf32>
    %568 = arith.truncf %566 : vector<8x32xf32> to vector<8x32xbf16>
    %569 = arith.truncf %567 : vector<8x32xf32> to vector<8x32xbf16>
    %cst_319 = arith.constant dense<0.000000e+00> : vector<8x8xf32>
    %570 = tpu.matmul %568, %569, %cst_319 {dimension_numbers = #tpu.dot_dimension_numbers<[1], [1], [0], [0], [0, 0, 1, 0], [], []>} : vector<8x32xbf16>, vector<8x32xbf16>, vector<8x8xf32> -> vector<8x8xf32>
    %571 = vector.extract_strided_slice %565 {offsets = [0, 32], sizes = [8, 32], strides = [1, 1]} : vector<16x384xf32> to vector<8x32xf32>
    %572 = vector.extract_strided_slice %565 {offsets = [0, 160], sizes = [8, 32], strides = [1, 1]} : vector<16x384xf32> to vector<8x32xf32>
    %573 = arith.truncf %571 : vector<8x32xf32> to vector<8x32xbf16>
    %574 = arith.truncf %572 : vector<8x32xf32> to vector<8x32xbf16>
    %cst_320 = arith.constant dense<0.000000e+00> : vector<8x8xf32>
    %575 = tpu.matmul %573, %574, %cst_320 {dimension_numbers = #tpu.dot_dimension_numbers<[1], [1], [0], [0], [0, 0, 1, 0], [], []>} : vector<8x32xbf16>, vector<8x32xbf16>, vector<8x8xf32> -> vector<8x8xf32>
    %576 = vector.extract_strided_slice %565 {offsets = [0, 64], sizes = [8, 32], strides = [1, 1]} : vector<16x384xf32> to vector<8x32xf32>
    %577 = vector.extract_strided_slice %565 {offsets = [0, 192], sizes = [8, 32], strides = [1, 1]} : vector<16x384xf32> to vector<8x32xf32>
    %578 = arith.truncf %576 : vector<8x32xf32> to vector<8x32xbf16>
    %579 = arith.truncf %577 : vector<8x32xf32> to vector<8x32xbf16>
    %cst_321 = arith.constant dense<0.000000e+00> : vector<8x8xf32>
    %580 = tpu.matmul %578, %579, %cst_321 {dimension_numbers = #tpu.dot_dimension_numbers<[1], [1], [0], [0], [0, 0, 1, 0], [], []>} : vector<8x32xbf16>, vector<8x32xbf16>, vector<8x8xf32> -> vector<8x8xf32>
    %581 = vector.extract_strided_slice %565 {offsets = [0, 96], sizes = [8, 32], strides = [1, 1]} : vector<16x384xf32> to vector<8x32xf32>
    %582 = vector.extract_strided_slice %565 {offsets = [0, 224], sizes = [8, 32], strides = [1, 1]} : vector<16x384xf32> to vector<8x32xf32>
    %583 = arith.truncf %581 : vector<8x32xf32> to vector<8x32xbf16>
    %584 = arith.truncf %582 : vector<8x32xf32> to vector<8x32xbf16>
    %cst_322 = arith.constant dense<0.000000e+00> : vector<8x8xf32>
    %585 = tpu.matmul %583, %584, %cst_322 {dimension_numbers = #tpu.dot_dimension_numbers<[1], [1], [0], [0], [0, 0, 1, 0], [], []>} : vector<8x32xbf16>, vector<8x32xbf16>, vector<8x8xf32> -> vector<8x8xf32>
    %586 = vector.extract_strided_slice %565 {offsets = [8, 0], sizes = [8, 32], strides = [1, 1]} : vector<16x384xf32> to vector<8x32xf32>
    %587 = vector.extract_strided_slice %565 {offsets = [8, 128], sizes = [8, 32], strides = [1, 1]} : vector<16x384xf32> to vector<8x32xf32>
    %588 = arith.truncf %586 : vector<8x32xf32> to vector<8x32xbf16>
    %589 = arith.truncf %587 : vector<8x32xf32> to vector<8x32xbf16>
    %cst_323 = arith.constant dense<0.000000e+00> : vector<8x8xf32>
    %590 = tpu.matmul %588, %589, %cst_323 {dimension_numbers = #tpu.dot_dimension_numbers<[1], [1], [0], [0], [0, 0, 1, 0], [], []>} : vector<8x32xbf16>, vector<8x32xbf16>, vector<8x8xf32> -> vector<8x8xf32>
    %591 = vector.extract_strided_slice %565 {offsets = [8, 32], sizes = [8, 32], strides = [1, 1]} : vector<16x384xf32> to vector<8x32xf32>
    %592 = vector.extract_strided_slice %565 {offsets = [8, 160], sizes = [8, 32], strides = [1, 1]} : vector<16x384xf32> to vector<8x32xf32>
    %593 = arith.truncf %591 : vector<8x32xf32> to vector<8x32xbf16>
    %594 = arith.truncf %592 : vector<8x32xf32> to vector<8x32xbf16>
    %cst_324 = arith.constant dense<0.000000e+00> : vector<8x8xf32>
    %595 = tpu.matmul %593, %594, %cst_324 {dimension_numbers = #tpu.dot_dimension_numbers<[1], [1], [0], [0], [0, 0, 1, 0], [], []>} : vector<8x32xbf16>, vector<8x32xbf16>, vector<8x8xf32> -> vector<8x8xf32>
    %596 = vector.extract_strided_slice %565 {offsets = [8, 64], sizes = [8, 32], strides = [1, 1]} : vector<16x384xf32> to vector<8x32xf32>
    %597 = vector.extract_strided_slice %565 {offsets = [8, 192], sizes = [8, 32], strides = [1, 1]} : vector<16x384xf32> to vector<8x32xf32>
    %598 = arith.truncf %596 : vector<8x32xf32> to vector<8x32xbf16>
    %599 = arith.truncf %597 : vector<8x32xf32> to vector<8x32xbf16>
    %cst_325 = arith.constant dense<0.000000e+00> : vector<8x8xf32>
    %600 = tpu.matmul %598, %599, %cst_325 {dimension_numbers = #tpu.dot_dimension_numbers<[1], [1], [0], [0], [0, 0, 1, 0], [], []>} : vector<8x32xbf16>, vector<8x32xbf16>, vector<8x8xf32> -> vector<8x8xf32>
    %601 = vector.extract_strided_slice %565 {offsets = [8, 96], sizes = [8, 32], strides = [1, 1]} : vector<16x384xf32> to vector<8x32xf32>
    %602 = vector.extract_strided_slice %565 {offsets = [8, 224], sizes = [8, 32], strides = [1, 1]} : vector<16x384xf32> to vector<8x32xf32>
    %603 = arith.truncf %601 : vector<8x32xf32> to vector<8x32xbf16>
    %604 = arith.truncf %602 : vector<8x32xf32> to vector<8x32xbf16>
    %cst_326 = arith.constant dense<0.000000e+00> : vector<8x8xf32>
    %605 = tpu.matmul %603, %604, %cst_326 {dimension_numbers = #tpu.dot_dimension_numbers<[1], [1], [0], [0], [0, 0, 1, 0], [], []>} : vector<8x32xbf16>, vector<8x32xbf16>, vector<8x8xf32> -> vector<8x8xf32>
    %606 = tpu.concatenate %570, %575, %580, %585, %590, %595, %600, %605 in 0 : vector<8x8xf32>, vector<8x8xf32>, vector<8x8xf32>, vector<8x8xf32>, vector<8x8xf32>, vector<8x8xf32>, vector<8x8xf32>, vector<8x8xf32> -> vector<64x8xf32>
    %cst_327 = arith.constant 0.176776692 : f32
    %607 = vector.broadcast %cst_327 : f32 to vector<64x8xf32>
    %608 = arith.mulf %606, %607 : vector<64x8xf32>
    %609 = arith.addf %608, %370 : vector<64x8xf32>
    %cst_328 = arith.constant dense<0xFF800000> : vector<64xf32>
    %610 = vector.multi_reduction <maximumf>, %609, %cst_328 [1] : vector<64x8xf32> to vector<64xf32>
    %611 = vector.shape_cast %610 : vector<64xf32> to vector<64x1xf32>
    %612 = vector.broadcast %611 : vector<64x1xf32> to vector<64x8xf32>
    %613 = arith.subf %609, %612 : vector<64x8xf32>
    %614 = math.exp %613 : vector<64x8xf32>
    %cst_329 = arith.constant dense<0.000000e+00> : vector<64xf32>
    %615 = vector.multi_reduction <add>, %614, %cst_329 [1] : vector<64x8xf32> to vector<64xf32>
    %616 = vector.shape_cast %615 : vector<64xf32> to vector<64x1xf32>
    %617 = tpu.reciprocal %616 {approx = true} : vector<64x1xf32> -> vector<64x1xf32>
    %618 = vector.broadcast %617 : vector<64x1xf32> to vector<64x8xf32>
    %619 = arith.mulf %614, %618 : vector<64x8xf32>
    %620 = vector.extract_strided_slice %619 {offsets = [0, 0], sizes = [8, 8], strides = [1, 1]} : vector<64x8xf32> to vector<8x8xf32>
    %621 = vector.extract_strided_slice %565 {offsets = [0, 256], sizes = [8, 32], strides = [1, 1]} : vector<16x384xf32> to vector<8x32xf32>
    %622 = arith.truncf %620 : vector<8x8xf32> to vector<8x8xbf16>
    %623 = arith.truncf %621 : vector<8x32xf32> to vector<8x32xbf16>
    %cst_330 = arith.constant dense<0.000000e+00> : vector<8x32xf32>
    %624 = tpu.matmul %622, %623, %cst_330 {dimension_numbers = #tpu.dot_dimension_numbers<[1], [0], [0], [1], [0, 0, 1, 1], [], []>} : vector<8x8xbf16>, vector<8x32xbf16>, vector<8x32xf32> -> vector<8x32xf32>
    %625 = vector.extract_strided_slice %619 {offsets = [8, 0], sizes = [8, 8], strides = [1, 1]} : vector<64x8xf32> to vector<8x8xf32>
    %626 = vector.extract_strided_slice %565 {offsets = [0, 288], sizes = [8, 32], strides = [1, 1]} : vector<16x384xf32> to vector<8x32xf32>
    %627 = arith.truncf %625 : vector<8x8xf32> to vector<8x8xbf16>
    %628 = arith.truncf %626 : vector<8x32xf32> to vector<8x32xbf16>
    %cst_331 = arith.constant dense<0.000000e+00> : vector<8x32xf32>
    %629 = tpu.matmul %627, %628, %cst_331 {dimension_numbers = #tpu.dot_dimension_numbers<[1], [0], [0], [1], [0, 0, 1, 1], [], []>} : vector<8x8xbf16>, vector<8x32xbf16>, vector<8x32xf32> -> vector<8x32xf32>
    %630 = vector.extract_strided_slice %619 {offsets = [16, 0], sizes = [8, 8], strides = [1, 1]} : vector<64x8xf32> to vector<8x8xf32>
    %631 = vector.extract_strided_slice %565 {offsets = [0, 320], sizes = [8, 32], strides = [1, 1]} : vector<16x384xf32> to vector<8x32xf32>
    %632 = arith.truncf %630 : vector<8x8xf32> to vector<8x8xbf16>
    %633 = arith.truncf %631 : vector<8x32xf32> to vector<8x32xbf16>
    %cst_332 = arith.constant dense<0.000000e+00> : vector<8x32xf32>
    %634 = tpu.matmul %632, %633, %cst_332 {dimension_numbers = #tpu.dot_dimension_numbers<[1], [0], [0], [1], [0, 0, 1, 1], [], []>} : vector<8x8xbf16>, vector<8x32xbf16>, vector<8x32xf32> -> vector<8x32xf32>
    %635 = vector.extract_strided_slice %619 {offsets = [24, 0], sizes = [8, 8], strides = [1, 1]} : vector<64x8xf32> to vector<8x8xf32>
    %636 = vector.extract_strided_slice %565 {offsets = [0, 352], sizes = [8, 32], strides = [1, 1]} : vector<16x384xf32> to vector<8x32xf32>
    %637 = arith.truncf %635 : vector<8x8xf32> to vector<8x8xbf16>
    %638 = arith.truncf %636 : vector<8x32xf32> to vector<8x32xbf16>
    %cst_333 = arith.constant dense<0.000000e+00> : vector<8x32xf32>
    %639 = tpu.matmul %637, %638, %cst_333 {dimension_numbers = #tpu.dot_dimension_numbers<[1], [0], [0], [1], [0, 0, 1, 1], [], []>} : vector<8x8xbf16>, vector<8x32xbf16>, vector<8x32xf32> -> vector<8x32xf32>
    %640 = tpu.concatenate %624, %629, %634, %639 in 1 : vector<8x32xf32>, vector<8x32xf32>, vector<8x32xf32>, vector<8x32xf32> -> vector<8x128xf32>
    %641 = vector.extract_strided_slice %619 {offsets = [32, 0], sizes = [8, 8], strides = [1, 1]} : vector<64x8xf32> to vector<8x8xf32>
    %642 = vector.extract_strided_slice %565 {offsets = [8, 256], sizes = [8, 32], strides = [1, 1]} : vector<16x384xf32> to vector<8x32xf32>
    %643 = arith.truncf %641 : vector<8x8xf32> to vector<8x8xbf16>
    %644 = arith.truncf %642 : vector<8x32xf32> to vector<8x32xbf16>
    %cst_334 = arith.constant dense<0.000000e+00> : vector<8x32xf32>
    %645 = tpu.matmul %643, %644, %cst_334 {dimension_numbers = #tpu.dot_dimension_numbers<[1], [0], [0], [1], [0, 0, 1, 1], [], []>} : vector<8x8xbf16>, vector<8x32xbf16>, vector<8x32xf32> -> vector<8x32xf32>
    %646 = vector.extract_strided_slice %619 {offsets = [40, 0], sizes = [8, 8], strides = [1, 1]} : vector<64x8xf32> to vector<8x8xf32>
    %647 = vector.extract_strided_slice %565 {offsets = [8, 288], sizes = [8, 32], strides = [1, 1]} : vector<16x384xf32> to vector<8x32xf32>
    %648 = arith.truncf %646 : vector<8x8xf32> to vector<8x8xbf16>
    %649 = arith.truncf %647 : vector<8x32xf32> to vector<8x32xbf16>
    %cst_335 = arith.constant dense<0.000000e+00> : vector<8x32xf32>
    %650 = tpu.matmul %648, %649, %cst_335 {dimension_numbers = #tpu.dot_dimension_numbers<[1], [0], [0], [1], [0, 0, 1, 1], [], []>} : vector<8x8xbf16>, vector<8x32xbf16>, vector<8x32xf32> -> vector<8x32xf32>
    %651 = vector.extract_strided_slice %619 {offsets = [48, 0], sizes = [8, 8], strides = [1, 1]} : vector<64x8xf32> to vector<8x8xf32>
    %652 = vector.extract_strided_slice %565 {offsets = [8, 320], sizes = [8, 32], strides = [1, 1]} : vector<16x384xf32> to vector<8x32xf32>
    %653 = arith.truncf %651 : vector<8x8xf32> to vector<8x8xbf16>
    %654 = arith.truncf %652 : vector<8x32xf32> to vector<8x32xbf16>
    %cst_336 = arith.constant dense<0.000000e+00> : vector<8x32xf32>
    %655 = tpu.matmul %653, %654, %cst_336 {dimension_numbers = #tpu.dot_dimension_numbers<[1], [0], [0], [1], [0, 0, 1, 1], [], []>} : vector<8x8xbf16>, vector<8x32xbf16>, vector<8x32xf32> -> vector<8x32xf32>
    %656 = vector.extract_strided_slice %619 {offsets = [56, 0], sizes = [8, 8], strides = [1, 1]} : vector<64x8xf32> to vector<8x8xf32>
    %657 = vector.extract_strided_slice %565 {offsets = [8, 352], sizes = [8, 32], strides = [1, 1]} : vector<16x384xf32> to vector<8x32xf32>
    %658 = arith.truncf %656 : vector<8x8xf32> to vector<8x8xbf16>
    %659 = arith.truncf %657 : vector<8x32xf32> to vector<8x32xbf16>
    %cst_337 = arith.constant dense<0.000000e+00> : vector<8x32xf32>
    %660 = tpu.matmul %658, %659, %cst_337 {dimension_numbers = #tpu.dot_dimension_numbers<[1], [0], [0], [1], [0, 0, 1, 1], [], []>} : vector<8x8xbf16>, vector<8x32xbf16>, vector<8x32xf32> -> vector<8x32xf32>
    %661 = tpu.concatenate %645, %650, %655, %660 in 1 : vector<8x32xf32>, vector<8x32xf32>, vector<8x32xf32>, vector<8x32xf32> -> vector<8x128xf32>
    %662 = tpu.concatenate %640, %661 in 0 : vector<8x128xf32>, vector<8x128xf32> -> vector<16x128xf32>
    %663 = arith.truncf %662 : vector<16x128xf32> to vector<16x128xbf16>
    %c1_338 = arith.constant 1 : index
    %c0_339 = arith.constant 0 : index
    %c384_340 = arith.constant 384 : index
    %664 = vector.load %arg4[%c1_338, %c0_339, %c384_340] : memref<2x128x1024xbf16, #tpu.memory_space<vmem>>, vector<1x128x128xbf16>
    %665 = vector.shape_cast %664 : vector<1x128x128xbf16> to vector<128x128xbf16>
    %cst_341 = arith.constant dense<0.000000e+00> : vector<16x128xf32>
    %666 = tpu.matmul %663, %665, %cst_341 {dimension_numbers = #tpu.dot_dimension_numbers<[1], [0], [0], [1], [0, 0, 1, 1], [], []>} : vector<16x128xbf16>, vector<128x128xbf16>, vector<16x128xf32> -> vector<16x128xf32>
    %c12_342 = arith.constant 12 : index
    %c0_343 = arith.constant 0 : index
    %667 = vector.load %arg3[%c12_342, %c0_343] : memref<19x512xf32, #tpu.memory_space<vmem>>, vector<1x128xf32>
    %668 = vector.broadcast %667 : vector<1x128xf32> to vector<16x128xf32>
    %669 = arith.addf %666, %668 : vector<16x128xf32>
    %670 = arith.addf %558, %669 : vector<16x128xf32>
    %c13_344 = arith.constant 13 : index
    %c0_345 = arith.constant 0 : index
    %671 = vector.load %arg3[%c13_344, %c0_345] : memref<19x512xf32, #tpu.memory_space<vmem>>, vector<1x128xf32>
    %c14_346 = arith.constant 14 : index
    %c0_347 = arith.constant 0 : index
    %672 = vector.load %arg3[%c14_346, %c0_347] : memref<19x512xf32, #tpu.memory_space<vmem>>, vector<1x128xf32>
    %cst_348 = arith.constant dense<0.000000e+00> : vector<16xf32>
    %673 = vector.multi_reduction <add>, %670, %cst_348 [1] : vector<16x128xf32> to vector<16xf32>
    %674 = vector.shape_cast %673 : vector<16xf32> to vector<16x1xf32>
    %cst_349 = arith.constant 1.280000e+02 : f32
    %675 = vector.broadcast %cst_349 : f32 to vector<16x1xf32>
    %676 = arith.divf %674, %675 : vector<16x1xf32>
    %677 = vector.broadcast %676 : vector<16x1xf32> to vector<16x128xf32>
    %678 = arith.subf %670, %677 : vector<16x128xf32>
    %679 = arith.mulf %678, %678 : vector<16x128xf32>
    %cst_350 = arith.constant dense<0.000000e+00> : vector<16xf32>
    %680 = vector.multi_reduction <add>, %679, %cst_350 [1] : vector<16x128xf32> to vector<16xf32>
    %681 = vector.shape_cast %680 : vector<16xf32> to vector<16x1xf32>
    %cst_351 = arith.constant 1.280000e+02 : f32
    %682 = vector.broadcast %cst_351 : f32 to vector<16x1xf32>
    %683 = arith.divf %681, %682 : vector<16x1xf32>
    %684 = vector.broadcast %676 : vector<16x1xf32> to vector<16x128xf32>
    %685 = arith.subf %670, %684 : vector<16x128xf32>
    %cst_352 = arith.constant 9.99999974E-6 : f32
    %686 = vector.broadcast %cst_352 : f32 to vector<16x1xf32>
    %687 = arith.addf %683, %686 : vector<16x1xf32>
    %688 = math.rsqrt %687 : vector<16x1xf32>
    %689 = vector.broadcast %688 : vector<16x1xf32> to vector<16x128xf32>
    %690 = arith.mulf %685, %689 : vector<16x128xf32>
    %691 = vector.broadcast %671 : vector<1x128xf32> to vector<16x128xf32>
    %692 = arith.mulf %690, %691 : vector<16x128xf32>
    %693 = vector.broadcast %672 : vector<1x128xf32> to vector<16x128xf32>
    %694 = arith.addf %692, %693 : vector<16x128xf32>
    %695 = arith.truncf %694 : vector<16x128xf32> to vector<16x128xbf16>
    %c1_353 = arith.constant 1 : index
    %c0_354 = arith.constant 0 : index
    %c512_355 = arith.constant 512 : index
    %696 = vector.load %arg4[%c1_353, %c0_354, %c512_355] : memref<2x128x1024xbf16, #tpu.memory_space<vmem>>, vector<1x128x512xbf16>
    %697 = vector.shape_cast %696 : vector<1x128x512xbf16> to vector<128x512xbf16>
    %cst_356 = arith.constant dense<0.000000e+00> : vector<16x512xf32>
    %698 = tpu.matmul %695, %697, %cst_356 {dimension_numbers = #tpu.dot_dimension_numbers<[1], [0], [0], [1], [0, 0, 1, 1], [], []>} : vector<16x128xbf16>, vector<128x512xbf16>, vector<16x512xf32> -> vector<16x512xf32>
    %c15_357 = arith.constant 15 : index
    %c0_358 = arith.constant 0 : index
    %699 = vector.load %arg3[%c15_357, %c0_358] : memref<19x512xf32, #tpu.memory_space<vmem>>, vector<1x512xf32>
    %700 = vector.broadcast %699 : vector<1x512xf32> to vector<16x512xf32>
    %701 = arith.addf %698, %700 : vector<16x512xf32>
    %cst_359 = arith.constant 5.000000e-01 : f32
    %702 = vector.broadcast %cst_359 : f32 to vector<16x512xf32>
    %703 = arith.mulf %702, %701 : vector<16x512xf32>
    %cst_360 = arith.constant 4.471500e-02 : f32
    %704 = vector.broadcast %cst_360 : f32 to vector<16x512xf32>
    %705 = arith.mulf %704, %701 : vector<16x512xf32>
    %706 = arith.mulf %705, %701 : vector<16x512xf32>
    %707 = arith.mulf %706, %701 : vector<16x512xf32>
    %708 = arith.addf %701, %707 : vector<16x512xf32>
    %cst_361 = arith.constant 0.797884583 : f32
    %709 = vector.broadcast %cst_361 : f32 to vector<16x512xf32>
    %710 = arith.mulf %709, %708 : vector<16x512xf32>
    %711 = math.tanh %710 : vector<16x512xf32>
    %cst_362 = arith.constant 1.000000e+00 : f32
    %712 = vector.broadcast %cst_362 : f32 to vector<16x512xf32>
    %713 = arith.addf %712, %711 : vector<16x512xf32>
    %714 = arith.mulf %703, %713 : vector<16x512xf32>
    %715 = arith.truncf %714 : vector<16x512xf32> to vector<16x512xbf16>
    %c1_363 = arith.constant 1 : index
    %c0_364 = arith.constant 0 : index
    %c0_365 = arith.constant 0 : index
    %716 = vector.load %arg5[%c1_363, %c0_364, %c0_365] : memref<2x512x128xbf16, #tpu.memory_space<vmem>>, vector<1x512x128xbf16>
    %717 = vector.shape_cast %716 : vector<1x512x128xbf16> to vector<512x128xbf16>
    %cst_366 = arith.constant dense<0.000000e+00> : vector<16x128xf32>
    %718 = tpu.matmul %715, %717, %cst_366 {dimension_numbers = #tpu.dot_dimension_numbers<[1], [0], [0], [1], [0, 0, 1, 1], [], []>} : vector<16x512xbf16>, vector<512x128xbf16>, vector<16x128xf32> -> vector<16x128xf32>
    %c16 = arith.constant 16 : index
    %c0_367 = arith.constant 0 : index
    %719 = vector.load %arg3[%c16, %c0_367] : memref<19x512xf32, #tpu.memory_space<vmem>>, vector<1x128xf32>
    %720 = vector.broadcast %719 : vector<1x128xf32> to vector<16x128xf32>
    %721 = arith.addf %718, %720 : vector<16x128xf32>
    %722 = arith.addf %694, %721 : vector<16x128xf32>
    %c17 = arith.constant 17 : index
    %c0_368 = arith.constant 0 : index
    %723 = vector.load %arg3[%c17, %c0_368] : memref<19x512xf32, #tpu.memory_space<vmem>>, vector<1x128xf32>
    %c18 = arith.constant 18 : index
    %c0_369 = arith.constant 0 : index
    %724 = vector.load %arg3[%c18, %c0_369] : memref<19x512xf32, #tpu.memory_space<vmem>>, vector<1x128xf32>
    %cst_370 = arith.constant dense<0.000000e+00> : vector<16xf32>
    %725 = vector.multi_reduction <add>, %722, %cst_370 [1] : vector<16x128xf32> to vector<16xf32>
    %726 = vector.shape_cast %725 : vector<16xf32> to vector<16x1xf32>
    %cst_371 = arith.constant 1.280000e+02 : f32
    %727 = vector.broadcast %cst_371 : f32 to vector<16x1xf32>
    %728 = arith.divf %726, %727 : vector<16x1xf32>
    %729 = vector.broadcast %728 : vector<16x1xf32> to vector<16x128xf32>
    %730 = arith.subf %722, %729 : vector<16x128xf32>
    %731 = arith.mulf %730, %730 : vector<16x128xf32>
    %cst_372 = arith.constant dense<0.000000e+00> : vector<16xf32>
    %732 = vector.multi_reduction <add>, %731, %cst_372 [1] : vector<16x128xf32> to vector<16xf32>
    %733 = vector.shape_cast %732 : vector<16xf32> to vector<16x1xf32>
    %cst_373 = arith.constant 1.280000e+02 : f32
    %734 = vector.broadcast %cst_373 : f32 to vector<16x1xf32>
    %735 = arith.divf %733, %734 : vector<16x1xf32>
    %736 = vector.broadcast %728 : vector<16x1xf32> to vector<16x128xf32>
    %737 = arith.subf %722, %736 : vector<16x128xf32>
    %cst_374 = arith.constant 9.99999974E-6 : f32
    %738 = vector.broadcast %cst_374 : f32 to vector<16x1xf32>
    %739 = arith.addf %735, %738 : vector<16x1xf32>
    %740 = math.rsqrt %739 : vector<16x1xf32>
    %741 = vector.broadcast %740 : vector<16x1xf32> to vector<16x128xf32>
    %742 = arith.mulf %737, %741 : vector<16x128xf32>
    %743 = vector.broadcast %723 : vector<1x128xf32> to vector<16x128xf32>
    %744 = arith.mulf %742, %743 : vector<16x128xf32>
    %745 = vector.broadcast %724 : vector<1x128xf32> to vector<16x128xf32>
    %746 = arith.addf %744, %745 : vector<16x128xf32>
    %747 = arith.truncf %746 : vector<16x128xf32> to vector<16x128xbf16>
    %c0_375 = arith.constant 0 : index
    %c0_376 = arith.constant 0 : index
    %748 = vector.load %arg6[%c0_375, %c0_376] : memref<128x256xbf16, #tpu.memory_space<vmem>>, vector<128x256xbf16>
    %cst_377 = arith.constant dense<0.000000e+00> : vector<16x256xf32>
    %749 = tpu.matmul %747, %748, %cst_377 {dimension_numbers = #tpu.dot_dimension_numbers<[1], [0], [0], [1], [0, 0, 1, 1], [], []>} : vector<16x128xbf16>, vector<128x256xbf16>, vector<16x256xf32> -> vector<16x256xf32>
    %c2_378 = arith.constant 2 : index
    %c0_379 = arith.constant 0 : index
    %750 = vector.load %arg3[%c2_378, %c0_379] : memref<19x512xf32, #tpu.memory_space<vmem>>, vector<1x256xf32>
    %751 = vector.broadcast %750 : vector<1x256xf32> to vector<16x256xf32>
    %752 = arith.addf %749, %751 : vector<16x256xf32>
    %cst_380 = arith.constant dense<0xFF800000> : vector<16xf32>
    %753 = vector.multi_reduction <maximumf>, %752, %cst_380 [1] : vector<16x256xf32> to vector<16xf32>
    %754 = vector.shape_cast %753 : vector<16xf32> to vector<16x1xf32>
    %755 = vector.broadcast %754 : vector<16x1xf32> to vector<16x256xf32>
    %756 = arith.subf %752, %755 : vector<16x256xf32>
    %757 = math.exp %756 : vector<16x256xf32>
    %cst_381 = arith.constant dense<0.000000e+00> : vector<16xf32>
    %758 = vector.multi_reduction <add>, %757, %cst_381 [1] : vector<16x256xf32> to vector<16xf32>
    %759 = vector.shape_cast %758 : vector<16xf32> to vector<16x1xf32>
    %760 = math.log %759 : vector<16x1xf32>
    %761 = arith.addf %760, %754 : vector<16x1xf32>
    %762 = vector.broadcast %761 : vector<16x1xf32> to vector<16x256xf32>
    %763 = arith.subf %752, %762 : vector<16x256xf32>
    %c0_382 = arith.constant 0 : index
    %c0_383 = arith.constant 0 : index
    %764 = vector.load %arg7[%c0_382, %c0_383] : memref<16x256xf32, #tpu.memory_space<vmem>>, vector<16x256xf32>
    tpu.vector_store %arg7[%c0_382, %c0_383], %763 {strides = array<i32>} : memref<16x256xf32, #tpu.memory_space<vmem>>, vector<16x256xf32>,
    return
  }
}

</mosaic_0001>

<llo_original>
// kernel: bert_mlm_forward.1
$region0: #{bert_mlm_forward.1}
  #allocation0 [shape = 'u32[]', space=smem, size = 0x4, offset = 0x4, fixed_abs, tag = 'smem constant byte address 0x4 - core index']
  #allocation1 [shape = 'u32[144,128]{1,0:T(1,128)}', space=vmem, size = 0x12000, scoped, tag = 'internal scratch']
  #allocation2 [shape = 'f32[16,128]{1,0:T(8,128)}', space=vmem, size = 0x2000, scoped, tag = 'scratch operand']
  %s0 = inlined_call_operand.vmem [shape: s32[2,8], index: 0, kind: input, shape index: {}]
  %s1 = inlined_call_operand.vmem [shape: s32[2,8], index: 1, kind: input, shape index: {}]
  %s2 = inlined_call_operand.hbm [shape: f32[280,128], index: 2, kind: input, shape index: {}]
  %s3 = inlined_call_operand.hbm [shape: f32[19,512], index: 3, kind: input, shape index: {}]
  %s4 = inlined_call_operand.hbm [shape: bf16[2,128,1024], index: 4, kind: input, shape index: {}]
  %s5 = inlined_call_operand.hbm [shape: bf16[2,512,128], index: 5, kind: input, shape index: {}]
  %s6 = inlined_call_operand.hbm [shape: bf16[128,256], index: 6, kind: input, shape index: {}]
  %s7 = inlined_call_operand.hbm [shape: f32[16,256], index: 7, kind: output, shape index: {}]
  %s8 = sld [smem:[#allocation0]]
  $region66: #{bert_mlm_forward.1} parent=0
    _
  %s10 = ssub.s32 1, %s8
  %s11 = scalar_select 0, %s10, %s8
  $region1: #{bert_mlm_forward.1} parent=0
    #allocation3 [shape = 'u8[1024]{0}', space=smem, size = 0x400, scoped, tag = 'input window, operand 0, single buffered']
    #allocation4 [shape = 's32[1]{0}', space=sflag, size = 0x4, scoped, tag = 'scoped memory for bert_mlm_forward.1']
    #allocation5 [shape = 's32[1]{0}', space=sflag, size = 0x4, scoped, tag = 'scoped memory for bert_mlm_forward.1']
    #allocation6 [shape = 's32[1]{0}', space=sflag, size = 0x4, scoped, tag = 'scoped memory for bert_mlm_forward.1']
    #allocation7 [shape = 'u8[1024]{0}', space=smem, size = 0x400, scoped, tag = 'input window, operand 1, single buffered']
    #allocation8 [shape = 's32[1]{0}', space=sflag, size = 0x4, scoped, tag = 'scoped memory for bert_mlm_forward.1']
    #allocation9 [shape = 'u8[143360]{0}', space=vmem, size = 0x23000, scoped, tag = 'input window, operand 2, single buffered']
    #allocation10 [shape = 'u8[49152]{0}', space=vmem, size = 0xc000, scoped, tag = 'input window, operand 3, single buffered']
    #allocation11 [shape = 's32[1]{0}', space=sflag, size = 0x4, scoped, tag = 'scoped memory for bert_mlm_forward.1']
    #allocation12 [shape = 'u8[524288]{0}', space=vmem, size = 0x80000, scoped, tag = 'input window, operand 4, single buffered']
    #allocation13 [shape = 'u8[262144]{0}', space=vmem, size = 0x40000, scoped, tag = 'input window, operand 5, single buffered']
    #allocation14 [shape = 's32[1]{0}', space=sflag, size = 0x4, scoped, tag = 'scoped memory for bert_mlm_forward.1']
    #allocation15 [shape = 'u8[65536]{0}', space=vmem, size = 0x10000, scoped, tag = 'input window, operand 6, single buffered']
    #allocation16 [shape = 'u8[16384]{0}', space=vmem, size = 0x4000, scoped, tag = 'output window, operand 0, single buffered']
    %12 = vsyncpa [#allocation6], 0
    %13 = vsyncpa [#allocation8], 0
    %14 = vsyncpa [#allocation4], 0
    %15 = vsyncpa [#allocation11], 0
    %16 = vsyncpa [#allocation14], 0
    %17 = vsyncpa [#allocation5], 0
    // Predicated region
    $region2: #{bert_mlm_forward.1} parent=1 // pred_check
      _
    $region3: #{bert_mlm_forward.1} parent=1 // pred_check_branch
      %19 = sbr.rel (0) target = $region5
    $region4: #{bert_mlm_forward.1} parent=1 // pred_region
      %s21 = ssub.s32 32, 32
      %22 = vsyncadd [#allocation6], %s21
      %s24 = sshll.u32 %s0, 4
      %s25 = int_to_ptr.vmem [resolvable:$true] %s24
      %27 = dma.vmem_to_smem %s25, 32, [#allocation3], [#allocation6]
    $region5: #{bert_mlm_forward.1} parent=1 // pred_fallthru
      _
    // Predicated region
    $region6: #{bert_mlm_forward.1} parent=1 // pred_check
      _
    $region7: #{bert_mlm_forward.1} parent=1 // pred_check_branch
      %29 = sbr.rel (0) target = $region9
    $region8: #{bert_mlm_forward.1} parent=1 // pred_region
      %s31 = ssub.s32 32, 32
      %32 = vsyncadd [#allocation8], %s31
      %s34 = sshll.u32 %s1, 4
      %s35 = int_to_ptr.vmem [resolvable:$true] %s34
      %37 = dma.vmem_to_smem %s35, 32, [#allocation7], [#allocation8]
    $region9: #{bert_mlm_forward.1} parent=1 // pred_fallthru
      _
    // Predicated region
    $region10: #{bert_mlm_forward.1} parent=1 // pred_check
      _
    $region11: #{bert_mlm_forward.1} parent=1 // pred_check_branch
      %39 = sbr.rel (0) target = $region13
    $region12: #{bert_mlm_forward.1} parent=1 // pred_region
      %s41 = ssub.s32 4480, 4480
      %42 = vsyncadd [#allocation4], %s41
      %s43 = sshll.u32 [#allocation9], 4
      %s44 = int_to_ptr.vmem [resolvable:$true] %s43
      %49 = dma.hbm_to_vmem [thread:$0]  %s2, 4480, %s44, [#allocation4], 128, 128, 8
    $region13: #{bert_mlm_forward.1} parent=1 // pred_fallthru
      _
    // Predicated region
    $region14: #{bert_mlm_forward.1} parent=1 // pred_check
      _
    $region15: #{bert_mlm_forward.1} parent=1 // pred_check_branch
      %51 = sbr.rel (0) target = $region17
    $region16: #{bert_mlm_forward.1} parent=1 // pred_region
      %s53 = ssub.s32 1536, 1536
      %54 = vsyncadd [#allocation11], %s53
      %s55 = sshll.u32 [#allocation10], 4
      %s56 = int_to_ptr.vmem [resolvable:$true] %s55
      %61 = dma.hbm_to_vmem [thread:$0]  %s3, 1536, %s56, [#allocation11], 512, 512, 32
    $region17: #{bert_mlm_forward.1} parent=1 // pred_fallthru
      _
    // Predicated region
    $region18: #{bert_mlm_forward.1} parent=1 // pred_check
      _
    $region19: #{bert_mlm_forward.1} parent=1 // pred_check_branch
      %63 = sbr.rel (0) target = $region21
    $region20: #{bert_mlm_forward.1} parent=1 // pred_region
      %s65 = ssub.s32 16384, 16384
      %66 = vsyncadd [#allocation11], %s65
      %s67 = sshll.u32 [#allocation12], 4
      %s68 = int_to_ptr.vmem [resolvable:$true] %s67
      %73 = dma.hbm_to_vmem [thread:$0]  %s4, 16384, %s68, [#allocation11], 512, 512, 32
    $region21: #{bert_mlm_forward.1} parent=1 // pred_fallthru
      _
    // Predicated region
    $region22: #{bert_mlm_forward.1} parent=1 // pred_check
      _
    $region23: #{bert_mlm_forward.1} parent=1 // pred_check_branch
      %75 = sbr.rel (0) target = $region25
    $region24: #{bert_mlm_forward.1} parent=1 // pred_region
      %s77 = ssub.s32 8192, 8192
      %78 = vsyncadd [#allocation14], %s77
      %s79 = sshll.u32 [#allocation13], 4
      %s80 = int_to_ptr.vmem [resolvable:$true] %s79
      %85 = dma.hbm_to_vmem [thread:$0]  %s5, 8192, %s80, [#allocation14], 64, 64, 4
    $region25: #{bert_mlm_forward.1} parent=1 // pred_fallthru
      _
    // Predicated region
    $region26: #{bert_mlm_forward.1} parent=1 // pred_check
      _
    $region27: #{bert_mlm_forward.1} parent=1 // pred_check_branch
      %87 = sbr.rel (0) target = $region29
    $region28: #{bert_mlm_forward.1} parent=1 // pred_region
      %s89 = ssub.s32 2048, 2048
      %90 = vsyncadd [#allocation14], %s89
      %s91 = sshll.u32 [#allocation15], 4
      %s92 = int_to_ptr.vmem [resolvable:$true] %s91
      %97 = dma.hbm_to_vmem [thread:$0]  %s6, 2048, %s92, [#allocation14], 128, 128, 8
    $region29: #{bert_mlm_forward.1} parent=1 // pred_fallthru
      _
    // Predicated region
    $region30: #{bert_mlm_forward.1} parent=1 // pred_check
      _
    $region31: #{bert_mlm_forward.1} parent=1 // pred_check_branch
      %99 = sbr.rel (0) target = $region33
    $region32: #{bert_mlm_forward.1} parent=1 // pred_region
      %100 = dma.done [#allocation6], 32
    $region33: #{bert_mlm_forward.1} parent=1 // pred_fallthru
      _
    // Predicated region
    $region34: #{bert_mlm_forward.1} parent=1 // pred_check
      _
    $region35: #{bert_mlm_forward.1} parent=1 // pred_check_branch
      %102 = sbr.rel (0) target = $region37
    $region36: #{bert_mlm_forward.1} parent=1 // pred_region
      %103 = dma.done [#allocation8], 32
    $region37: #{bert_mlm_forward.1} parent=1 // pred_fallthru
      _
    // Predicated region
    $region38: #{bert_mlm_forward.1} parent=1 // pred_check
      _
    $region39: #{bert_mlm_forward.1} parent=1 // pred_check_branch
      %105 = sbr.rel (0) target = $region41
    $region40: #{bert_mlm_forward.1} parent=1 // pred_region
      %106 = dma.done [#allocation4], 4480
    $region41: #{bert_mlm_forward.1} parent=1 // pred_fallthru
      _
    // Predicated region
    $region42: #{bert_mlm_forward.1} parent=1 // pred_check
      _
    $region43: #{bert_mlm_forward.1} parent=1 // pred_check_branch
      %108 = sbr.rel (0) target = $region45
    $region44: #{bert_mlm_forward.1} parent=1 // pred_region
      %109 = dma.done [#allocation11], 1536
    $region45: #{bert_mlm_forward.1} parent=1 // pred_fallthru
      _
    // Predicated region
    $region46: #{bert_mlm_forward.1} parent=1 // pred_check
      _
    $region47: #{bert_mlm_forward.1} parent=1 // pred_check_branch
      %111 = sbr.rel (0) target = $region49
    $region48: #{bert_mlm_forward.1} parent=1 // pred_region
      %112 = dma.done [#allocation11], 16384
    $region49: #{bert_mlm_forward.1} parent=1 // pred_fallthru
      _
    // Predicated region
    $region50: #{bert_mlm_forward.1} parent=1 // pred_check
      _
    $region51: #{bert_mlm_forward.1} parent=1 // pred_check_branch
      %114 = sbr.rel (0) target = $region53
    $region52: #{bert_mlm_forward.1} parent=1 // pred_region
      %115 = dma.done [#allocation14], 8192
    $region53: #{bert_mlm_forward.1} parent=1 // pred_fallthru
      _
    // Predicated region
    $region54: #{bert_mlm_forward.1} parent=1 // pred_check
      _
    $region55: #{bert_mlm_forward.1} parent=1 // pred_check_branch
      %117 = sbr.rel (0) target = $region57
    $region56: #{bert_mlm_forward.1} parent=1 // pred_region
      %118 = dma.done [#allocation14], 2048
    $region57: #{bert_mlm_forward.1} parent=1 // pred_fallthru
      _
    %119 = sfence
    %v121 = vlaneseq
    %v122 = vshrl.u32 %v121, 7
    %v123 = vlaneseq
    %v124 = vand.u32 %v123, 127
    %s125 = sld [smem:[#allocation3]]
    %s126 = scalar_lea.vmem [#allocation9], %s125
    %v127 = vld [vmem:[%s126] sm:$0x1]
    %v128 = vld [vmem:[#allocation9 + $0x100] sm:$0x1]
    %v129 = vadd.f32 %v127, %v128
    %s130 = sld [smem:[#allocation7]]
    %s131 = sadd.s32 %s130, 272
    %s132 = scalar_lea.vmem [#allocation9], %s131
    %v133 = vld [vmem:[%s132] sm:$0x1]
    %v134 = vadd.f32 %v129, %v133
    %135 = vst [vmem:[#allocation2] sm:$0x1] %v134
    %p136 = scmp.eq.s32.totalorder %s125, 0
    %s137 = scalar_select %p136, -1e+09, 0.0
    %vm138 = vcmp.eq.s32.totalorder %v122, 0
    %vm139 = vcmp.eq.s32.totalorder %v124, 0
    %vm140 = vmand %vm138, %vm139
    %v141 = vstv %s137
    %v142 = vsel %vm140, %v141, 0.0
    %s143 = sld [smem:[#allocation3 + $0x1]]
    %s144 = scalar_lea.vmem [#allocation9], %s143
    %v145 = vld [vmem:[%s144] sm:$0x1]
    %v146 = vld [vmem:[#allocation9 + $0x101] sm:$0x1]
    %v147 = vadd.f32 %v145, %v146
    %s148 = sld [smem:[#allocation7 + $0x1]]
    %s149 = sadd.s32 %s148, 272
    %s150 = scalar_lea.vmem [#allocation9], %s149
    %v151 = vld [vmem:[%s150] sm:$0x1]
    %v152 = vadd.f32 %v147, %v151
    %153 = vst [vmem:[#allocation2 + $0x1] sm:$0x1] %v152
    %p154 = scmp.eq.s32.totalorder %s143, 0
    %s155 = scalar_select %p154, -1e+09, 0.0
    %vm156 = vcmp.eq.s32.totalorder %v124, 1
    %vm157 = vmand %vm138, %vm156
    %v158 = vstv %s155
    %v159 = vsel %vm157, %v158, %v142
    %s160 = sld [smem:[#allocation3 + $0x2]]
    %s161 = scalar_lea.vmem [#allocation9], %s160
    %v162 = vld [vmem:[%s161] sm:$0x1]
    %v163 = vld [vmem:[#allocation9 + $0x102] sm:$0x1]
    %v164 = vadd.f32 %v162, %v163
    %s165 = sld [smem:[#allocation7 + $0x2]]
    %s166 = sadd.s32 %s165, 272
    %s167 = scalar_lea.vmem [#allocation9], %s166
    %v168 = vld [vmem:[%s167] sm:$0x1]
    %v169 = vadd.f32 %v164, %v168
    %170 = vst [vmem:[#allocation2 + $0x2] sm:$0x1] %v169
    %p171 = scmp.eq.s32.totalorder %s160, 0
    %s172 = scalar_select %p171, -1e+09, 0.0
    %vm173 = vcmp.eq.s32.totalorder %v124, 2
    %vm174 = vmand %vm138, %vm173
    %v175 = vstv %s172
    %v176 = vsel %vm174, %v175, %v159
    %s177 = sld [smem:[#allocation3 + $0x3]]
    %s178 = scalar_lea.vmem [#allocation9], %s177
    %v179 = vld [vmem:[%s178] sm:$0x1]
    %v180 = vld [vmem:[#allocation9 + $0x103] sm:$0x1]
    %v181 = vadd.f32 %v179, %v180
    %s182 = sld [smem:[#allocation7 + $0x3]]
    %s183 = sadd.s32 %s182, 272
    %s184 = scalar_lea.vmem [#allocation9], %s183
    %v185 = vld [vmem:[%s184] sm:$0x1]
    %v186 = vadd.f32 %v181, %v185
    %187 = vst [vmem:[#allocation2 + $0x3] sm:$0x1] %v186
    %p188 = scmp.eq.s32.totalorder %s177, 0
    %s189 = scalar_select %p188, -1e+09, 0.0
    %vm190 = vcmp.eq.s32.totalorder %v124, 3
    %vm191 = vmand %vm138, %vm190
    %v192 = vstv %s189
    %v193 = vsel %vm191, %v192, %v176
    %s194 = sld [smem:[#allocation3 + $0x4]]
    %s195 = scalar_lea.vmem [#allocation9], %s194
    %v196 = vld [vmem:[%s195] sm:$0x1]
    %v197 = vld [vmem:[#allocation9 + $0x104] sm:$0x1]
    %v198 = vadd.f32 %v196, %v197
    %s199 = sld [smem:[#allocation7 + $0x4]]
    %s200 = sadd.s32 %s199, 272
    %s201 = scalar_lea.vmem [#allocation9], %s200
    %v202 = vld [vmem:[%s201] sm:$0x1]
    %v203 = vadd.f32 %v198, %v202
    %204 = vst [vmem:[#allocation2 + $0x4] sm:$0x1] %v203
    %p205 = scmp.eq.s32.totalorder %s194, 0
    %s206 = scalar_select %p205, -1e+09, 0.0
    %vm207 = vcmp.eq.s32.totalorder %v124, 4
    %vm208 = vmand %vm138, %vm207
    %v209 = vstv %s206
    %v210 = vsel %vm208, %v209, %v193
    %s211 = sld [smem:[#allocation3 + $0x5]]
    %s212 = scalar_lea.vmem [#allocation9], %s211
    %v213 = vld [vmem:[%s212] sm:$0x1]
    %v214 = vld [vmem:[#allocation9 + $0x105] sm:$0x1]
    %v215 = vadd.f32 %v213, %v214
    %s216 = sld [smem:[#allocation7 + $0x5]]
    %s217 = sadd.s32 %s216, 272
    %s218 = scalar_lea.vmem [#allocation9], %s217
    %v219 = vld [vmem:[%s218] sm:$0x1]
    %v220 = vadd.f32 %v215, %v219
    %221 = vst [vmem:[#allocation2 + $0x5] sm:$0x1] %v220
    %p222 = scmp.eq.s32.totalorder %s211, 0
    %s223 = scalar_select %p222, -1e+09, 0.0
    %vm224 = vcmp.eq.s32.totalorder %v124, 5
    %vm225 = vmand %vm138, %vm224
    %v226 = vstv %s223
    %v227 = vsel %vm225, %v226, %v210
    %s228 = sld [smem:[#allocation3 + $0x6]]
    %s229 = scalar_lea.vmem [#allocation9], %s228
    %v230 = vld [vmem:[%s229] sm:$0x1]
    %v231 = vld [vmem:[#allocation9 + $0x106] sm:$0x1]
    %v232 = vadd.f32 %v230, %v231
    %s233 = sld [smem:[#allocation7 + $0x6]]
    %s234 = sadd.s32 %s233, 272
    %s235 = scalar_lea.vmem [#allocation9], %s234
    %v236 = vld [vmem:[%s235] sm:$0x1]
    %v237 = vadd.f32 %v232, %v236
    %238 = vst [vmem:[#allocation2 + $0x6] sm:$0x1] %v237
    %p239 = scmp.eq.s32.totalorder %s228, 0
    %s240 = scalar_select %p239, -1e+09, 0.0
    %vm241 = vcmp.eq.s32.totalorder %v124, 6
    %vm242 = vmand %vm138, %vm241
    %v243 = vstv %s240
    %v244 = vsel %vm242, %v243, %v227
    %s245 = sld [smem:[#allocation3 + $0x7]]
    %s246 = scalar_lea.vmem [#allocation9], %s245
    %v247 = vld [vmem:[%s246] sm:$0x1]
    %v248 = vld [vmem:[#allocation9 + $0x107] sm:$0x1]
    %v249 = vadd.f32 %v247, %v248
    %s250 = sld [smem:[#allocation7 + $0x7]]
    %s251 = sadd.s32 %s250, 272
    %s252 = scalar_lea.vmem [#allocation9], %s251
    %v253 = vld [vmem:[%s252] sm:$0x1]
    %v254 = vadd.f32 %v249, %v253
    %255 = vst [vmem:[#allocation2 + $0x7] sm:$0x1] %v254
    %p256 = scmp.eq.s32.totalorder %s245, 0
    %s257 = scalar_select %p256, -1e+09, 0.0
    %vm258 = vcmp.eq.s32.totalorder %v124, 7
    %vm259 = vmand %vm138, %vm258
    %v260 = vstv %s257
    %v261 = vsel %vm259, %v260, %v244
    %s262 = sld [smem:[#allocation3 + $0x80]]
    %s263 = scalar_lea.vmem [#allocation9], %s262
    %v264 = vld [vmem:[%s263] sm:$0x1]
    %v265 = vld [vmem:[#allocation9 + $0x100] sm:$0x1]
    %v266 = vadd.f32 %v264, %v265
    %s267 = sld [smem:[#allocation7 + $0x80]]
    %s268 = sadd.s32 %s267, 272
    %s269 = scalar_lea.vmem [#allocation9], %s268
    %v270 = vld [vmem:[%s269] sm:$0x1]
    %v271 = vadd.f32 %v266, %v270
    %272 = vst [vmem:[#allocation2 + $0x8] sm:$0x1] %v271
    %p273 = scmp.eq.s32.totalorder %s262, 0
    %s274 = scalar_select %p273, -1e+09, 0.0
    %vm275 = vcmp.eq.s32.totalorder %v122, 1
    %vm276 = vmand %vm275, %vm139
    %v277 = vstv %s274
    %v278 = vsel %vm276, %v277, %v261
    %s279 = sld [smem:[#allocation3 + $0x81]]
    %s280 = scalar_lea.vmem [#allocation9], %s279
    %v281 = vld [vmem:[%s280] sm:$0x1]
    %v282 = vld [vmem:[#allocation9 + $0x101] sm:$0x1]
    %v283 = vadd.f32 %v281, %v282
    %s284 = sld [smem:[#allocation7 + $0x81]]
    %s285 = sadd.s32 %s284, 272
    %s286 = scalar_lea.vmem [#allocation9], %s285
    %v287 = vld [vmem:[%s286] sm:$0x1]
    %v288 = vadd.f32 %v283, %v287
    %289 = vst [vmem:[#allocation2 + $0x9] sm:$0x1] %v288
    %p290 = scmp.eq.s32.totalorder %s279, 0
    %s291 = scalar_select %p290, -1e+09, 0.0
    %vm292 = vmand %vm275, %vm156
    %v293 = vstv %s291
    %v294 = vsel %vm292, %v293, %v278
    %s295 = sld [smem:[#allocation3 + $0x82]]
    %s296 = scalar_lea.vmem [#allocation9], %s295
    %v297 = vld [vmem:[%s296] sm:$0x1]
    %v298 = vld [vmem:[#allocation9 + $0x102] sm:$0x1]
    %v299 = vadd.f32 %v297, %v298
    %s300 = sld [smem:[#allocation7 + $0x82]]
    %s301 = sadd.s32 %s300, 272
    %s302 = scalar_lea.vmem [#allocation9], %s301
    %v303 = vld [vmem:[%s302] sm:$0x1]
    %v304 = vadd.f32 %v299, %v303
    %305 = vst [vmem:[#allocation2 + $0xa] sm:$0x1] %v304
    %p306 = scmp.eq.s32.totalorder %s295, 0
    %s307 = scalar_select %p306, -1e+09, 0.0
    %vm308 = vmand %vm275, %vm173
    %v309 = vstv %s307
    %v310 = vsel %vm308, %v309, %v294
    %s311 = sld [smem:[#allocation3 + $0x83]]
    %s312 = scalar_lea.vmem [#allocation9], %s311
    %v313 = vld [vmem:[%s312] sm:$0x1]
    %v314 = vld [vmem:[#allocation9 + $0x103] sm:$0x1]
    %v315 = vadd.f32 %v313, %v314
    %s316 = sld [smem:[#allocation7 + $0x83]]
    %s317 = sadd.s32 %s316, 272
    %s318 = scalar_lea.vmem [#allocation9], %s317
    %v319 = vld [vmem:[%s318] sm:$0x1]
    %v320 = vadd.f32 %v315, %v319
    %321 = vst [vmem:[#allocation2 + $0xb] sm:$0x1] %v320
    %p322 = scmp.eq.s32.totalorder %s311, 0
    %s323 = scalar_select %p322, -1e+09, 0.0
    %vm324 = vmand %vm275, %vm190
    %v325 = vstv %s323
    %v326 = vsel %vm324, %v325, %v310
    %s327 = sld [smem:[#allocation3 + $0x84]]
    %s328 = scalar_lea.vmem [#allocation9], %s327
    %v329 = vld [vmem:[%s328] sm:$0x1]
    %v330 = vld [vmem:[#allocation9 + $0x104] sm:$0x1]
    %v331 = vadd.f32 %v329, %v330
    %s332 = sld [smem:[#allocation7 + $0x84]]
    %s333 = sadd.s32 %s332, 272
    %s334 = scalar_lea.vmem [#allocation9], %s333
    %v335 = vld [vmem:[%s334] sm:$0x1]
    %v336 = vadd.f32 %v331, %v335
    %337 = vst [vmem:[#allocation2 + $0xc] sm:$0x1] %v336
    %p338 = scmp.eq.s32.totalorder %s327, 0
    %s339 = scalar_select %p338, -1e+09, 0.0
    %vm340 = vmand %vm275, %vm207
    %v341 = vstv %s339
    %v342 = vsel %vm340, %v341, %v326
    %s343 = sld [smem:[#allocation3 + $0x85]]
    %s344 = scalar_lea.vmem [#allocation9], %s343
    %v345 = vld [vmem:[%s344] sm:$0x1]
    %v346 = vld [vmem:[#allocation9 + $0x105] sm:$0x1]
    %v347 = vadd.f32 %v345, %v346
    %s348 = sld [smem:[#allocation7 + $0x85]]
    %s349 = sadd.s32 %s348, 272
    %s350 = scalar_lea.vmem [#allocation9], %s349
    %v351 = vld [vmem:[%s350] sm:$0x1]
    %v352 = vadd.f32 %v347, %v351
    %353 = vst [vmem:[#allocation2 + $0xd] sm:$0x1] %v352
    %p354 = scmp.eq.s32.totalorder %s343, 0
    %s355 = scalar_select %p354, -1e+09, 0.0
    %vm356 = vmand %vm275, %vm224
    %v357 = vstv %s355
    %v358 = vsel %vm356, %v357, %v342
    %s359 = sld [smem:[#allocation3 + $0x86]]
    %s360 = scalar_lea.vmem [#allocation9], %s359
    %v361 = vld [vmem:[%s360] sm:$0x1]
    %v362 = vld [vmem:[#allocation9 + $0x106] sm:$0x1]
    %v363 = vadd.f32 %v361, %v362
    %s364 = sld [smem:[#allocation7 + $0x86]]
    %s365 = sadd.s32 %s364, 272
    %s366 = scalar_lea.vmem [#allocation9], %s365
    %v367 = vld [vmem:[%s366] sm:$0x1]
    %v368 = vadd.f32 %v363, %v367
    %369 = vst [vmem:[#allocation2 + $0xe] sm:$0x1] %v368
    %p370 = scmp.eq.s32.totalorder %s359, 0
    %s371 = scalar_select %p370, -1e+09, 0.0
    %vm372 = vmand %vm275, %vm241
    %v373 = vstv %s371
    %v374 = vsel %vm372, %v373, %v358
    %s375 = sld [smem:[#allocation3 + $0x87]]
    %s376 = scalar_lea.vmem [#allocation9], %s375
    %v377 = vld [vmem:[%s376] sm:$0x1]
    %v378 = vld [vmem:[#allocation9 + $0x107] sm:$0x1]
    %v379 = vadd.f32 %v377, %v378
    %s380 = sld [smem:[#allocation7 + $0x87]]
    %s381 = sadd.s32 %s380, 272
    %s382 = scalar_lea.vmem [#allocation9], %s381
    %v383 = vld [vmem:[%s382] sm:$0x1]
    %v384 = vadd.f32 %v379, %v383
    %385 = vst [vmem:[#allocation2 + $0xf] sm:$0x1] %v384
    %p386 = scmp.eq.s32.totalorder %s375, 0
    %s387 = scalar_select %p386, -1e+09, 0.0
    %vm388 = vmand %vm275, %vm258
    %v389 = vstv %s387
    %v390 = vsel %vm388, %v389, %v374
    %v391 = vld [vmem:[#allocation2] sm:$0xff]
    %v392 = vld [vmem:[#allocation2 + $0x8] sm:$0xff]
    %v393 = vld [vmem:[#allocation10] ss:$0 sm:$0xff]
    %v394 = vld [vmem:[#allocation10 + $0x1] ss:$0 sm:$0xff]
    %395 = vadd.xlane.f32.xlu0 %v391
    %v396 = vpop.xlane.xlu0 %395
    %397 = vadd.xlane.f32.xlu0 %v392
    %v398 = vpop.xlane.xlu0 %397
    %v399 = vrcp.pop 128.0
    %v400 = vmul.f32 %v396, %v399
    %v401 = vmul.f32 %v398, %v399
    %v402 = vsub.f32 %v391, %v400
    %v403 = vsub.f32 %v392, %v401
    %v404 = vmul.f32 %v402, %v402
    %v405 = vmul.f32 %v403, %v403
    %406 = vadd.xlane.f32.xlu0 %v404
    %v407 = vpop.xlane.xlu0 %406
    %408 = vadd.xlane.f32.xlu0 %v405
    %v409 = vpop.xlane.xlu0 %408
    %v410 = vmul.f32 %v407, %v399
    %v411 = vmul.f32 %v409, %v399
    %v412 = vadd.f32 %v410, 1e-05
    %v413 = vadd.f32 %v411, 1e-05
    %v414 = vrsqrt.pop %v412
    %v415 = vrsqrt.pop %v413
    %v416 = vmul.f32 %v402, %v414
    %v417 = vmul.f32 %v403, %v415
    %v418 = vmul.f32 %v416, %v393
    %v419 = vmul.f32 %v417, %v393
    %v420 = vadd.f32 %v418, %v394
    %v421 = vadd.f32 %v419, %v394
    %v422 = vlaneseq
    %v423 = vshrl.u32 %v422, 7
    %v424 = vsub.s32 0, %v423
    %v425 = vrot.slane %v390, %v424
    %v426 = vlaneseq
    %v427 = vshrl.u32 %v426, 7
    %v428 = vsub.s32 1, %v427
    %v429 = vrot.slane %v390, %v428
    %v430 = vpack.c.bf16 %v421, %v420
    %v431 = vld [vmem:[#allocation12] sm:$0xff]
    %v432 = vld [vmem:[#allocation12 + $0x8] sm:$0xf]
    %v433 = vld [vmem:[#allocation12 + $0x20] sm:$0xff]
    %v434 = vld [vmem:[#allocation12 + $0x28] sm:$0xf]
    %v435 = vld [vmem:[#allocation12 + $0x40] sm:$0xff]
    %v436 = vld [vmem:[#allocation12 + $0x48] sm:$0xf]
    %v437 = vld [vmem:[#allocation12 + $0x60] sm:$0xff]
    %v438 = vld [vmem:[#allocation12 + $0x68] sm:$0xf]
    %v439 = vld [vmem:[#allocation12 + $0x80] sm:$0xff]
    %v440 = vld [vmem:[#allocation12 + $0x88] sm:$0xf]
    %v441 = vld [vmem:[#allocation12 + $0xa0] sm:$0xff]
    %v442 = vld [vmem:[#allocation12 + $0xa8] sm:$0xf]
    %v443 = vld [vmem:[#allocation12 + $0xc0] sm:$0xff]
    %v444 = vld [vmem:[#allocation12 + $0xc8] sm:$0xf]
    %v445 = vld [vmem:[#allocation12 + $0xe0] sm:$0xff]
    %v446 = vld [vmem:[#allocation12 + $0xe8] sm:$0xf]
    %v447 = vld [vmem:[#allocation12 + $0x100] sm:$0xff]
    %v448 = vld [vmem:[#allocation12 + $0x108] sm:$0xf]
    %v449 = vld [vmem:[#allocation12 + $0x120] sm:$0xff]
    %v450 = vld [vmem:[#allocation12 + $0x128] sm:$0xf]
    %v451 = vld [vmem:[#allocation12 + $0x140] sm:$0xff]
    %v452 = vld [vmem:[#allocation12 + $0x148] sm:$0xf]
    %v453 = vld [vmem:[#allocation12 + $0x160] sm:$0xff]
    %v454 = vld [vmem:[#allocation12 + $0x168] sm:$0xf]
    %v455 = vld [vmem:[#allocation12 + $0x180] sm:$0xff]
    %v456 = vld [vmem:[#allocation12 + $0x188] sm:$0xf]
    %v457 = vld [vmem:[#allocation12 + $0x1a0] sm:$0xff]
    %v458 = vld [vmem:[#allocation12 + $0x1a8] sm:$0xf]
    %v459 = vld [vmem:[#allocation12 + $0x1c0] sm:$0xff]
    %v460 = vld [vmem:[#allocation12 + $0x1c8] sm:$0xf]
    %v461 = vld [vmem:[#allocation12 + $0x1e0] sm:$0xff]
    %v462 = vld [vmem:[#allocation12 + $0x1e8] sm:$0xf]
    %s463 = scalar_lea.vmem [#allocation10], 3
    %v464 = vld [vmem:[%s463] ss:$8 sm:$0x7]
    %v466 = vlaneseq
    %v467 = vshrl.u32 %v466, 7
    %v468 = vsub.s32 0, %v467
    %v469 = vrot.slane %v464, %v468
    %v470 = vlaneseq
    %v471 = vshrl.u32 %v470, 7
    %v472 = vsub.s32 1, %v471
    %v473 = vrot.slane %v464, %v472
    %v474 = vlaneseq
    %v475 = vshrl.u32 %v474, 7
    %v476 = vsub.s32 2, %v475
    %v477 = vrot.slane %v464, %v476
    %v513 = vunpack.c.l.b16 %v431
    %v514 = vunpack.c.h.b16 %v431
    %v515 = vunpack.c.l.b16 %v432
    %v516 = vunpack.c.l.b16 %v433
    %v517 = vunpack.c.h.b16 %v433
    %v518 = vunpack.c.l.b16 %v434
    %v519 = vunpack.c.l.b16 %v435
    %v520 = vunpack.c.h.b16 %v435
    %v521 = vunpack.c.l.b16 %v436
    %v522 = vunpack.c.l.b16 %v437
    %v523 = vunpack.c.h.b16 %v437
    %v524 = vunpack.c.l.b16 %v438
    %v525 = vunpack.c.l.b16 %v439
    %v526 = vunpack.c.h.b16 %v439
    %v527 = vunpack.c.l.b16 %v440
    %v528 = vunpack.c.l.b16 %v441
    %v529 = vunpack.c.h.b16 %v441
    %v530 = vunpack.c.l.b16 %v442
    %v531 = vunpack.c.l.b16 %v443
    %v532 = vunpack.c.h.b16 %v443
    %v533 = vunpack.c.l.b16 %v444
    %v534 = vunpack.c.l.b16 %v445
    %v535 = vunpack.c.h.b16 %v445
    %v536 = vunpack.c.l.b16 %v446
    %v537 = vunpack.c.l.b16 %v447
    %v538 = vunpack.c.h.b16 %v447
    %v539 = vunpack.c.l.b16 %v448
    %v540 = vunpack.c.l.b16 %v449
    %v541 = vunpack.c.h.b16 %v449
    %v542 = vunpack.c.l.b16 %v450
    %v543 = vunpack.c.l.b16 %v451
    %v544 = vunpack.c.h.b16 %v451
    %v545 = vunpack.c.l.b16 %v452
    %v546 = vunpack.c.l.b16 %v453
    %v547 = vunpack.c.h.b16 %v453
    %v548 = vunpack.c.l.b16 %v454
    %v549 = vunpack.c.l.b16 %v455
    %v550 = vunpack.c.h.b16 %v455
    %v551 = vunpack.c.l.b16 %v456
    %v552 = vunpack.c.l.b16 %v457
    %v553 = vunpack.c.h.b16 %v457
    %v554 = vunpack.c.l.b16 %v458
    %v555 = vunpack.c.l.b16 %v459
    %v556 = vunpack.c.h.b16 %v459
    %v557 = vunpack.c.l.b16 %v460
    %v558 = vunpack.c.l.b16 %v461
    %v559 = vunpack.c.h.b16 %v461
    %v560 = vunpack.c.l.b16 %v462
    %v561 = vpack.c.b16 %v516, %v513
    %v562 = vpack.c.b16 %v517, %v514
    %v563 = vpack.c.b16 %v518, %v515
    %v564 = vpack.c.b16 %v522, %v519
    %v565 = vpack.c.b16 %v523, %v520
    %v566 = vpack.c.b16 %v524, %v521
    %v567 = vpack.c.b16 %v528, %v525
    %v568 = vpack.c.b16 %v529, %v526
    %v569 = vpack.c.b16 %v530, %v527
    %v570 = vpack.c.b16 %v534, %v531
    %v571 = vpack.c.b16 %v535, %v532
    %v572 = vpack.c.b16 %v536, %v533
    %v573 = vpack.c.b16 %v540, %v537
    %v574 = vpack.c.b16 %v541, %v538
    %v575 = vpack.c.b16 %v542, %v539
    %v576 = vpack.c.b16 %v546, %v543
    %v577 = vpack.c.b16 %v547, %v544
    %v578 = vpack.c.b16 %v548, %v545
    %v579 = vpack.c.b16 %v552, %v549
    %v580 = vpack.c.b16 %v553, %v550
    %v581 = vpack.c.b16 %v554, %v551
    %v582 = vpack.c.b16 %v558, %v555
    %v583 = vpack.c.b16 %v559, %v556
    %v584 = vpack.c.b16 %v560, %v557
    %609 = vmatprep.subr.bf16.mxu0 %v562
    %610 = vmatpush1.bf16.msra.mxu0 %v561
    %611 = vmatprep.subr.bf16.mxu0 %v565
    %612 = vmatpush1.bf16.msra.mxu0 %v564
    %613 = vmatprep.subr.bf16.mxu0 %v568
    %614 = vmatpush1.bf16.msra.mxu0 %v567
    %615 = vmatprep.subr.bf16.mxu0 %v571
    %616 = vmatpush1.bf16.msra.mxu0 %v570
    %617 = vmatprep.subr.bf16.mxu0 %v574
    %618 = vmatpush1.bf16.msra.mxu0 %v573
    %619 = vmatprep.subr.bf16.mxu0 %v577
    %620 = vmatpush1.bf16.msra.mxu0 %v576
    %621 = vmatprep.subr.bf16.mxu0 %v580
    %622 = vmatpush1.bf16.msra.mxu0 %v579
    %623 = vmatprep.subr.bf16.mxu0 %v583
    %624 = vmatpush1.bf16.msra.mxu0 %v582
    %625 = vmatprep.subr.bf16.mxu0 0
    %626 = vmatpush1.bf16.msra.mxu0 0
    %627 = vmatprep.subr.bf16.mxu0 0
    %628 = vmatpush1.bf16.msra.mxu0 0
    %629 = vmatprep.subr.bf16.mxu0 0
    %630 = vmatpush1.bf16.msra.mxu0 0
    %631 = vmatprep.subr.bf16.mxu0 0
    %632 = vmatpush1.bf16.msra.mxu0 0
    %633 = vmatprep.subr.bf16.mxu0 0
    %634 = vmatpush1.bf16.msra.mxu0 0
    %635 = vmatprep.subr.bf16.mxu0 0
    %636 = vmatpush1.bf16.msra.mxu0 0
    %637 = vmatprep.subr.bf16.mxu0 0
    %638 = vmatpush1.bf16.msra.mxu0 0
    %639 = vmatprep.subr.bf16.mxu0 0
    %640 = vmatpush1.bf16.msra.mxu0 0
    %641 = vmatprep.mubr.bf16.mxu0 0
    %642 = vmatmul.mubr.bf16.gmra.mrb[0].mxu0 %v430
    %v643 = vpop.f32.mrb[0].mxu0
    %v644 = vadd.f32 %v469, %v643
    %v645 = vpop.f32.mrb[0].mxu0
    %v646 = vadd.f32 %v473, %v645
    %v647 = vpop.f32.mrb[0].mxu0
    %v648 = vadd.f32 %v469, %v647
    %v649 = vpop.f32.mrb[0].mxu0
    %v650 = vadd.f32 %v473, %v649
    %651 = vdwg.mxu0
    %652 = vmatprep.subr.bf16.mxu0 0
    %653 = vmatpush1.bf16.msra.mxu0 %v563
    %654 = vmatprep.subr.bf16.mxu0 0
    %655 = vmatpush1.bf16.msra.mxu0 %v566
    %656 = vmatprep.subr.bf16.mxu0 0
    %657 = vmatpush1.bf16.msra.mxu0 %v569
    %658 = vmatprep.subr.bf16.mxu0 0
    %659 = vmatpush1.bf16.msra.mxu0 %v572
    %660 = vmatprep.subr.bf16.mxu0 0
    %661 = vmatpush1.bf16.msra.mxu0 %v575
    %662 = vmatprep.subr.bf16.mxu0 0
    %663 = vmatpush1.bf16.msra.mxu0 %v578
    %664 = vmatprep.subr.bf16.mxu0 0
    %665 = vmatpush1.bf16.msra.mxu0 %v581
    %666 = vmatprep.subr.bf16.mxu0 0
    %667 = vmatpush1.bf16.msra.mxu0 %v584
    %668 = vmatprep.subr.bf16.mxu0 0
    %669 = vmatpush1.bf16.msra.mxu0 0
    %670 = vmatprep.subr.bf16.mxu0 0
    %671 = vmatpush1.bf16.msra.mxu0 0
    %672 = vmatprep.subr.bf16.mxu0 0
    %673 = vmatpush1.bf16.msra.mxu0 0
    %674 = vmatprep.subr.bf16.mxu0 0
    %675 = vmatpush1.bf16.msra.mxu0 0
    %676 = vmatprep.subr.bf16.mxu0 0
    %677 = vmatpush1.bf16.msra.mxu0 0
    %678 = vmatprep.subr.bf16.mxu0 0
    %679 = vmatpush1.bf16.msra.mxu0 0
    %680 = vmatprep.subr.bf16.mxu0 0
    %681 = vmatpush1.bf16.msra.mxu0 0
    %682 = vmatprep.subr.bf16.mxu0 0
    %683 = vmatpush1.bf16.msra.mxu0 0
    %684 = vmatprep.mubr.bf16.mxu0 0
    %685 = vmatmul.mubr.bf16.gmra.mrb[0].mxu0 %v430
    %v686 = vpop.f32.mrb[0].mxu0
    %v687 = vadd.f32 %v477, %v686
    %v688 = vpop.f32.mrb[0].mxu0
    %v689 = vpop.f32.mrb[0].mxu0
    %v690 = vadd.f32 %v477, %v689
    %v691 = vpop.f32.mrb[0].mxu0
    %692 = vdwg.mxu0
    %v693 = vpack.c.bf16 %v644, %v644
    %v694 = vpack.c.bf16 %v646, %v646
    %vm695 = vcmask 261120
    %v697 = vsel %vm695, %v693, 0
    %v700 = vsel %vm695, %v694, 0
    %702 = vmatprep.subr.bf16.mxu0 0
    %703 = vmatpush1.bf16.xpose.msra.mxu0 %v700
    %704 = vmatprep.subr.bf16.mxu0 0
    %705 = vmatpush1.bf16.xpose.msra.mxu0 0
    %706 = vmatprep.subr.bf16.mxu0 0
    %707 = vmatpush1.bf16.xpose.msra.mxu0 0
    %708 = vmatprep.subr.bf16.mxu0 0
    %709 = vmatpush1.bf16.xpose.msra.mxu0 0
    %710 = vmatprep.subr.bf16.mxu0 0
    %711 = vmatpush1.bf16.xpose.msra.mxu0 0
    %712 = vmatprep.subr.bf16.mxu0 0
    %713 = vmatpush1.bf16.xpose.msra.mxu0 0
    %714 = vmatprep.subr.bf16.mxu0 0
    %715 = vmatpush1.bf16.xpose.msra.mxu0 0
    %716 = vmatprep.subr.bf16.mxu0 0
    %717 = vmatpush1.bf16.xpose.msra.mxu0 0
    %718 = vmatprep.subr.bf16.mxu0 0
    %719 = vmatpush1.bf16.xpose.msra.mxu0 0
    %720 = vmatprep.subr.bf16.mxu0 0
    %721 = vmatpush1.bf16.xpose.msra.mxu0 0
    %722 = vmatprep.subr.bf16.mxu0 0
    %723 = vmatpush1.bf16.xpose.msra.mxu0 0
    %724 = vmatprep.subr.bf16.mxu0 0
    %725 = vmatpush1.bf16.xpose.msra.mxu0 0
    %726 = vmatprep.subr.bf16.mxu0 0
    %727 = vmatpush1.bf16.xpose.msra.mxu0 0
    %728 = vmatprep.subr.bf16.mxu0 0
    %729 = vmatpush1.bf16.xpose.msra.mxu0 0
    %730 = vmatprep.subr.bf16.mxu0 0
    %731 = vmatpush1.bf16.xpose.msra.mxu0 0
    %732 = vmatprep.subr.bf16.mxu0 0
    %733 = vmatpush1.bf16.xpose.msra.mxu0 0
    %734 = vmatprep.mubr.bf16.mxu0 0
    %735 = vmatmul.mubr.bf16.gmra.mrb[0].mxu0 %v697
    %v736 = vpop.f32.mrb[0].mxu0
    %v737 = vadd.f32 0.0, %v736
    %v738 = vpop.f32.mrb[0].mxu0
    %v739 = vpop.f32.mrb[0].mxu0
    %v740 = vpop.f32.mrb[0].mxu0
    %741 = vdwg.mxu0
    %743 = vrot.lane.b32.xlu0 %v693, 96
    %v744 = vpop.permute.xlu0 %743
    %746 = vrot.lane.b32.xlu0 %v694, 96
    %v747 = vpop.permute.xlu0 %746
    %v749 = vsel %vm695, %v744, 0
    %v752 = vsel %vm695, %v747, 0
    %754 = vmatprep.subr.bf16.mxu0 0
    %755 = vmatpush1.bf16.xpose.msra.mxu0 %v752
    %756 = vmatprep.subr.bf16.mxu0 0
    %757 = vmatpush1.bf16.xpose.msra.mxu0 0
    %758 = vmatprep.subr.bf16.mxu0 0
    %759 = vmatpush1.bf16.xpose.msra.mxu0 0
    %760 = vmatprep.subr.bf16.mxu0 0
    %761 = vmatpush1.bf16.xpose.msra.mxu0 0
    %762 = vmatprep.subr.bf16.mxu0 0
    %763 = vmatpush1.bf16.xpose.msra.mxu0 0
    %764 = vmatprep.subr.bf16.mxu0 0
    %765 = vmatpush1.bf16.xpose.msra.mxu0 0
    %766 = vmatprep.subr.bf16.mxu0 0
    %767 = vmatpush1.bf16.xpose.msra.mxu0 0
    %768 = vmatprep.subr.bf16.mxu0 0
    %769 = vmatpush1.bf16.xpose.msra.mxu0 0
    %770 = vmatprep.subr.bf16.mxu0 0
    %771 = vmatpush1.bf16.xpose.msra.mxu0 0
    %772 = vmatprep.subr.bf16.mxu0 0
    %773 = vmatpush1.bf16.xpose.msra.mxu0 0
    %774 = vmatprep.subr.bf16.mxu0 0
    %775 = vmatpush1.bf16.xpose.msra.mxu0 0
    %776 = vmatprep.subr.bf16.mxu0 0
    %777 = vmatpush1.bf16.xpose.msra.mxu0 0
    %778 = vmatprep.subr.bf16.mxu0 0
    %779 = vmatpush1.bf16.xpose.msra.mxu0 0
    %780 = vmatprep.subr.bf16.mxu0 0
    %781 = vmatpush1.bf16.xpose.msra.mxu0 0
    %782 = vmatprep.subr.bf16.mxu0 0
    %783 = vmatpush1.bf16.xpose.msra.mxu0 0
    %784 = vmatprep.subr.bf16.mxu0 0
    %785 = vmatpush1.bf16.xpose.msra.mxu0 0
    %786 = vmatprep.mubr.bf16.mxu0 0
    %787 = vmatmul.mubr.bf16.gmra.mrb[0].mxu0 %v749
    %v788 = vpop.f32.mrb[0].mxu0
    %v789 = vadd.f32 0.0, %v788
    %v790 = vpop.f32.mrb[0].mxu0
    %v791 = vpop.f32.mrb[0].mxu0
    %v792 = vpop.f32.mrb[0].mxu0
    %793 = vdwg.mxu0
    %794 = vrot.lane.b32.xlu0 %v693, 64
    %v795 = vpop.permute.xlu0 %794
    %796 = vrot.lane.b32.xlu0 %v694, 64
    %v797 = vpop.permute.xlu0 %796
    %v799 = vsel %vm695, %v795, 0
    %v802 = vsel %vm695, %v797, 0
    %804 = vmatprep.subr.bf16.mxu0 0
    %805 = vmatpush1.bf16.xpose.msra.mxu0 %v802
    %806 = vmatprep.subr.bf16.mxu0 0
    %807 = vmatpush1.bf16.xpose.msra.mxu0 0
    %808 = vmatprep.subr.bf16.mxu0 0
    %809 = vmatpush1.bf16.xpose.msra.mxu0 0
    %810 = vmatprep.subr.bf16.mxu0 0
    %811 = vmatpush1.bf16.xpose.msra.mxu0 0
    %812 = vmatprep.subr.bf16.mxu0 0
    %813 = vmatpush1.bf16.xpose.msra.mxu0 0
    %814 = vmatprep.subr.bf16.mxu0 0
    %815 = vmatpush1.bf16.xpose.msra.mxu0 0
    %816 = vmatprep.subr.bf16.mxu0 0
    %817 = vmatpush1.bf16.xpose.msra.mxu0 0
    %818 = vmatprep.subr.bf16.mxu0 0
    %819 = vmatpush1.bf16.xpose.msra.mxu0 0
    %820 = vmatprep.subr.bf16.mxu0 0
    %821 = vmatpush1.bf16.xpose.msra.mxu0 0
    %822 = vmatprep.subr.bf16.mxu0 0
    %823 = vmatpush1.bf16.xpose.msra.mxu0 0
    %824 = vmatprep.subr.bf16.mxu0 0
    %825 = vmatpush1.bf16.xpose.msra.mxu0 0
    %826 = vmatprep.subr.bf16.mxu0 0
    %827 = vmatpush1.bf16.xpose.msra.mxu0 0
    %828 = vmatprep.subr.bf16.mxu0 0
    %829 = vmatpush1.bf16.xpose.msra.mxu0 0
    %830 = vmatprep.subr.bf16.mxu0 0
    %831 = vmatpush1.bf16.xpose.msra.mxu0 0
    %832 = vmatprep.subr.bf16.mxu0 0
    %833 = vmatpush1.bf16.xpose.msra.mxu0 0
    %834 = vmatprep.subr.bf16.mxu0 0
    %835 = vmatpush1.bf16.xpose.msra.mxu0 0
    %836 = vmatprep.mubr.bf16.mxu0 0
    %837 = vmatmul.mubr.bf16.gmra.mrb[0].mxu0 %v799
    %v838 = vpop.f32.mrb[0].mxu0
    %v839 = vadd.f32 0.0, %v838
    %v840 = vpop.f32.mrb[0].mxu0
    %v841 = vpop.f32.mrb[0].mxu0
    %v842 = vpop.f32.mrb[0].mxu0
    %843 = vdwg.mxu0
    %844 = vrot.lane.b32.xlu0 %v693, 32
    %v845 = vpop.permute.xlu0 %844
    %846 = vrot.lane.b32.xlu0 %v694, 32
    %v847 = vpop.permute.xlu0 %846
    %v849 = vsel %vm695, %v845, 0
    %v852 = vsel %vm695, %v847, 0
    %854 = vmatprep.subr.bf16.mxu0 0
    %855 = vmatpush1.bf16.xpose.msra.mxu0 %v852
    %856 = vmatprep.subr.bf16.mxu0 0
    %857 = vmatpush1.bf16.xpose.msra.mxu0 0
    %858 = vmatprep.subr.bf16.mxu0 0
    %859 = vmatpush1.bf16.xpose.msra.mxu0 0
    %860 = vmatprep.subr.bf16.mxu0 0
    %861 = vmatpush1.bf16.xpose.msra.mxu0 0
    %862 = vmatprep.subr.bf16.mxu0 0
    %863 = vmatpush1.bf16.xpose.msra.mxu0 0
    %864 = vmatprep.subr.bf16.mxu0 0
    %865 = vmatpush1.bf16.xpose.msra.mxu0 0
    %866 = vmatprep.subr.bf16.mxu0 0
    %867 = vmatpush1.bf16.xpose.msra.mxu0 0
    %868 = vmatprep.subr.bf16.mxu0 0
    %869 = vmatpush1.bf16.xpose.msra.mxu0 0
    %870 = vmatprep.subr.bf16.mxu0 0
    %871 = vmatpush1.bf16.xpose.msra.mxu0 0
    %872 = vmatprep.subr.bf16.mxu0 0
    %873 = vmatpush1.bf16.xpose.msra.mxu0 0
    %874 = vmatprep.subr.bf16.mxu0 0
    %875 = vmatpush1.bf16.xpose.msra.mxu0 0
    %876 = vmatprep.subr.bf16.mxu0 0
    %877 = vmatpush1.bf16.xpose.msra.mxu0 0
    %878 = vmatprep.subr.bf16.mxu0 0
    %879 = vmatpush1.bf16.xpose.msra.mxu0 0
    %880 = vmatprep.subr.bf16.mxu0 0
    %881 = vmatpush1.bf16.xpose.msra.mxu0 0
    %882 = vmatprep.subr.bf16.mxu0 0
    %883 = vmatpush1.bf16.xpose.msra.mxu0 0
    %884 = vmatprep.subr.bf16.mxu0 0
    %885 = vmatpush1.bf16.xpose.msra.mxu0 0
    %886 = vmatprep.mubr.bf16.mxu0 0
    %887 = vmatmul.mubr.bf16.gmra.mrb[0].mxu0 %v849
    %v888 = vpop.f32.mrb[0].mxu0
    %v889 = vadd.f32 0.0, %v888
    %v890 = vpop.f32.mrb[0].mxu0
    %v891 = vpop.f32.mrb[0].mxu0
    %v892 = vpop.f32.mrb[0].mxu0
    %893 = vdwg.mxu0
    %v894 = vpack.c.bf16 %v648, %v648
    %v895 = vpack.c.bf16 %v650, %v650
    %v897 = vsel %vm695, %v894, 0
    %v900 = vsel %vm695, %v895, 0
    %902 = vmatprep.subr.bf16.mxu0 0
    %903 = vmatpush1.bf16.xpose.msra.mxu0 %v900
    %904 = vmatprep.subr.bf16.mxu0 0
    %905 = vmatpush1.bf16.xpose.msra.mxu0 0
    %906 = vmatprep.subr.bf16.mxu0 0
    %907 = vmatpush1.bf16.xpose.msra.mxu0 0
    %908 = vmatprep.subr.bf16.mxu0 0
    %909 = vmatpush1.bf16.xpose.msra.mxu0 0
    %910 = vmatprep.subr.bf16.mxu0 0
    %911 = vmatpush1.bf16.xpose.msra.mxu0 0
    %912 = vmatprep.subr.bf16.mxu0 0
    %913 = vmatpush1.bf16.xpose.msra.mxu0 0
    %914 = vmatprep.subr.bf16.mxu0 0
    %915 = vmatpush1.bf16.xpose.msra.mxu0 0
    %916 = vmatprep.subr.bf16.mxu0 0
    %917 = vmatpush1.bf16.xpose.msra.mxu0 0
    %918 = vmatprep.subr.bf16.mxu0 0
    %919 = vmatpush1.bf16.xpose.msra.mxu0 0
    %920 = vmatprep.subr.bf16.mxu0 0
    %921 = vmatpush1.bf16.xpose.msra.mxu0 0
    %922 = vmatprep.subr.bf16.mxu0 0
    %923 = vmatpush1.bf16.xpose.msra.mxu0 0
    %924 = vmatprep.subr.bf16.mxu0 0
    %925 = vmatpush1.bf16.xpose.msra.mxu0 0
    %926 = vmatprep.subr.bf16.mxu0 0
    %927 = vmatpush1.bf16.xpose.msra.mxu0 0
    %928 = vmatprep.subr.bf16.mxu0 0
    %929 = vmatpush1.bf16.xpose.msra.mxu0 0
    %930 = vmatprep.subr.bf16.mxu0 0
    %931 = vmatpush1.bf16.xpose.msra.mxu0 0
    %932 = vmatprep.subr.bf16.mxu0 0
    %933 = vmatpush1.bf16.xpose.msra.mxu0 0
    %934 = vmatprep.mubr.bf16.mxu0 0
    %935 = vmatmul.mubr.bf16.gmra.mrb[0].mxu0 %v897
    %v936 = vpop.f32.mrb[0].mxu0
    %v937 = vadd.f32 0.0, %v936
    %v938 = vpop.f32.mrb[0].mxu0
    %v939 = vpop.f32.mrb[0].mxu0
    %v940 = vpop.f32.mrb[0].mxu0
    %941 = vdwg.mxu0
    %943 = vrot.lane.b32.xlu0 %v894, 96
    %v944 = vpop.permute.xlu0 %943
    %946 = vrot.lane.b32.xlu0 %v895, 96
    %v947 = vpop.permute.xlu0 %946
    %v949 = vsel %vm695, %v944, 0
    %v952 = vsel %vm695, %v947, 0
    %954 = vmatprep.subr.bf16.mxu0 0
    %955 = vmatpush1.bf16.xpose.msra.mxu0 %v952
    %956 = vmatprep.subr.bf16.mxu0 0
    %957 = vmatpush1.bf16.xpose.msra.mxu0 0
    %958 = vmatprep.subr.bf16.mxu0 0
    %959 = vmatpush1.bf16.xpose.msra.mxu0 0
    %960 = vmatprep.subr.bf16.mxu0 0
    %961 = vmatpush1.bf16.xpose.msra.mxu0 0
    %962 = vmatprep.subr.bf16.mxu0 0
    %963 = vmatpush1.bf16.xpose.msra.mxu0 0
    %964 = vmatprep.subr.bf16.mxu0 0
    %965 = vmatpush1.bf16.xpose.msra.mxu0 0
    %966 = vmatprep.subr.bf16.mxu0 0
    %967 = vmatpush1.bf16.xpose.msra.mxu0 0
    %968 = vmatprep.subr.bf16.mxu0 0
    %969 = vmatpush1.bf16.xpose.msra.mxu0 0
    %970 = vmatprep.subr.bf16.mxu0 0
    %971 = vmatpush1.bf16.xpose.msra.mxu0 0
    %972 = vmatprep.subr.bf16.mxu0 0
    %973 = vmatpush1.bf16.xpose.msra.mxu0 0
    %974 = vmatprep.subr.bf16.mxu0 0
    %975 = vmatpush1.bf16.xpose.msra.mxu0 0
    %976 = vmatprep.subr.bf16.mxu0 0
    %977 = vmatpush1.bf16.xpose.msra.mxu0 0
    %978 = vmatprep.subr.bf16.mxu0 0
    %979 = vmatpush1.bf16.xpose.msra.mxu0 0
    %980 = vmatprep.subr.bf16.mxu0 0
    %981 = vmatpush1.bf16.xpose.msra.mxu0 0
    %982 = vmatprep.subr.bf16.mxu0 0
    %983 = vmatpush1.bf16.xpose.msra.mxu0 0
    %984 = vmatprep.subr.bf16.mxu0 0
    %985 = vmatpush1.bf16.xpose.msra.mxu0 0
    %986 = vmatprep.mubr.bf16.mxu0 0
    %987 = vmatmul.mubr.bf16.gmra.mrb[0].mxu0 %v949
    %v988 = vpop.f32.mrb[0].mxu0
    %v989 = vadd.f32 0.0, %v988
    %v990 = vpop.f32.mrb[0].mxu0
    %v991 = vpop.f32.mrb[0].mxu0
    %v992 = vpop.f32.mrb[0].mxu0
    %993 = vdwg.mxu0
    %994 = vrot.lane.b32.xlu0 %v894, 64
    %v995 = vpop.permute.xlu0 %994
    %996 = vrot.lane.b32.xlu0 %v895, 64
    %v997 = vpop.permute.xlu0 %996
    %v999 = vsel %vm695, %v995, 0
    %v1002 = vsel %vm695, %v997, 0
    %1004 = vmatprep.subr.bf16.mxu0 0
    %1005 = vmatpush1.bf16.xpose.msra.mxu0 %v1002
    %1006 = vmatprep.subr.bf16.mxu0 0
    %1007 = vmatpush1.bf16.xpose.msra.mxu0 0
    %1008 = vmatprep.subr.bf16.mxu0 0
    %1009 = vmatpush1.bf16.xpose.msra.mxu0 0
    %1010 = vmatprep.subr.bf16.mxu0 0
    %1011 = vmatpush1.bf16.xpose.msra.mxu0 0
    %1012 = vmatprep.subr.bf16.mxu0 0
    %1013 = vmatpush1.bf16.xpose.msra.mxu0 0
    %1014 = vmatprep.subr.bf16.mxu0 0
    %1015 = vmatpush1.bf16.xpose.msra.mxu0 0
    %1016 = vmatprep.subr.bf16.mxu0 0
    %1017 = vmatpush1.bf16.xpose.msra.mxu0 0
    %1018 = vmatprep.subr.bf16.mxu0 0
    %1019 = vmatpush1.bf16.xpose.msra.mxu0 0
    %1020 = vmatprep.subr.bf16.mxu0 0
    %1021 = vmatpush1.bf16.xpose.msra.mxu0 0
    %1022 = vmatprep.subr.bf16.mxu0 0
    %1023 = vmatpush1.bf16.xpose.msra.mxu0 0
    %1024 = vmatprep.subr.bf16.mxu0 0
    %1025 = vmatpush1.bf16.xpose.msra.mxu0 0
    %1026 = vmatprep.subr.bf16.mxu0 0
    %1027 = vmatpush1.bf16.xpose.msra.mxu0 0
    %1028 = vmatprep.subr.bf16.mxu0 0
    %1029 = vmatpush1.bf16.xpose.msra.mxu0 0
    %1030 = vmatprep.subr.bf16.mxu0 0
    %1031 = vmatpush1.bf16.xpose.msra.mxu0 0
    %1032 = vmatprep.subr.bf16.mxu0 0
    %1033 = vmatpush1.bf16.xpose.msra.mxu0 0
    %1034 = vmatprep.subr.bf16.mxu0 0
    %1035 = vmatpush1.bf16.xpose.msra.mxu0 0
    %1036 = vmatprep.mubr.bf16.mxu0 0
    %1037 = vmatmul.mubr.bf16.gmra.mrb[0].mxu0 %v999
    %v1038 = vpop.f32.mrb[0].mxu0
    %v1039 = vadd.f32 0.0, %v1038
    %v1040 = vpop.f32.mrb[0].mxu0
    %v1041 = vpop.f32.mrb[0].mxu0
    %v1042 = vpop.f32.mrb[0].mxu0
    %1043 = vdwg.mxu0
    %1044 = vrot.lane.b32.xlu0 %v894, 32
    %v1045 = vpop.permute.xlu0 %1044
    %1046 = vrot.lane.b32.xlu0 %v895, 32
    %v1047 = vpop.permute.xlu0 %1046
    %v1049 = vsel %vm695, %v1045, 0
    %v1052 = vsel %vm695, %v1047, 0
    %1054 = vmatprep.subr.bf16.mxu0 0
    %1055 = vmatpush1.bf16.xpose.msra.mxu0 %v1052
    %1056 = vmatprep.subr.bf16.mxu0 0
    %1057 = vmatpush1.bf16.xpose.msra.mxu0 0
    %1058 = vmatprep.subr.bf16.mxu0 0
    %1059 = vmatpush1.bf16.xpose.msra.mxu0 0
    %1060 = vmatprep.subr.bf16.mxu0 0
    %1061 = vmatpush1.bf16.xpose.msra.mxu0 0
    %1062 = vmatprep.subr.bf16.mxu0 0
    %1063 = vmatpush1.bf16.xpose.msra.mxu0 0
    %1064 = vmatprep.subr.bf16.mxu0 0
    %1065 = vmatpush1.bf16.xpose.msra.mxu0 0
    %1066 = vmatprep.subr.bf16.mxu0 0
    %1067 = vmatpush1.bf16.xpose.msra.mxu0 0
    %1068 = vmatprep.subr.bf16.mxu0 0
    %1069 = vmatpush1.bf16.xpose.msra.mxu0 0
    %1070 = vmatprep.subr.bf16.mxu0 0
    %1071 = vmatpush1.bf16.xpose.msra.mxu0 0
    %1072 = vmatprep.subr.bf16.mxu0 0
    %1073 = vmatpush1.bf16.xpose.msra.mxu0 0
    %1074 = vmatprep.subr.bf16.mxu0 0
    %1075 = vmatpush1.bf16.xpose.msra.mxu0 0
    %1076 = vmatprep.subr.bf16.mxu0 0
    %1077 = vmatpush1.bf16.xpose.msra.mxu0 0
    %1078 = vmatprep.subr.bf16.mxu0 0
    %1079 = vmatpush1.bf16.xpose.msra.mxu0 0
    %1080 = vmatprep.subr.bf16.mxu0 0
    %1081 = vmatpush1.bf16.xpose.msra.mxu0 0
    %1082 = vmatprep.subr.bf16.mxu0 0
    %1083 = vmatpush1.bf16.xpose.msra.mxu0 0
    %1084 = vmatprep.subr.bf16.mxu0 0
    %1085 = vmatpush1.bf16.xpose.msra.mxu0 0
    %1086 = vmatprep.mubr.bf16.mxu0 0
    %1087 = vmatmul.mubr.bf16.gmra.mrb[0].mxu0 %v1049
    %v1088 = vpop.f32.mrb[0].mxu0
    %v1089 = vadd.f32 0.0, %v1088
    %v1090 = vpop.f32.mrb[0].mxu0
    %v1091 = vpop.f32.mrb[0].mxu0
    %v1092 = vpop.f32.mrb[0].mxu0
    %1093 = vdwg.mxu0
    %v1094 = vmul.f32 %v737, 0.17677669
    %v1095 = vmul.f32 %v789, 0.17677669
    %v1096 = vmul.f32 %v839, 0.17677669
    %v1097 = vmul.f32 %v889, 0.17677669
    %v1098 = vmul.f32 %v937, 0.17677669
    %v1099 = vmul.f32 %v989, 0.17677669
    %v1100 = vmul.f32 %v1039, 0.17677669
    %v1101 = vmul.f32 %v1089, 0.17677669
    %v1102 = vadd.f32 %v1094, %v425
    %v1103 = vadd.f32 %v1095, %v425
    %v1104 = vadd.f32 %v1096, %v425
    %v1105 = vadd.f32 %v1097, %v425
    %v1106 = vadd.f32 %v1098, %v429
    %v1107 = vadd.f32 %v1099, %v429
    %v1108 = vadd.f32 %v1100, %v429
    %v1109 = vadd.f32 %v1101, %v429
    %vm1110 = vcmask 64512
    %v1111 = vsel %vm1110, %v1102, -inf
    %1112 = vmax.xlane.f32.xlu0 %v1111
    %v1113 = vpop.xlane.xlu0 %1112
    %v1114 = vsel %vm1110, %v1103, -inf
    %1115 = vmax.xlane.f32.xlu0 %v1114
    %v1116 = vpop.xlane.xlu0 %1115
    %v1117 = vsel %vm1110, %v1104, -inf
    %1118 = vmax.xlane.f32.xlu0 %v1117
    %v1119 = vpop.xlane.xlu0 %1118
    %v1120 = vsel %vm1110, %v1105, -inf
    %1121 = vmax.xlane.f32.xlu0 %v1120
    %v1122 = vpop.xlane.xlu0 %1121
    %v1123 = vsel %vm1110, %v1106, -inf
    %1124 = vmax.xlane.f32.xlu0 %v1123
    %v1125 = vpop.xlane.xlu0 %1124
    %v1126 = vsel %vm1110, %v1107, -inf
    %1127 = vmax.xlane.f32.xlu0 %v1126
    %v1128 = vpop.xlane.xlu0 %1127
    %v1129 = vsel %vm1110, %v1108, -inf
    %1130 = vmax.xlane.f32.xlu0 %v1129
    %v1131 = vpop.xlane.xlu0 %1130
    %v1132 = vsel %vm1110, %v1109, -inf
    %1133 = vmax.xlane.f32.xlu0 %v1132
    %v1134 = vpop.xlane.xlu0 %1133
    %v1135 = vsub.f32 %v1102, %v1113
    %v1136 = vsub.f32 %v1103, %v1116
    %v1137 = vsub.f32 %v1104, %v1119
    %v1138 = vsub.f32 %v1105, %v1122
    %v1139 = vsub.f32 %v1106, %v1125
    %v1140 = vsub.f32 %v1107, %v1128
    %v1141 = vsub.f32 %v1108, %v1131
    %v1142 = vsub.f32 %v1109, %v1134
    %v1143 = vmul.f32 %v1135, 1.442695
    %v1144 = vpow.pop %v1143
    %v1145 = vmul.f32 %v1136, 1.442695
    %v1146 = vpow.pop %v1145
    %v1147 = vmul.f32 %v1137, 1.442695
    %v1148 = vpow.pop %v1147
    %v1149 = vmul.f32 %v1138, 1.442695
    %v1150 = vpow.pop %v1149
    %v1151 = vmul.f32 %v1139, 1.442695
    %v1152 = vpow.pop %v1151
    %v1153 = vmul.f32 %v1140, 1.442695
    %v1154 = vpow.pop %v1153
    %v1155 = vmul.f32 %v1141, 1.442695
    %v1156 = vpow.pop %v1155
    %v1157 = vmul.f32 %v1142, 1.442695
    %v1158 = vpow.pop %v1157
    %v1159 = vsel %vm1110, %v1144, 0.0
    %1160 = vadd.xlane.f32.xlu0 %v1159
    %v1161 = vpop.xlane.xlu0 %1160
    %v1162 = vsel %vm1110, %v1146, 0.0
    %1163 = vadd.xlane.f32.xlu0 %v1162
    %v1164 = vpop.xlane.xlu0 %1163
    %v1165 = vsel %vm1110, %v1148, 0.0
    %1166 = vadd.xlane.f32.xlu0 %v1165
    %v1167 = vpop.xlane.xlu0 %1166
    %v1168 = vsel %vm1110, %v1150, 0.0
    %1169 = vadd.xlane.f32.xlu0 %v1168
    %v1170 = vpop.xlane.xlu0 %1169
    %v1171 = vsel %vm1110, %v1152, 0.0
    %1172 = vadd.xlane.f32.xlu0 %v1171
    %v1173 = vpop.xlane.xlu0 %1172
    %v1174 = vsel %vm1110, %v1154, 0.0
    %1175 = vadd.xlane.f32.xlu0 %v1174
    %v1176 = vpop.xlane.xlu0 %1175
    %v1177 = vsel %vm1110, %v1156, 0.0
    %1178 = vadd.xlane.f32.xlu0 %v1177
    %v1179 = vpop.xlane.xlu0 %1178
    %v1180 = vsel %vm1110, %v1158, 0.0
    %1181 = vadd.xlane.f32.xlu0 %v1180
    %v1182 = vpop.xlane.xlu0 %1181
    %v1183 = vrcp.pop %v1161
    %v1184 = vrcp.pop %v1164
    %v1185 = vrcp.pop %v1167
    %v1186 = vrcp.pop %v1170
    %v1187 = vrcp.pop %v1173
    %v1188 = vrcp.pop %v1176
    %v1189 = vrcp.pop %v1179
    %v1190 = vrcp.pop %v1182
    %v1191 = vmul.f32 %v1144, %v1183
    %v1192 = vmul.f32 %v1146, %v1184
    %v1193 = vmul.f32 %v1148, %v1185
    %v1194 = vmul.f32 %v1150, %v1186
    %v1195 = vmul.f32 %v1152, %v1187
    %v1196 = vmul.f32 %v1154, %v1188
    %v1197 = vmul.f32 %v1156, %v1189
    %v1198 = vmul.f32 %v1158, %v1190
    %v1199 = vpack.c.bf16 %v1191, %v1191
    %v1200 = vpack.c.bf16 %v687, %v687
    %v1202 = vsel %vm1110, %v1199, 0
    %vm1204 = vcmask 1043456
    %v1206 = vsel %vm1204, %v1200, 0
    %1208 = vmatprep.subr.bf16.mxu0 0
    %1209 = vmatpush1.bf16.msra.mxu0 %v1206
    %1210 = vmatprep.subr.bf16.mxu0 0
    %1211 = vmatpush1.bf16.msra.mxu0 0
    %1212 = vmatprep.subr.bf16.mxu0 0
    %1213 = vmatpush1.bf16.msra.mxu0 0
    %1214 = vmatprep.subr.bf16.mxu0 0
    %1215 = vmatpush1.bf16.msra.mxu0 0
    %1216 = vmatprep.subr.bf16.mxu0 0
    %1217 = vmatpush1.bf16.msra.mxu0 0
    %1218 = vmatprep.subr.bf16.mxu0 0
    %1219 = vmatpush1.bf16.msra.mxu0 0
    %1220 = vmatprep.subr.bf16.mxu0 0
    %1221 = vmatpush1.bf16.msra.mxu0 0
    %1222 = vmatprep.subr.bf16.mxu0 0
    %1223 = vmatpush1.bf16.msra.mxu0 0
    %1224 = vmatprep.subr.bf16.mxu0 0
    %1225 = vmatpush1.bf16.msra.mxu0 0
    %1226 = vmatprep.subr.bf16.mxu0 0
    %1227 = vmatpush1.bf16.msra.mxu0 0
    %1228 = vmatprep.subr.bf16.mxu0 0
    %1229 = vmatpush1.bf16.msra.mxu0 0
    %1230 = vmatprep.subr.bf16.mxu0 0
    %1231 = vmatpush1.bf16.msra.mxu0 0
    %1232 = vmatprep.subr.bf16.mxu0 0
    %1233 = vmatpush1.bf16.msra.mxu0 0
    %1234 = vmatprep.subr.bf16.mxu0 0
    %1235 = vmatpush1.bf16.msra.mxu0 0
    %1236 = vmatprep.subr.bf16.mxu0 0
    %1237 = vmatpush1.bf16.msra.mxu0 0
    %1238 = vmatprep.subr.bf16.mxu0 0
    %1239 = vmatpush1.bf16.msra.mxu0 0
    %1240 = vmatprep.mubr.bf16.mxu0 0
    %1241 = vmatmul.mubr.bf16.gmra.mrb[0].mxu0 %v1202
    %v1242 = vpop.f32.mrb[0].mxu0
    %v1243 = vadd.f32 0.0, %v1242
    %v1244 = vpop.f32.mrb[0].mxu0
    %v1245 = vpop.f32.mrb[0].mxu0
    %v1246 = vpop.f32.mrb[0].mxu0
    %1247 = vdwg.mxu0
    %v1248 = vpack.c.bf16 %v1192, %v1192
    %1250 = vrot.lane.b32.xlu0 %v1200, 96
    %v1251 = vpop.permute.xlu0 %1250
    %v1253 = vsel %vm1110, %v1248, 0
    %v1256 = vsel %vm1204, %v1251, 0
    %1258 = vmatprep.subr.bf16.mxu0 0
    %1259 = vmatpush1.bf16.msra.mxu0 %v1256
    %1260 = vmatprep.subr.bf16.mxu0 0
    %1261 = vmatpush1.bf16.msra.mxu0 0
    %1262 = vmatprep.subr.bf16.mxu0 0
    %1263 = vmatpush1.bf16.msra.mxu0 0
    %1264 = vmatprep.subr.bf16.mxu0 0
    %1265 = vmatpush1.bf16.msra.mxu0 0
    %1266 = vmatprep.subr.bf16.mxu0 0
    %1267 = vmatpush1.bf16.msra.mxu0 0
    %1268 = vmatprep.subr.bf16.mxu0 0
    %1269 = vmatpush1.bf16.msra.mxu0 0
    %1270 = vmatprep.subr.bf16.mxu0 0
    %1271 = vmatpush1.bf16.msra.mxu0 0
    %1272 = vmatprep.subr.bf16.mxu0 0
    %1273 = vmatpush1.bf16.msra.mxu0 0
    %1274 = vmatprep.subr.bf16.mxu0 0
    %1275 = vmatpush1.bf16.msra.mxu0 0
    %1276 = vmatprep.subr.bf16.mxu0 0
    %1277 = vmatpush1.bf16.msra.mxu0 0
    %1278 = vmatprep.subr.bf16.mxu0 0
    %1279 = vmatpush1.bf16.msra.mxu0 0
    %1280 = vmatprep.subr.bf16.mxu0 0
    %1281 = vmatpush1.bf16.msra.mxu0 0
    %1282 = vmatprep.subr.bf16.mxu0 0
    %1283 = vmatpush1.bf16.msra.mxu0 0
    %1284 = vmatprep.subr.bf16.mxu0 0
    %1285 = vmatpush1.bf16.msra.mxu0 0
    %1286 = vmatprep.subr.bf16.mxu0 0
    %1287 = vmatpush1.bf16.msra.mxu0 0
    %1288 = vmatprep.subr.bf16.mxu0 0
    %1289 = vmatpush1.bf16.msra.mxu0 0
    %1290 = vmatprep.mubr.bf16.mxu0 0
    %1291 = vmatmul.mubr.bf16.gmra.mrb[0].mxu0 %v1253
    %v1292 = vpop.f32.mrb[0].mxu0
    %v1293 = vadd.f32 0.0, %v1292
    %v1294 = vpop.f32.mrb[0].mxu0
    %v1295 = vpop.f32.mrb[0].mxu0
    %v1296 = vpop.f32.mrb[0].mxu0
    %1297 = vdwg.mxu0
    %v1298 = vpack.c.bf16 %v1193, %v1193
    %1299 = vrot.lane.b32.xlu0 %v1200, 64
    %v1300 = vpop.permute.xlu0 %1299
    %v1302 = vsel %vm1110, %v1298, 0
    %v1305 = vsel %vm1204, %v1300, 0
    %1307 = vmatprep.subr.bf16.mxu0 0
    %1308 = vmatpush1.bf16.msra.mxu0 %v1305
    %1309 = vmatprep.subr.bf16.mxu0 0
    %1310 = vmatpush1.bf16.msra.mxu0 0
    %1311 = vmatprep.subr.bf16.mxu0 0
    %1312 = vmatpush1.bf16.msra.mxu0 0
    %1313 = vmatprep.subr.bf16.mxu0 0
    %1314 = vmatpush1.bf16.msra.mxu0 0
    %1315 = vmatprep.subr.bf16.mxu0 0
    %1316 = vmatpush1.bf16.msra.mxu0 0
    %1317 = vmatprep.subr.bf16.mxu0 0
    %1318 = vmatpush1.bf16.msra.mxu0 0
    %1319 = vmatprep.subr.bf16.mxu0 0
    %1320 = vmatpush1.bf16.msra.mxu0 0
    %1321 = vmatprep.subr.bf16.mxu0 0
    %1322 = vmatpush1.bf16.msra.mxu0 0
    %1323 = vmatprep.subr.bf16.mxu0 0
    %1324 = vmatpush1.bf16.msra.mxu0 0
    %1325 = vmatprep.subr.bf16.mxu0 0
    %1326 = vmatpush1.bf16.msra.mxu0 0
    %1327 = vmatprep.subr.bf16.mxu0 0
    %1328 = vmatpush1.bf16.msra.mxu0 0
    %1329 = vmatprep.subr.bf16.mxu0 0
    %1330 = vmatpush1.bf16.msra.mxu0 0
    %1331 = vmatprep.subr.bf16.mxu0 0
    %1332 = vmatpush1.bf16.msra.mxu0 0
    %1333 = vmatprep.subr.bf16.mxu0 0
    %1334 = vmatpush1.bf16.msra.mxu0 0
    %1335 = vmatprep.subr.bf16.mxu0 0
    %1336 = vmatpush1.bf16.msra.mxu0 0
    %1337 = vmatprep.subr.bf16.mxu0 0
    %1338 = vmatpush1.bf16.msra.mxu0 0
    %1339 = vmatprep.mubr.bf16.mxu0 0
    %1340 = vmatmul.mubr.bf16.gmra.mrb[0].mxu0 %v1302
    %v1341 = vpop.f32.mrb[0].mxu0
    %v1342 = vadd.f32 0.0, %v1341
    %v1343 = vpop.f32.mrb[0].mxu0
    %v1344 = vpop.f32.mrb[0].mxu0
    %v1345 = vpop.f32.mrb[0].mxu0
    %1346 = vdwg.mxu0
    %v1347 = vpack.c.bf16 %v1194, %v1194
    %1348 = vrot.lane.b32.xlu0 %v1200, 32
    %v1349 = vpop.permute.xlu0 %1348
    %v1351 = vsel %vm1110, %v1347, 0
    %v1354 = vsel %vm1204, %v1349, 0
    %1356 = vmatprep.subr.bf16.mxu0 0
    %1357 = vmatpush1.bf16.msra.mxu0 %v1354
    %1358 = vmatprep.subr.bf16.mxu0 0
    %1359 = vmatpush1.bf16.msra.mxu0 0
    %1360 = vmatprep.subr.bf16.mxu0 0
    %1361 = vmatpush1.bf16.msra.mxu0 0
    %1362 = vmatprep.subr.bf16.mxu0 0
    %1363 = vmatpush1.bf16.msra.mxu0 0
    %1364 = vmatprep.subr.bf16.mxu0 0
    %1365 = vmatpush1.bf16.msra.mxu0 0
    %1366 = vmatprep.subr.bf16.mxu0 0
    %1367 = vmatpush1.bf16.msra.mxu0 0
    %1368 = vmatprep.subr.bf16.mxu0 0
    %1369 = vmatpush1.bf16.msra.mxu0 0
    %1370 = vmatprep.subr.bf16.mxu0 0
    %1371 = vmatpush1.bf16.msra.mxu0 0
    %1372 = vmatprep.subr.bf16.mxu0 0
    %1373 = vmatpush1.bf16.msra.mxu0 0
    %1374 = vmatprep.subr.bf16.mxu0 0
    %1375 = vmatpush1.bf16.msra.mxu0 0
    %1376 = vmatprep.subr.bf16.mxu0 0
    %1377 = vmatpush1.bf16.msra.mxu0 0
    %1378 = vmatprep.subr.bf16.mxu0 0
    %1379 = vmatpush1.bf16.msra.mxu0 0
    %1380 = vmatprep.subr.bf16.mxu0 0
    %1381 = vmatpush1.bf16.msra.mxu0 0
    %1382 = vmatprep.subr.bf16.mxu0 0
    %1383 = vmatpush1.bf16.msra.mxu0 0
    %1384 = vmatprep.subr.bf16.mxu0 0
    %1385 = vmatpush1.bf16.msra.mxu0 0
    %1386 = vmatprep.subr.bf16.mxu0 0
    %1387 = vmatpush1.bf16.msra.mxu0 0
    %1388 = vmatprep.mubr.bf16.mxu0 0
    %1389 = vmatmul.mubr.bf16.gmra.mrb[0].mxu0 %v1351
    %v1390 = vpop.f32.mrb[0].mxu0
    %v1391 = vadd.f32 0.0, %v1390
    %v1392 = vpop.f32.mrb[0].mxu0
    %v1393 = vpop.f32.mrb[0].mxu0
    %v1394 = vpop.f32.mrb[0].mxu0
    %1395 = vdwg.mxu0
    %1397 = vrot.lane.b32.xlu0 %v1293, 32
    %v1398 = vpop.permute.xlu0 %1397
    %1401 = vrot.lane.b32.xlu0 %v1342, 64
    %v1402 = vpop.permute.xlu0 %1401
    %1405 = vrot.lane.b32.xlu0 %v1391, 96
    %v1406 = vpop.permute.xlu0 %1405
    %v1408 = vsel %vm695, %v1243, %v1398
    %vm1409 = vcmask 523264
    %v1410 = vsel %vm1409, %v1408, %v1402
    %vm1411 = vcmask 785408
    %v1412 = vsel %vm1411, %v1410, %v1406
    %v1413 = vpack.c.bf16 %v1195, %v1195
    %v1414 = vpack.c.bf16 %v690, %v690
    %v1416 = vsel %vm1110, %v1413, 0
    %v1419 = vsel %vm1204, %v1414, 0
    %1421 = vmatprep.subr.bf16.mxu0 0
    %1422 = vmatpush1.bf16.msra.mxu0 %v1419
    %1423 = vmatprep.subr.bf16.mxu0 0
    %1424 = vmatpush1.bf16.msra.mxu0 0
    %1425 = vmatprep.subr.bf16.mxu0 0
    %1426 = vmatpush1.bf16.msra.mxu0 0
    %1427 = vmatprep.subr.bf16.mxu0 0
    %1428 = vmatpush1.bf16.msra.mxu0 0
    %1429 = vmatprep.subr.bf16.mxu0 0
    %1430 = vmatpush1.bf16.msra.mxu0 0
    %1431 = vmatprep.subr.bf16.mxu0 0
    %1432 = vmatpush1.bf16.msra.mxu0 0
    %1433 = vmatprep.subr.bf16.mxu0 0
    %1434 = vmatpush1.bf16.msra.mxu0 0
    %1435 = vmatprep.subr.bf16.mxu0 0
    %1436 = vmatpush1.bf16.msra.mxu0 0
    %1437 = vmatprep.subr.bf16.mxu0 0
    %1438 = vmatpush1.bf16.msra.mxu0 0
    %1439 = vmatprep.subr.bf16.mxu0 0
    %1440 = vmatpush1.bf16.msra.mxu0 0
    %1441 = vmatprep.subr.bf16.mxu0 0
    %1442 = vmatpush1.bf16.msra.mxu0 0
    %1443 = vmatprep.subr.bf16.mxu0 0
    %1444 = vmatpush1.bf16.msra.mxu0 0
    %1445 = vmatprep.subr.bf16.mxu0 0
    %1446 = vmatpush1.bf16.msra.mxu0 0
    %1447 = vmatprep.subr.bf16.mxu0 0
    %1448 = vmatpush1.bf16.msra.mxu0 0
    %1449 = vmatprep.subr.bf16.mxu0 0
    %1450 = vmatpush1.bf16.msra.mxu0 0
    %1451 = vmatprep.subr.bf16.mxu0 0
    %1452 = vmatpush1.bf16.msra.mxu0 0
    %1453 = vmatprep.mubr.bf16.mxu0 0
    %1454 = vmatmul.mubr.bf16.gmra.mrb[0].mxu0 %v1416
    %v1455 = vpop.f32.mrb[0].mxu0
    %v1456 = vadd.f32 0.0, %v1455
    %v1457 = vpop.f32.mrb[0].mxu0
    %v1458 = vpop.f32.mrb[0].mxu0
    %v1459 = vpop.f32.mrb[0].mxu0
    %1460 = vdwg.mxu0
    %v1461 = vpack.c.bf16 %v1196, %v1196
    %1463 = vrot.lane.b32.xlu0 %v1414, 96
    %v1464 = vpop.permute.xlu0 %1463
    %v1466 = vsel %vm1110, %v1461, 0
    %v1469 = vsel %vm1204, %v1464, 0
    %1471 = vmatprep.subr.bf16.mxu0 0
    %1472 = vmatpush1.bf16.msra.mxu0 %v1469
    %1473 = vmatprep.subr.bf16.mxu0 0
    %1474 = vmatpush1.bf16.msra.mxu0 0
    %1475 = vmatprep.subr.bf16.mxu0 0
    %1476 = vmatpush1.bf16.msra.mxu0 0
    %1477 = vmatprep.subr.bf16.mxu0 0
    %1478 = vmatpush1.bf16.msra.mxu0 0
    %1479 = vmatprep.subr.bf16.mxu0 0
    %1480 = vmatpush1.bf16.msra.mxu0 0
    %1481 = vmatprep.subr.bf16.mxu0 0
    %1482 = vmatpush1.bf16.msra.mxu0 0
    %1483 = vmatprep.subr.bf16.mxu0 0
    %1484 = vmatpush1.bf16.msra.mxu0 0
    %1485 = vmatprep.subr.bf16.mxu0 0
    %1486 = vmatpush1.bf16.msra.mxu0 0
    %1487 = vmatprep.subr.bf16.mxu0 0
    %1488 = vmatpush1.bf16.msra.mxu0 0
    %1489 = vmatprep.subr.bf16.mxu0 0
    %1490 = vmatpush1.bf16.msra.mxu0 0
    %1491 = vmatprep.subr.bf16.mxu0 0
    %1492 = vmatpush1.bf16.msra.mxu0 0
    %1493 = vmatprep.subr.bf16.mxu0 0
    %1494 = vmatpush1.bf16.msra.mxu0 0
    %1495 = vmatprep.subr.bf16.mxu0 0
    %1496 = vmatpush1.bf16.msra.mxu0 0
    %1497 = vmatprep.subr.bf16.mxu0 0
    %1498 = vmatpush1.bf16.msra.mxu0 0
    %1499 = vmatprep.subr.bf16.mxu0 0
    %1500 = vmatpush1.bf16.msra.mxu0 0
    %1501 = vmatprep.subr.bf16.mxu0 0
    %1502 = vmatpush1.bf16.msra.mxu0 0
    %1503 = vmatprep.mubr.bf16.mxu0 0
    %1504 = vmatmul.mubr.bf16.gmra.mrb[0].mxu0 %v1466
    %v1505 = vpop.f32.mrb[0].mxu0
    %v1506 = vadd.f32 0.0, %v1505
    %v1507 = vpop.f32.mrb[0].mxu0
    %v1508 = vpop.f32.mrb[0].mxu0
    %v1509 = vpop.f32.mrb[0].mxu0
    %1510 = vdwg.mxu0
    %v1511 = vpack.c.bf16 %v1197, %v1197
    %1512 = vrot.lane.b32.xlu0 %v1414, 64
    %v1513 = vpop.permute.xlu0 %1512
    %v1515 = vsel %vm1110, %v1511, 0
    %v1518 = vsel %vm1204, %v1513, 0
    %1520 = vmatprep.subr.bf16.mxu0 0
    %1521 = vmatpush1.bf16.msra.mxu0 %v1518
    %1522 = vmatprep.subr.bf16.mxu0 0
    %1523 = vmatpush1.bf16.msra.mxu0 0
    %1524 = vmatprep.subr.bf16.mxu0 0
    %1525 = vmatpush1.bf16.msra.mxu0 0
    %1526 = vmatprep.subr.bf16.mxu0 0
    %1527 = vmatpush1.bf16.msra.mxu0 0
    %1528 = vmatprep.subr.bf16.mxu0 0
    %1529 = vmatpush1.bf16.msra.mxu0 0
    %1530 = vmatprep.subr.bf16.mxu0 0
    %1531 = vmatpush1.bf16.msra.mxu0 0
    %1532 = vmatprep.subr.bf16.mxu0 0
    %1533 = vmatpush1.bf16.msra.mxu0 0
    %1534 = vmatprep.subr.bf16.mxu0 0
    %1535 = vmatpush1.bf16.msra.mxu0 0
    %1536 = vmatprep.subr.bf16.mxu0 0
    %1537 = vmatpush1.bf16.msra.mxu0 0
    %1538 = vmatprep.subr.bf16.mxu0 0
    %1539 = vmatpush1.bf16.msra.mxu0 0
    %1540 = vmatprep.subr.bf16.mxu0 0
    %1541 = vmatpush1.bf16.msra.mxu0 0
    %1542 = vmatprep.subr.bf16.mxu0 0
    %1543 = vmatpush1.bf16.msra.mxu0 0
    %1544 = vmatprep.subr.bf16.mxu0 0
    %1545 = vmatpush1.bf16.msra.mxu0 0
    %1546 = vmatprep.subr.bf16.mxu0 0
    %1547 = vmatpush1.bf16.msra.mxu0 0
    %1548 = vmatprep.subr.bf16.mxu0 0
    %1549 = vmatpush1.bf16.msra.mxu0 0
    %1550 = vmatprep.subr.bf16.mxu0 0
    %1551 = vmatpush1.bf16.msra.mxu0 0
    %1552 = vmatprep.mubr.bf16.mxu0 0
    %1553 = vmatmul.mubr.bf16.gmra.mrb[0].mxu0 %v1515
    %v1554 = vpop.f32.mrb[0].mxu0
    %v1555 = vadd.f32 0.0, %v1554
    %v1556 = vpop.f32.mrb[0].mxu0
    %v1557 = vpop.f32.mrb[0].mxu0
    %v1558 = vpop.f32.mrb[0].mxu0
    %1559 = vdwg.mxu0
    %v1560 = vpack.c.bf16 %v1198, %v1198
    %1561 = vrot.lane.b32.xlu0 %v1414, 32
    %v1562 = vpop.permute.xlu0 %1561
    %v1564 = vsel %vm1110, %v1560, 0
    %v1567 = vsel %vm1204, %v1562, 0
    %1569 = vmatprep.subr.bf16.mxu0 0
    %1570 = vmatpush1.bf16.msra.mxu0 %v1567
    %1571 = vmatprep.subr.bf16.mxu0 0
    %1572 = vmatpush1.bf16.msra.mxu0 0
    %1573 = vmatprep.subr.bf16.mxu0 0
    %1574 = vmatpush1.bf16.msra.mxu0 0
    %1575 = vmatprep.subr.bf16.mxu0 0
    %1576 = vmatpush1.bf16.msra.mxu0 0
    %1577 = vmatprep.subr.bf16.mxu0 0
    %1578 = vmatpush1.bf16.msra.mxu0 0
    %1579 = vmatprep.subr.bf16.mxu0 0
    %1580 = vmatpush1.bf16.msra.mxu0 0
    %1581 = vmatprep.subr.bf16.mxu0 0
    %1582 = vmatpush1.bf16.msra.mxu0 0
    %1583 = vmatprep.subr.bf16.mxu0 0
    %1584 = vmatpush1.bf16.msra.mxu0 0
    %1585 = vmatprep.subr.bf16.mxu0 0
    %1586 = vmatpush1.bf16.msra.mxu0 0
    %1587 = vmatprep.subr.bf16.mxu0 0
    %1588 = vmatpush1.bf16.msra.mxu0 0
    %1589 = vmatprep.subr.bf16.mxu0 0
    %1590 = vmatpush1.bf16.msra.mxu0 0
    %1591 = vmatprep.subr.bf16.mxu0 0
    %1592 = vmatpush1.bf16.msra.mxu0 0
    %1593 = vmatprep.subr.bf16.mxu0 0
    %1594 = vmatpush1.bf16.msra.mxu0 0
    %1595 = vmatprep.subr.bf16.mxu0 0
    %1596 = vmatpush1.bf16.msra.mxu0 0
    %1597 = vmatprep.subr.bf16.mxu0 0
    %1598 = vmatpush1.bf16.msra.mxu0 0
    %1599 = vmatprep.subr.bf16.mxu0 0
    %1600 = vmatpush1.bf16.msra.mxu0 0
    %1601 = vmatprep.mubr.bf16.mxu0 0
    %1602 = vmatmul.mubr.bf16.gmra.mrb[0].mxu0 %v1564
    %v1603 = vpop.f32.mrb[0].mxu0
    %v1604 = vadd.f32 0.0, %v1603
    %v1605 = vpop.f32.mrb[0].mxu0
    %v1606 = vpop.f32.mrb[0].mxu0
    %v1607 = vpop.f32.mrb[0].mxu0
    %1608 = vdwg.mxu0
    %1610 = vrot.lane.b32.xlu0 %v1506, 32
    %v1611 = vpop.permute.xlu0 %1610
    %1614 = vrot.lane.b32.xlu0 %v1555, 64
    %v1615 = vpop.permute.xlu0 %1614
    %1618 = vrot.lane.b32.xlu0 %v1604, 96
    %v1619 = vpop.permute.xlu0 %1618
    %v1621 = vsel %vm695, %v1456, %v1611
    %v1622 = vsel %vm1409, %v1621, %v1615
    %v1623 = vsel %vm1411, %v1622, %v1619
    %v1624 = vpack.c.bf16 %v1623, %v1412
    %v1625 = vld [vmem:[#allocation12 + $0xc] sm:$0xf]
    %v1626 = vld [vmem:[#allocation12 + $0x2c] sm:$0xf]
    %v1627 = vld [vmem:[#allocation12 + $0x4c] sm:$0xf]
    %v1628 = vld [vmem:[#allocation12 + $0x6c] sm:$0xf]
    %v1629 = vld [vmem:[#allocation12 + $0x8c] sm:$0xf]
    %v1630 = vld [vmem:[#allocation12 + $0xac] sm:$0xf]
    %v1631 = vld [vmem:[#allocation12 + $0xcc] sm:$0xf]
    %v1632 = vld [vmem:[#allocation12 + $0xec] sm:$0xf]
    %v1633 = vld [vmem:[#allocation12 + $0x10c] sm:$0xf]
    %v1634 = vld [vmem:[#allocation12 + $0x12c] sm:$0xf]
    %v1635 = vld [vmem:[#allocation12 + $0x14c] sm:$0xf]
    %v1636 = vld [vmem:[#allocation12 + $0x16c] sm:$0xf]
    %v1637 = vld [vmem:[#allocation12 + $0x18c] sm:$0xf]
    %v1638 = vld [vmem:[#allocation12 + $0x1ac] sm:$0xf]
    %v1639 = vld [vmem:[#allocation12 + $0x1cc] sm:$0xf]
    %v1640 = vld [vmem:[#allocation12 + $0x1ec] sm:$0xf]
    %v1641 = vld [vmem:[#allocation10 + $0x4] ss:$0 sm:$0xff]
    %v1658 = vunpack.c.l.b16 %v1625
    %v1659 = vunpack.c.l.b16 %v1626
    %v1660 = vunpack.c.l.b16 %v1627
    %v1661 = vunpack.c.l.b16 %v1628
    %v1662 = vunpack.c.l.b16 %v1629
    %v1663 = vunpack.c.l.b16 %v1630
    %v1664 = vunpack.c.l.b16 %v1631
    %v1665 = vunpack.c.l.b16 %v1632
    %v1666 = vunpack.c.l.b16 %v1633
    %v1667 = vunpack.c.l.b16 %v1634
    %v1668 = vunpack.c.l.b16 %v1635
    %v1669 = vunpack.c.l.b16 %v1636
    %v1670 = vunpack.c.l.b16 %v1637
    %v1671 = vunpack.c.l.b16 %v1638
    %v1672 = vunpack.c.l.b16 %v1639
    %v1673 = vunpack.c.l.b16 %v1640
    %v1674 = vpack.c.b16 %v1659, %v1658
    %v1675 = vpack.c.b16 %v1661, %v1660
    %v1676 = vpack.c.b16 %v1663, %v1662
    %v1677 = vpack.c.b16 %v1665, %v1664
    %v1678 = vpack.c.b16 %v1667, %v1666
    %v1679 = vpack.c.b16 %v1669, %v1668
    %v1680 = vpack.c.b16 %v1671, %v1670
    %v1681 = vpack.c.b16 %v1673, %v1672
    %1690 = vmatprep.subr.bf16.mxu0 0
    %1691 = vmatpush1.bf16.msra.mxu0 %v1674
    %1692 = vmatprep.subr.bf16.mxu0 0
    %1693 = vmatpush1.bf16.msra.mxu0 %v1675
    %1694 = vmatprep.subr.bf16.mxu0 0
    %1695 = vmatpush1.bf16.msra.mxu0 %v1676
    %1696 = vmatprep.subr.bf16.mxu0 0
    %1697 = vmatpush1.bf16.msra.mxu0 %v1677
    %1698 = vmatprep.subr.bf16.mxu0 0
    %1699 = vmatpush1.bf16.msra.mxu0 %v1678
    %1700 = vmatprep.subr.bf16.mxu0 0
    %1701 = vmatpush1.bf16.msra.mxu0 %v1679
    %1702 = vmatprep.subr.bf16.mxu0 0
    %1703 = vmatpush1.bf16.msra.mxu0 %v1680
    %1704 = vmatprep.subr.bf16.mxu0 0
    %1705 = vmatpush1.bf16.msra.mxu0 %v1681
    %1706 = vmatprep.subr.bf16.mxu0 0
    %1707 = vmatpush1.bf16.msra.mxu0 0
    %1708 = vmatprep.subr.bf16.mxu0 0
    %1709 = vmatpush1.bf16.msra.mxu0 0
    %1710 = vmatprep.subr.bf16.mxu0 0
    %1711 = vmatpush1.bf16.msra.mxu0 0
    %1712 = vmatprep.subr.bf16.mxu0 0
    %1713 = vmatpush1.bf16.msra.mxu0 0
    %1714 = vmatprep.subr.bf16.mxu0 0
    %1715 = vmatpush1.bf16.msra.mxu0 0
    %1716 = vmatprep.subr.bf16.mxu0 0
    %1717 = vmatpush1.bf16.msra.mxu0 0
    %1718 = vmatprep.subr.bf16.mxu0 0
    %1719 = vmatpush1.bf16.msra.mxu0 0
    %1720 = vmatprep.subr.bf16.mxu0 0
    %1721 = vmatpush1.bf16.msra.mxu0 0
    %1722 = vmatprep.mubr.bf16.mxu0 0
    %1723 = vmatmul.mubr.bf16.gmra.mrb[0].mxu0 %v1624
    %v1724 = vpop.f32.mrb[0].mxu0
    %v1725 = vadd.f32 %v1641, %v1724
    %v1726 = vpop.f32.mrb[0].mxu0
    %v1727 = vpop.f32.mrb[0].mxu0
    %v1728 = vadd.f32 %v1641, %v1727
    %v1729 = vpop.f32.mrb[0].mxu0
    %1730 = vdwg.mxu0
    %v1731 = vadd.f32 %v420, %v1725
    %v1732 = vadd.f32 %v421, %v1728
    %v1733 = vld [vmem:[#allocation10 + $0x5] ss:$0 sm:$0xff]
    %v1734 = vld [vmem:[#allocation10 + $0x6] ss:$0 sm:$0xff]
    %1735 = vadd.xlane.f32.xlu0 %v1731
    %v1736 = vpop.xlane.xlu0 %1735
    %1737 = vadd.xlane.f32.xlu0 %v1732
    %v1738 = vpop.xlane.xlu0 %1737
    %v1739 = vmul.f32 %v1736, %v399
    %v1740 = vmul.f32 %v1738, %v399
    %v1741 = vsub.f32 %v1731, %v1739
    %v1742 = vsub.f32 %v1732, %v1740
    %v1743 = vmul.f32 %v1741, %v1741
    %v1744 = vmul.f32 %v1742, %v1742
    %1745 = vadd.xlane.f32.xlu0 %v1743
    %v1746 = vpop.xlane.xlu0 %1745
    %1747 = vadd.xlane.f32.xlu0 %v1744
    %v1748 = vpop.xlane.xlu0 %1747
    %v1749 = vmul.f32 %v1746, %v399
    %v1750 = vmul.f32 %v1748, %v399
    %v1751 = vadd.f32 %v1749, 1e-05
    %v1752 = vadd.f32 %v1750, 1e-05
    %v1753 = vrsqrt.pop %v1751
    %v1754 = vrsqrt.pop %v1752
    %v1755 = vmul.f32 %v1741, %v1753
    %v1756 = vmul.f32 %v1742, %v1754
    %v1757 = vmul.f32 %v1755, %v1733
    %v1758 = vmul.f32 %v1756, %v1733
    %v1759 = vadd.f32 %v1757, %v1734
    %v1760 = vadd.f32 %v1758, %v1734
    %v1761 = vpack.c.bf16 %v1760, %v1759
    %v1762 = vld [vmem:[#allocation12 + $0x10] sm:$0xff]
    %v1763 = vld [vmem:[#allocation12 + $0x18] sm:$0xff]
    %v1764 = vld [vmem:[#allocation12 + $0x30] sm:$0xff]
    %v1765 = vld [vmem:[#allocation12 + $0x38] sm:$0xff]
    %v1766 = vld [vmem:[#allocation12 + $0x50] sm:$0xff]
    %v1767 = vld [vmem:[#allocation12 + $0x58] sm:$0xff]
    %v1768 = vld [vmem:[#allocation12 + $0x70] sm:$0xff]
    %v1769 = vld [vmem:[#allocation12 + $0x78] sm:$0xff]
    %v1770 = vld [vmem:[#allocation12 + $0x90] sm:$0xff]
    %v1771 = vld [vmem:[#allocation12 + $0x98] sm:$0xff]
    %v1772 = vld [vmem:[#allocation12 + $0xb0] sm:$0xff]
    %v1773 = vld [vmem:[#allocation12 + $0xb8] sm:$0xff]
    %v1774 = vld [vmem:[#allocation12 + $0xd0] sm:$0xff]
    %v1775 = vld [vmem:[#allocation12 + $0xd8] sm:$0xff]
    %v1776 = vld [vmem:[#allocation12 + $0xf0] sm:$0xff]
    %v1777 = vld [vmem:[#allocation12 + $0xf8] sm:$0xff]
    %v1778 = vld [vmem:[#allocation12 + $0x110] sm:$0xff]
    %v1779 = vld [vmem:[#allocation12 + $0x118] sm:$0xff]
    %v1780 = vld [vmem:[#allocation12 + $0x130] sm:$0xff]
    %v1781 = vld [vmem:[#allocation12 + $0x138] sm:$0xff]
    %v1782 = vld [vmem:[#allocation12 + $0x150] sm:$0xff]
    %v1783 = vld [vmem:[#allocation12 + $0x158] sm:$0xff]
    %v1784 = vld [vmem:[#allocation12 + $0x170] sm:$0xff]
    %v1785 = vld [vmem:[#allocation12 + $0x178] sm:$0xff]
    %v1786 = vld [vmem:[#allocation12 + $0x190] sm:$0xff]
    %v1787 = vld [vmem:[#allocation12 + $0x198] sm:$0xff]
    %v1788 = vld [vmem:[#allocation12 + $0x1b0] sm:$0xff]
    %v1789 = vld [vmem:[#allocation12 + $0x1b8] sm:$0xff]
    %v1790 = vld [vmem:[#allocation12 + $0x1d0] sm:$0xff]
    %v1791 = vld [vmem:[#allocation12 + $0x1d8] sm:$0xff]
    %v1792 = vld [vmem:[#allocation12 + $0x1f0] sm:$0xff]
    %v1793 = vld [vmem:[#allocation12 + $0x1f8] sm:$0xff]
    %s1794 = scalar_lea.vmem [#allocation10], 7
    %v1795 = vld [vmem:[%s1794] ss:$8 sm:$0xf]
    %v1797 = vlaneseq
    %v1798 = vshrl.u32 %v1797, 7
    %v1799 = vsub.s32 0, %v1798
    %v1800 = vrot.slane %v1795, %v1799
    %v1801 = vlaneseq
    %v1802 = vshrl.u32 %v1801, 7
    %v1803 = vsub.s32 1, %v1802
    %v1804 = vrot.slane %v1795, %v1803
    %v1805 = vlaneseq
    %v1806 = vshrl.u32 %v1805, 7
    %v1807 = vsub.s32 2, %v1806
    %v1808 = vrot.slane %v1795, %v1807
    %v1809 = vlaneseq
    %v1810 = vshrl.u32 %v1809, 7
    %v1811 = vsub.s32 3, %v1810
    %v1812 = vrot.slane %v1795, %v1811
    %v1849 = vunpack.c.l.b16 %v1762
    %v1850 = vunpack.c.h.b16 %v1762
    %v1851 = vunpack.c.l.b16 %v1763
    %v1852 = vunpack.c.h.b16 %v1763
    %v1853 = vunpack.c.l.b16 %v1764
    %v1854 = vunpack.c.h.b16 %v1764
    %v1855 = vunpack.c.l.b16 %v1765
    %v1856 = vunpack.c.h.b16 %v1765
    %v1857 = vunpack.c.l.b16 %v1766
    %v1858 = vunpack.c.h.b16 %v1766
    %v1859 = vunpack.c.l.b16 %v1767
    %v1860 = vunpack.c.h.b16 %v1767
    %v1861 = vunpack.c.l.b16 %v1768
    %v1862 = vunpack.c.h.b16 %v1768
    %v1863 = vunpack.c.l.b16 %v1769
    %v1864 = vunpack.c.h.b16 %v1769
    %v1865 = vunpack.c.l.b16 %v1770
    %v1866 = vunpack.c.h.b16 %v1770
    %v1867 = vunpack.c.l.b16 %v1771
    %v1868 = vunpack.c.h.b16 %v1771
    %v1869 = vunpack.c.l.b16 %v1772
    %v1870 = vunpack.c.h.b16 %v1772
    %v1871 = vunpack.c.l.b16 %v1773
    %v1872 = vunpack.c.h.b16 %v1773
    %v1873 = vunpack.c.l.b16 %v1774
    %v1874 = vunpack.c.h.b16 %v1774
    %v1875 = vunpack.c.l.b16 %v1775
    %v1876 = vunpack.c.h.b16 %v1775
    %v1877 = vunpack.c.l.b16 %v1776
    %v1878 = vunpack.c.h.b16 %v1776
    %v1879 = vunpack.c.l.b16 %v1777
    %v1880 = vunpack.c.h.b16 %v1777
    %v1881 = vunpack.c.l.b16 %v1778
    %v1882 = vunpack.c.h.b16 %v1778
    %v1883 = vunpack.c.l.b16 %v1779
    %v1884 = vunpack.c.h.b16 %v1779
    %v1885 = vunpack.c.l.b16 %v1780
    %v1886 = vunpack.c.h.b16 %v1780
    %v1887 = vunpack.c.l.b16 %v1781
    %v1888 = vunpack.c.h.b16 %v1781
    %v1889 = vunpack.c.l.b16 %v1782
    %v1890 = vunpack.c.h.b16 %v1782
    %v1891 = vunpack.c.l.b16 %v1783
    %v1892 = vunpack.c.h.b16 %v1783
    %v1893 = vunpack.c.l.b16 %v1784
    %v1894 = vunpack.c.h.b16 %v1784
    %v1895 = vunpack.c.l.b16 %v1785
    %v1896 = vunpack.c.h.b16 %v1785
    %v1897 = vunpack.c.l.b16 %v1786
    %v1898 = vunpack.c.h.b16 %v1786
    %v1899 = vunpack.c.l.b16 %v1787
    %v1900 = vunpack.c.h.b16 %v1787
    %v1901 = vunpack.c.l.b16 %v1788
    %v1902 = vunpack.c.h.b16 %v1788
    %v1903 = vunpack.c.l.b16 %v1789
    %v1904 = vunpack.c.h.b16 %v1789
    %v1905 = vunpack.c.l.b16 %v1790
    %v1906 = vunpack.c.h.b16 %v1790
    %v1907 = vunpack.c.l.b16 %v1791
    %v1908 = vunpack.c.h.b16 %v1791
    %v1909 = vunpack.c.l.b16 %v1792
    %v1910 = vunpack.c.h.b16 %v1792
    %v1911 = vunpack.c.l.b16 %v1793
    %v1912 = vunpack.c.h.b16 %v1793
    %v1913 = vpack.c.b16 %v1853, %v1849
    %v1914 = vpack.c.b16 %v1854, %v1850
    %v1915 = vpack.c.b16 %v1855, %v1851
    %v1916 = vpack.c.b16 %v1856, %v1852
    %v1917 = vpack.c.b16 %v1861, %v1857
    %v1918 = vpack.c.b16 %v1862, %v1858
    %v1919 = vpack.c.b16 %v1863, %v1859
    %v1920 = vpack.c.b16 %v1864, %v1860
    %v1921 = vpack.c.b16 %v1869, %v1865
    %v1922 = vpack.c.b16 %v1870, %v1866
    %v1923 = vpack.c.b16 %v1871, %v1867
    %v1924 = vpack.c.b16 %v1872, %v1868
    %v1925 = vpack.c.b16 %v1877, %v1873
    %v1926 = vpack.c.b16 %v1878, %v1874
    %v1927 = vpack.c.b16 %v1879, %v1875
    %v1928 = vpack.c.b16 %v1880, %v1876
    %v1929 = vpack.c.b16 %v1885, %v1881
    %v1930 = vpack.c.b16 %v1886, %v1882
    %v1931 = vpack.c.b16 %v1887, %v1883
    %v1932 = vpack.c.b16 %v1888, %v1884
    %v1933 = vpack.c.b16 %v1893, %v1889
    %v1934 = vpack.c.b16 %v1894, %v1890
    %v1935 = vpack.c.b16 %v1895, %v1891
    %v1936 = vpack.c.b16 %v1896, %v1892
    %v1937 = vpack.c.b16 %v1901, %v1897
    %v1938 = vpack.c.b16 %v1902, %v1898
    %v1939 = vpack.c.b16 %v1903, %v1899
    %v1940 = vpack.c.b16 %v1904, %v1900
    %v1941 = vpack.c.b16 %v1909, %v1905
    %v1942 = vpack.c.b16 %v1910, %v1906
    %v1943 = vpack.c.b16 %v1911, %v1907
    %v1944 = vpack.c.b16 %v1912, %v1908
    %1977 = vmatprep.subr.bf16.mxu0 %v1914
    %1978 = vmatpush1.bf16.msra.mxu0 %v1913
    %1979 = vmatprep.subr.bf16.mxu0 %v1918
    %1980 = vmatpush1.bf16.msra.mxu0 %v1917
    %1981 = vmatprep.subr.bf16.mxu0 %v1922
    %1982 = vmatpush1.bf16.msra.mxu0 %v1921
    %1983 = vmatprep.subr.bf16.mxu0 %v1926
    %1984 = vmatpush1.bf16.msra.mxu0 %v1925
    %1985 = vmatprep.subr.bf16.mxu0 %v1930
    %1986 = vmatpush1.bf16.msra.mxu0 %v1929
    %1987 = vmatprep.subr.bf16.mxu0 %v1934
    %1988 = vmatpush1.bf16.msra.mxu0 %v1933
    %1989 = vmatprep.subr.bf16.mxu0 %v1938
    %1990 = vmatpush1.bf16.msra.mxu0 %v1937
    %1991 = vmatprep.subr.bf16.mxu0 %v1942
    %1992 = vmatpush1.bf16.msra.mxu0 %v1941
    %1993 = vmatprep.subr.bf16.mxu0 0
    %1994 = vmatpush1.bf16.msra.mxu0 0
    %1995 = vmatprep.subr.bf16.mxu0 0
    %1996 = vmatpush1.bf16.msra.mxu0 0
    %1997 = vmatprep.subr.bf16.mxu0 0
    %1998 = vmatpush1.bf16.msra.mxu0 0
    %1999 = vmatprep.subr.bf16.mxu0 0
    %2000 = vmatpush1.bf16.msra.mxu0 0
    %2001 = vmatprep.subr.bf16.mxu0 0
    %2002 = vmatpush1.bf16.msra.mxu0 0
    %2003 = vmatprep.subr.bf16.mxu0 0
    %2004 = vmatpush1.bf16.msra.mxu0 0
    %2005 = vmatprep.subr.bf16.mxu0 0
    %2006 = vmatpush1.bf16.msra.mxu0 0
    %2007 = vmatprep.subr.bf16.mxu0 0
    %2008 = vmatpush1.bf16.msra.mxu0 0
    %2009 = vmatprep.mubr.bf16.mxu0 0
    %2010 = vmatmul.mubr.bf16.gmra.mrb[0].mxu0 %v1761
    %v2011 = vpop.f32.mrb[0].mxu0
    %v2012 = vadd.f32 %v1800, %v2011
    %v2013 = vpop.f32.mrb[0].mxu0
    %v2014 = vadd.f32 %v1804, %v2013
    %v2015 = vpop.f32.mrb[0].mxu0
    %v2016 = vadd.f32 %v1800, %v2015
    %v2017 = vpop.f32.mrb[0].mxu0
    %v2018 = vadd.f32 %v1804, %v2017
    %2019 = vdwg.mxu0
    %2020 = vmatprep.subr.bf16.mxu0 %v1916
    %2021 = vmatpush1.bf16.msra.mxu0 %v1915
    %2022 = vmatprep.subr.bf16.mxu0 %v1920
    %2023 = vmatpush1.bf16.msra.mxu0 %v1919
    %2024 = vmatprep.subr.bf16.mxu0 %v1924
    %2025 = vmatpush1.bf16.msra.mxu0 %v1923
    %2026 = vmatprep.subr.bf16.mxu0 %v1928
    %2027 = vmatpush1.bf16.msra.mxu0 %v1927
    %2028 = vmatprep.subr.bf16.mxu0 %v1932
    %2029 = vmatpush1.bf16.msra.mxu0 %v1931
    %2030 = vmatprep.subr.bf16.mxu0 %v1936
    %2031 = vmatpush1.bf16.msra.mxu0 %v1935
    %2032 = vmatprep.subr.bf16.mxu0 %v1940
    %2033 = vmatpush1.bf16.msra.mxu0 %v1939
    %2034 = vmatprep.subr.bf16.mxu0 %v1944
    %2035 = vmatpush1.bf16.msra.mxu0 %v1943
    %2036 = vmatprep.subr.bf16.mxu0 0
    %2037 = vmatpush1.bf16.msra.mxu0 0
    %2038 = vmatprep.subr.bf16.mxu0 0
    %2039 = vmatpush1.bf16.msra.mxu0 0
    %2040 = vmatprep.subr.bf16.mxu0 0
    %2041 = vmatpush1.bf16.msra.mxu0 0
    %2042 = vmatprep.subr.bf16.mxu0 0
    %2043 = vmatpush1.bf16.msra.mxu0 0
    %2044 = vmatprep.subr.bf16.mxu0 0
    %2045 = vmatpush1.bf16.msra.mxu0 0
    %2046 = vmatprep.subr.bf16.mxu0 0
    %2047 = vmatpush1.bf16.msra.mxu0 0
    %2048 = vmatprep.subr.bf16.mxu0 0
    %2049 = vmatpush1.bf16.msra.mxu0 0
    %2050 = vmatprep.subr.bf16.mxu0 0
    %2051 = vmatpush1.bf16.msra.mxu0 0
    %2052 = vmatprep.mubr.bf16.mxu0 0
    %2053 = vmatmul.mubr.bf16.gmra.mrb[0].mxu0 %v1761
    %v2054 = vpop.f32.mrb[0].mxu0
    %v2055 = vadd.f32 %v1808, %v2054
    %v2056 = vpop.f32.mrb[0].mxu0
    %v2057 = vadd.f32 %v1812, %v2056
    %v2058 = vpop.f32.mrb[0].mxu0
    %v2059 = vadd.f32 %v1808, %v2058
    %v2060 = vpop.f32.mrb[0].mxu0
    %v2061 = vadd.f32 %v1812, %v2060
    %2062 = vdwg.mxu0
    %v2063 = vmul.f32 %v2012, 0.5
    %v2064 = vmul.f32 %v2014, 0.5
    %v2065 = vmul.f32 %v2055, 0.5
    %v2066 = vmul.f32 %v2057, 0.5
    %v2067 = vmul.f32 %v2016, 0.5
    %v2068 = vmul.f32 %v2018, 0.5
    %v2069 = vmul.f32 %v2059, 0.5
    %v2070 = vmul.f32 %v2061, 0.5
    %v2071 = vmul.f32 %v2012, 0.044715
    %v2072 = vmul.f32 %v2014, 0.044715
    %v2073 = vmul.f32 %v2055, 0.044715
    %v2074 = vmul.f32 %v2057, 0.044715
    %v2075 = vmul.f32 %v2016, 0.044715
    %v2076 = vmul.f32 %v2018, 0.044715
    %v2077 = vmul.f32 %v2059, 0.044715
    %v2078 = vmul.f32 %v2061, 0.044715
    %v2079 = vmul.f32 %v2071, %v2012
    %v2080 = vmul.f32 %v2072, %v2014
    %v2081 = vmul.f32 %v2073, %v2055
    %v2082 = vmul.f32 %v2074, %v2057
    %v2083 = vmul.f32 %v2075, %v2016
    %v2084 = vmul.f32 %v2076, %v2018
    %v2085 = vmul.f32 %v2077, %v2059
    %v2086 = vmul.f32 %v2078, %v2061
    %v2087 = vmul.f32 %v2079, %v2012
    %v2088 = vmul.f32 %v2080, %v2014
    %v2089 = vmul.f32 %v2081, %v2055
    %v2090 = vmul.f32 %v2082, %v2057
    %v2091 = vmul.f32 %v2083, %v2016
    %v2092 = vmul.f32 %v2084, %v2018
    %v2093 = vmul.f32 %v2085, %v2059
    %v2094 = vmul.f32 %v2086, %v2061
    %v2095 = vadd.f32 %v2012, %v2087
    %v2096 = vadd.f32 %v2014, %v2088
    %v2097 = vadd.f32 %v2055, %v2089
    %v2098 = vadd.f32 %v2057, %v2090
    %v2099 = vadd.f32 %v2016, %v2091
    %v2100 = vadd.f32 %v2018, %v2092
    %v2101 = vadd.f32 %v2059, %v2093
    %v2102 = vadd.f32 %v2061, %v2094
    %v2103 = vmul.f32 %v2095, 0.7978846
    %v2104 = vmul.f32 %v2096, 0.7978846
    %v2105 = vmul.f32 %v2097, 0.7978846
    %v2106 = vmul.f32 %v2098, 0.7978846
    %v2107 = vmul.f32 %v2099, 0.7978846
    %v2108 = vmul.f32 %v2100, 0.7978846
    %v2109 = vmul.f32 %v2101, 0.7978846
    %v2110 = vmul.f32 %v2102, 0.7978846
    %v2111 = vtanh.pop %v2103
    %v2112 = vtanh.pop %v2104
    %v2113 = vtanh.pop %v2105
    %v2114 = vtanh.pop %v2106
    %v2115 = vtanh.pop %v2107
    %v2116 = vtanh.pop %v2108
    %v2117 = vtanh.pop %v2109
    %v2118 = vtanh.pop %v2110
    %v2119 = vadd.f32 %v2111, 1.0
    %v2120 = vadd.f32 %v2112, 1.0
    %v2121 = vadd.f32 %v2113, 1.0
    %v2122 = vadd.f32 %v2114, 1.0
    %v2123 = vadd.f32 %v2115, 1.0
    %v2124 = vadd.f32 %v2116, 1.0
    %v2125 = vadd.f32 %v2117, 1.0
    %v2126 = vadd.f32 %v2118, 1.0
    %v2127 = vmul.f32 %v2063, %v2119
    %v2128 = vmul.f32 %v2064, %v2120
    %v2129 = vmul.f32 %v2065, %v2121
    %v2130 = vmul.f32 %v2066, %v2122
    %v2131 = vmul.f32 %v2067, %v2123
    %v2132 = vmul.f32 %v2068, %v2124
    %v2133 = vmul.f32 %v2069, %v2125
    %v2134 = vmul.f32 %v2070, %v2126
    %v2135 = vpack.c.bf16 %v2131, %v2127
    %v2136 = vpack.c.bf16 %v2132, %v2128
    %v2137 = vpack.c.bf16 %v2133, %v2129
    %v2138 = vpack.c.bf16 %v2134, %v2130
    %v2139 = vld [vmem:[#allocation13] sm:$0xf]
    %v2140 = vld [vmem:[#allocation13 + $0x4] sm:$0xf]
    %v2141 = vld [vmem:[#allocation13 + $0x8] sm:$0xf]
    %v2142 = vld [vmem:[#allocation13 + $0xc] sm:$0xf]
    %v2143 = vld [vmem:[#allocation13 + $0x10] sm:$0xf]
    %v2144 = vld [vmem:[#allocation13 + $0x14] sm:$0xf]
    %v2145 = vld [vmem:[#allocation13 + $0x18] sm:$0xf]
    %v2146 = vld [vmem:[#allocation13 + $0x1c] sm:$0xf]
    %v2147 = vld [vmem:[#allocation13 + $0x20] sm:$0xf]
    %v2148 = vld [vmem:[#allocation13 + $0x24] sm:$0xf]
    %v2149 = vld [vmem:[#allocation13 + $0x28] sm:$0xf]
    %v2150 = vld [vmem:[#allocation13 + $0x2c] sm:$0xf]
    %v2151 = vld [vmem:[#allocation13 + $0x30] sm:$0xf]
    %v2152 = vld [vmem:[#allocation13 + $0x34] sm:$0xf]
    %v2153 = vld [vmem:[#allocation13 + $0x38] sm:$0xf]
    %v2154 = vld [vmem:[#allocation13 + $0x3c] sm:$0xf]
    %v2155 = vld [vmem:[#allocation13 + $0x40] sm:$0xf]
    %v2156 = vld [vmem:[#allocation13 + $0x44] sm:$0xf]
    %v2157 = vld [vmem:[#allocation13 + $0x48] sm:$0xf]
    %v2158 = vld [vmem:[#allocation13 + $0x4c] sm:$0xf]
    %v2159 = vld [vmem:[#allocation13 + $0x50] sm:$0xf]
    %v2160 = vld [vmem:[#allocation13 + $0x54] sm:$0xf]
    %v2161 = vld [vmem:[#allocation13 + $0x58] sm:$0xf]
    %v2162 = vld [vmem:[#allocation13 + $0x5c] sm:$0xf]
    %v2163 = vld [vmem:[#allocation13 + $0x60] sm:$0xf]
    %v2164 = vld [vmem:[#allocation13 + $0x64] sm:$0xf]
    %v2165 = vld [vmem:[#allocation13 + $0x68] sm:$0xf]
    %v2166 = vld [vmem:[#allocation13 + $0x6c] sm:$0xf]
    %v2167 = vld [vmem:[#allocation13 + $0x70] sm:$0xf]
    %v2168 = vld [vmem:[#allocation13 + $0x74] sm:$0xf]
    %v2169 = vld [vmem:[#allocation13 + $0x78] sm:$0xf]
    %v2170 = vld [vmem:[#allocation13 + $0x7c] sm:$0xf]
    %v2171 = vld [vmem:[#allocation13 + $0x80] sm:$0xf]
    %v2172 = vld [vmem:[#allocation13 + $0x84] sm:$0xf]
    %v2173 = vld [vmem:[#allocation13 + $0x88] sm:$0xf]
    %v2174 = vld [vmem:[#allocation13 + $0x8c] sm:$0xf]
    %v2175 = vld [vmem:[#allocation13 + $0x90] sm:$0xf]
    %v2176 = vld [vmem:[#allocation13 + $0x94] sm:$0xf]
    %v2177 = vld [vmem:[#allocation13 + $0x98] sm:$0xf]
    %v2178 = vld [vmem:[#allocation13 + $0x9c] sm:$0xf]
    %v2179 = vld [vmem:[#allocation13 + $0xa0] sm:$0xf]
    %v2180 = vld [vmem:[#allocation13 + $0xa4] sm:$0xf]
    %v2181 = vld [vmem:[#allocation13 + $0xa8] sm:$0xf]
    %v2182 = vld [vmem:[#allocation13 + $0xac] sm:$0xf]
    %v2183 = vld [vmem:[#allocation13 + $0xb0] sm:$0xf]
    %v2184 = vld [vmem:[#allocation13 + $0xb4] sm:$0xf]
    %v2185 = vld [vmem:[#allocation13 + $0xb8] sm:$0xf]
    %v2186 = vld [vmem:[#allocation13 + $0xbc] sm:$0xf]
    %v2187 = vld [vmem:[#allocation13 + $0xc0] sm:$0xf]
    %v2188 = vld [vmem:[#allocation13 + $0xc4] sm:$0xf]
    %v2189 = vld [vmem:[#allocation13 + $0xc8] sm:$0xf]
    %v2190 = vld [vmem:[#allocation13 + $0xcc] sm:$0xf]
    %v2191 = vld [vmem:[#allocation13 + $0xd0] sm:$0xf]
    %v2192 = vld [vmem:[#allocation13 + $0xd4] sm:$0xf]
    %v2193 = vld [vmem:[#allocation13 + $0xd8] sm:$0xf]
    %v2194 = vld [vmem:[#allocation13 + $0xdc] sm:$0xf]
    %v2195 = vld [vmem:[#allocation13 + $0xe0] sm:$0xf]
    %v2196 = vld [vmem:[#allocation13 + $0xe4] sm:$0xf]
    %v2197 = vld [vmem:[#allocation13 + $0xe8] sm:$0xf]
    %v2198 = vld [vmem:[#allocation13 + $0xec] sm:$0xf]
    %v2199 = vld [vmem:[#allocation13 + $0xf0] sm:$0xf]
    %v2200 = vld [vmem:[#allocation13 + $0xf4] sm:$0xf]
    %v2201 = vld [vmem:[#allocation13 + $0xf8] sm:$0xf]
    %v2202 = vld [vmem:[#allocation13 + $0xfc] sm:$0xf]
    %v2203 = vld [vmem:[#allocation10 + $0x20] ss:$0 sm:$0xff]
    %v2268 = vunpack.c.l.b16 %v2139
    %v2269 = vunpack.c.l.b16 %v2140
    %v2270 = vunpack.c.l.b16 %v2141
    %v2271 = vunpack.c.l.b16 %v2142
    %v2272 = vunpack.c.l.b16 %v2143
    %v2273 = vunpack.c.l.b16 %v2144
    %v2274 = vunpack.c.l.b16 %v2145
    %v2275 = vunpack.c.l.b16 %v2146
    %v2276 = vunpack.c.l.b16 %v2147
    %v2277 = vunpack.c.l.b16 %v2148
    %v2278 = vunpack.c.l.b16 %v2149
    %v2279 = vunpack.c.l.b16 %v2150
    %v2280 = vunpack.c.l.b16 %v2151
    %v2281 = vunpack.c.l.b16 %v2152
    %v2282 = vunpack.c.l.b16 %v2153
    %v2283 = vunpack.c.l.b16 %v2154
    %v2284 = vunpack.c.l.b16 %v2155
    %v2285 = vunpack.c.l.b16 %v2156
    %v2286 = vunpack.c.l.b16 %v2157
    %v2287 = vunpack.c.l.b16 %v2158
    %v2288 = vunpack.c.l.b16 %v2159
    %v2289 = vunpack.c.l.b16 %v2160
    %v2290 = vunpack.c.l.b16 %v2161
    %v2291 = vunpack.c.l.b16 %v2162
    %v2292 = vunpack.c.l.b16 %v2163
    %v2293 = vunpack.c.l.b16 %v2164
    %v2294 = vunpack.c.l.b16 %v2165
    %v2295 = vunpack.c.l.b16 %v2166
    %v2296 = vunpack.c.l.b16 %v2167
    %v2297 = vunpack.c.l.b16 %v2168
    %v2298 = vunpack.c.l.b16 %v2169
    %v2299 = vunpack.c.l.b16 %v2170
    %v2300 = vunpack.c.l.b16 %v2171
    %v2301 = vunpack.c.l.b16 %v2172
    %v2302 = vunpack.c.l.b16 %v2173
    %v2303 = vunpack.c.l.b16 %v2174
    %v2304 = vunpack.c.l.b16 %v2175
    %v2305 = vunpack.c.l.b16 %v2176
    %v2306 = vunpack.c.l.b16 %v2177
    %v2307 = vunpack.c.l.b16 %v2178
    %v2308 = vunpack.c.l.b16 %v2179
    %v2309 = vunpack.c.l.b16 %v2180
    %v2310 = vunpack.c.l.b16 %v2181
    %v2311 = vunpack.c.l.b16 %v2182
    %v2312 = vunpack.c.l.b16 %v2183
    %v2313 = vunpack.c.l.b16 %v2184
    %v2314 = vunpack.c.l.b16 %v2185
    %v2315 = vunpack.c.l.b16 %v2186
    %v2316 = vunpack.c.l.b16 %v2187
    %v2317 = vunpack.c.l.b16 %v2188
    %v2318 = vunpack.c.l.b16 %v2189
    %v2319 = vunpack.c.l.b16 %v2190
    %v2320 = vunpack.c.l.b16 %v2191
    %v2321 = vunpack.c.l.b16 %v2192
    %v2322 = vunpack.c.l.b16 %v2193
    %v2323 = vunpack.c.l.b16 %v2194
    %v2324 = vunpack.c.l.b16 %v2195
    %v2325 = vunpack.c.l.b16 %v2196
    %v2326 = vunpack.c.l.b16 %v2197
    %v2327 = vunpack.c.l.b16 %v2198
    %v2328 = vunpack.c.l.b16 %v2199
    %v2329 = vunpack.c.l.b16 %v2200
    %v2330 = vunpack.c.l.b16 %v2201
    %v2331 = vunpack.c.l.b16 %v2202
    %v2332 = vpack.c.b16 %v2269, %v2268
    %v2333 = vpack.c.b16 %v2271, %v2270
    %v2334 = vpack.c.b16 %v2273, %v2272
    %v2335 = vpack.c.b16 %v2275, %v2274
    %v2336 = vpack.c.b16 %v2277, %v2276
    %v2337 = vpack.c.b16 %v2279, %v2278
    %v2338 = vpack.c.b16 %v2281, %v2280
    %v2339 = vpack.c.b16 %v2283, %v2282
    %v2340 = vpack.c.b16 %v2285, %v2284
    %v2341 = vpack.c.b16 %v2287, %v2286
    %v2342 = vpack.c.b16 %v2289, %v2288
    %v2343 = vpack.c.b16 %v2291, %v2290
    %v2344 = vpack.c.b16 %v2293, %v2292
    %v2345 = vpack.c.b16 %v2295, %v2294
    %v2346 = vpack.c.b16 %v2297, %v2296
    %v2347 = vpack.c.b16 %v2299, %v2298
    %v2348 = vpack.c.b16 %v2301, %v2300
    %v2349 = vpack.c.b16 %v2303, %v2302
    %v2350 = vpack.c.b16 %v2305, %v2304
    %v2351 = vpack.c.b16 %v2307, %v2306
    %v2352 = vpack.c.b16 %v2309, %v2308
    %v2353 = vpack.c.b16 %v2311, %v2310
    %v2354 = vpack.c.b16 %v2313, %v2312
    %v2355 = vpack.c.b16 %v2315, %v2314
    %v2356 = vpack.c.b16 %v2317, %v2316
    %v2357 = vpack.c.b16 %v2319, %v2318
    %v2358 = vpack.c.b16 %v2321, %v2320
    %v2359 = vpack.c.b16 %v2323, %v2322
    %v2360 = vpack.c.b16 %v2325, %v2324
    %v2361 = vpack.c.b16 %v2327, %v2326
    %v2362 = vpack.c.b16 %v2329, %v2328
    %v2363 = vpack.c.b16 %v2331, %v2330
    %2396 = vmatprep.subr.bf16.mxu0 0
    %2397 = vmatpush1.bf16.msra.mxu0 %v2332
    %2398 = vmatprep.subr.bf16.mxu0 0
    %2399 = vmatpush1.bf16.msra.mxu0 %v2333
    %2400 = vmatprep.subr.bf16.mxu0 0
    %2401 = vmatpush1.bf16.msra.mxu0 %v2334
    %2402 = vmatprep.subr.bf16.mxu0 0
    %2403 = vmatpush1.bf16.msra.mxu0 %v2335
    %2404 = vmatprep.subr.bf16.mxu0 0
    %2405 = vmatpush1.bf16.msra.mxu0 %v2336
    %2406 = vmatprep.subr.bf16.mxu0 0
    %2407 = vmatpush1.bf16.msra.mxu0 %v2337
    %2408 = vmatprep.subr.bf16.mxu0 0
    %2409 = vmatpush1.bf16.msra.mxu0 %v2338
    %2410 = vmatprep.subr.bf16.mxu0 0
    %2411 = vmatpush1.bf16.msra.mxu0 %v2339
    %2412 = vmatprep.subr.bf16.mxu0 0
    %2413 = vmatpush1.bf16.msra.mxu0 %v2340
    %2414 = vmatprep.subr.bf16.mxu0 0
    %2415 = vmatpush1.bf16.msra.mxu0 %v2341
    %2416 = vmatprep.subr.bf16.mxu0 0
    %2417 = vmatpush1.bf16.msra.mxu0 %v2342
    %2418 = vmatprep.subr.bf16.mxu0 0
    %2419 = vmatpush1.bf16.msra.mxu0 %v2343
    %2420 = vmatprep.subr.bf16.mxu0 0
    %2421 = vmatpush1.bf16.msra.mxu0 %v2344
    %2422 = vmatprep.subr.bf16.mxu0 0
    %2423 = vmatpush1.bf16.msra.mxu0 %v2345
    %2424 = vmatprep.subr.bf16.mxu0 0
    %2425 = vmatpush1.bf16.msra.mxu0 %v2346
    %2426 = vmatprep.subr.bf16.mxu0 0
    %2427 = vmatpush1.bf16.msra.mxu0 %v2347
    %2428 = vmatprep.mubr.bf16.mxu0 %v2136
    %2429 = vmatmul.mubr.bf16.gmra.mrb[0].mxu0 %v2135
    %v2430 = vpop.f32.mrb[0].mxu0
    %v2431 = vadd.f32 %v2203, %v2430
    %v2432 = vpop.f32.mrb[0].mxu0
    %v2433 = vpop.f32.mrb[0].mxu0
    %v2434 = vadd.f32 %v2203, %v2433
    %v2435 = vpop.f32.mrb[0].mxu0
    %2436 = vdwg.mxu0
    %2437 = vmatprep.subr.bf16.mxu0 0
    %2438 = vmatpush1.bf16.msra.mxu0 %v2348
    %2439 = vmatprep.subr.bf16.mxu0 0
    %2440 = vmatpush1.bf16.msra.mxu0 %v2349
    %2441 = vmatprep.subr.bf16.mxu0 0
    %2442 = vmatpush1.bf16.msra.mxu0 %v2350
    %2443 = vmatprep.subr.bf16.mxu0 0
    %2444 = vmatpush1.bf16.msra.mxu0 %v2351
    %2445 = vmatprep.subr.bf16.mxu0 0
    %2446 = vmatpush1.bf16.msra.mxu0 %v2352
    %2447 = vmatprep.subr.bf16.mxu0 0
    %2448 = vmatpush1.bf16.msra.mxu0 %v2353
    %2449 = vmatprep.subr.bf16.mxu0 0
    %2450 = vmatpush1.bf16.msra.mxu0 %v2354
    %2451 = vmatprep.subr.bf16.mxu0 0
    %2452 = vmatpush1.bf16.msra.mxu0 %v2355
    %2453 = vmatprep.subr.bf16.mxu0 0
    %2454 = vmatpush1.bf16.msra.mxu0 %v2356
    %2455 = vmatprep.subr.bf16.mxu0 0
    %2456 = vmatpush1.bf16.msra.mxu0 %v2357
    %2457 = vmatprep.subr.bf16.mxu0 0
    %2458 = vmatpush1.bf16.msra.mxu0 %v2358
    %2459 = vmatprep.subr.bf16.mxu0 0
    %2460 = vmatpush1.bf16.msra.mxu0 %v2359
    %2461 = vmatprep.subr.bf16.mxu0 0
    %2462 = vmatpush1.bf16.msra.mxu0 %v2360
    %2463 = vmatprep.subr.bf16.mxu0 0
    %2464 = vmatpush1.bf16.msra.mxu0 %v2361
    %2465 = vmatprep.subr.bf16.mxu0 0
    %2466 = vmatpush1.bf16.msra.mxu0 %v2362
    %2467 = vmatprep.subr.bf16.mxu0 0
    %2468 = vmatpush1.bf16.msra.mxu0 %v2363
    %2469 = vmatprep.mubr.bf16.mxu0 %v2138
    %2470 = vmatmul.mubr.bf16.gmra.mrb[0].mxu0 %v2137
    %v2471 = vpop.f32.mrb[0].mxu0
    %v2472 = vadd.f32 %v2431, %v2471
    %v2473 = vpop.f32.mrb[0].mxu0
    %v2474 = vpop.f32.mrb[0].mxu0
    %v2475 = vadd.f32 %v2434, %v2474
    %v2476 = vpop.f32.mrb[0].mxu0
    %2477 = vdwg.mxu0
    %v2478 = vadd.f32 %v1759, %v2472
    %v2479 = vadd.f32 %v1760, %v2475
    %v2480 = vld [vmem:[#allocation10 + $0x21] ss:$0 sm:$0xff]
    %v2481 = vld [vmem:[#allocation10 + $0x22] ss:$0 sm:$0xff]
    %2482 = vadd.xlane.f32.xlu0 %v2478
    %v2483 = vpop.xlane.xlu0 %2482
    %2484 = vadd.xlane.f32.xlu0 %v2479
    %v2485 = vpop.xlane.xlu0 %2484
    %v2486 = vmul.f32 %v2483, %v399
    %v2487 = vmul.f32 %v2485, %v399
    %v2488 = vsub.f32 %v2478, %v2486
    %v2489 = vsub.f32 %v2479, %v2487
    %v2490 = vmul.f32 %v2488, %v2488
    %v2491 = vmul.f32 %v2489, %v2489
    %2492 = vadd.xlane.f32.xlu0 %v2490
    %v2493 = vpop.xlane.xlu0 %2492
    %2494 = vadd.xlane.f32.xlu0 %v2491
    %v2495 = vpop.xlane.xlu0 %2494
    %v2496 = vmul.f32 %v2493, %v399
    %v2497 = vmul.f32 %v2495, %v399
    %v2498 = vadd.f32 %v2496, 1e-05
    %v2499 = vadd.f32 %v2497, 1e-05
    %v2500 = vrsqrt.pop %v2498
    %v2501 = vrsqrt.pop %v2499
    %v2502 = vmul.f32 %v2488, %v2500
    %v2503 = vmul.f32 %v2489, %v2501
    %v2504 = vmul.f32 %v2502, %v2480
    %v2505 = vmul.f32 %v2503, %v2480
    %v2506 = vadd.f32 %v2504, %v2481
    %v2507 = vadd.f32 %v2505, %v2481
    %v2508 = vpack.c.bf16 %v2507, %v2506
    %s2509 = scalar_lea.vmem [#allocation12], 512
    %v2510 = vld [vmem:[%s2509] sm:$0xff]
    %v2511 = vld [vmem:[%s2509 + $0x8] sm:$0xf]
    %v2512 = vld [vmem:[%s2509 + $0x20] sm:$0xff]
    %v2513 = vld [vmem:[%s2509 + $0x28] sm:$0xf]
    %v2514 = vld [vmem:[%s2509 + $0x40] sm:$0xff]
    %v2515 = vld [vmem:[%s2509 + $0x48] sm:$0xf]
    %v2516 = vld [vmem:[%s2509 + $0x60] sm:$0xff]
    %v2517 = vld [vmem:[%s2509 + $0x68] sm:$0xf]
    %v2518 = vld [vmem:[%s2509 + $0x80] sm:$0xff]
    %v2519 = vld [vmem:[%s2509 + $0x88] sm:$0xf]
    %v2520 = vld [vmem:[%s2509 + $0xa0] sm:$0xff]
    %v2521 = vld [vmem:[%s2509 + $0xa8] sm:$0xf]
    %v2522 = vld [vmem:[%s2509 + $0xc0] sm:$0xff]
    %v2523 = vld [vmem:[%s2509 + $0xc8] sm:$0xf]
    %v2524 = vld [vmem:[%s2509 + $0xe0] sm:$0xff]
    %v2525 = vld [vmem:[%s2509 + $0xe8] sm:$0xf]
    %v2526 = vld [vmem:[%s2509 + $0x100] sm:$0xff]
    %v2527 = vld [vmem:[%s2509 + $0x108] sm:$0xf]
    %v2528 = vld [vmem:[%s2509 + $0x120] sm:$0xff]
    %v2529 = vld [vmem:[%s2509 + $0x128] sm:$0xf]
    %v2530 = vld [vmem:[%s2509 + $0x140] sm:$0xff]
    %v2531 = vld [vmem:[%s2509 + $0x148] sm:$0xf]
    %v2532 = vld [vmem:[%s2509 + $0x160] sm:$0xff]
    %v2533 = vld [vmem:[%s2509 + $0x168] sm:$0xf]
    %v2534 = vld [vmem:[%s2509 + $0x180] sm:$0xff]
    %v2535 = vld [vmem:[%s2509 + $0x188] sm:$0xf]
    %v2536 = vld [vmem:[%s2509 + $0x1a0] sm:$0xff]
    %v2537 = vld [vmem:[%s2509 + $0x1a8] sm:$0xf]
    %v2538 = vld [vmem:[%s2509 + $0x1c0] sm:$0xff]
    %v2539 = vld [vmem:[%s2509 + $0x1c8] sm:$0xf]
    %v2540 = vld [vmem:[%s2509 + $0x1e0] sm:$0xff]
    %v2541 = vld [vmem:[%s2509 + $0x1e8] sm:$0xf]
    %s2542 = scalar_lea.vmem [#allocation10], 35
    %v2543 = vld [vmem:[%s2542] ss:$8 sm:$0x7]
    %v2545 = vlaneseq
    %v2546 = vshrl.u32 %v2545, 7
    %v2547 = vsub.s32 0, %v2546
    %v2548 = vrot.slane %v2543, %v2547
    %v2549 = vlaneseq
    %v2550 = vshrl.u32 %v2549, 7
    %v2551 = vsub.s32 1, %v2550
    %v2552 = vrot.slane %v2543, %v2551
    %v2553 = vlaneseq
    %v2554 = vshrl.u32 %v2553, 7
    %v2555 = vsub.s32 2, %v2554
    %v2556 = vrot.slane %v2543, %v2555
    %v2592 = vunpack.c.l.b16 %v2510
    %v2593 = vunpack.c.h.b16 %v2510
    %v2594 = vunpack.c.l.b16 %v2511
    %v2595 = vunpack.c.l.b16 %v2512
    %v2596 = vunpack.c.h.b16 %v2512
    %v2597 = vunpack.c.l.b16 %v2513
    %v2598 = vunpack.c.l.b16 %v2514
    %v2599 = vunpack.c.h.b16 %v2514
    %v2600 = vunpack.c.l.b16 %v2515
    %v2601 = vunpack.c.l.b16 %v2516
    %v2602 = vunpack.c.h.b16 %v2516
    %v2603 = vunpack.c.l.b16 %v2517
    %v2604 = vunpack.c.l.b16 %v2518
    %v2605 = vunpack.c.h.b16 %v2518
    %v2606 = vunpack.c.l.b16 %v2519
    %v2607 = vunpack.c.l.b16 %v2520
    %v2608 = vunpack.c.h.b16 %v2520
    %v2609 = vunpack.c.l.b16 %v2521
    %v2610 = vunpack.c.l.b16 %v2522
    %v2611 = vunpack.c.h.b16 %v2522
    %v2612 = vunpack.c.l.b16 %v2523
    %v2613 = vunpack.c.l.b16 %v2524
    %v2614 = vunpack.c.h.b16 %v2524
    %v2615 = vunpack.c.l.b16 %v2525
    %v2616 = vunpack.c.l.b16 %v2526
    %v2617 = vunpack.c.h.b16 %v2526
    %v2618 = vunpack.c.l.b16 %v2527
    %v2619 = vunpack.c.l.b16 %v2528
    %v2620 = vunpack.c.h.b16 %v2528
    %v2621 = vunpack.c.l.b16 %v2529
    %v2622 = vunpack.c.l.b16 %v2530
    %v2623 = vunpack.c.h.b16 %v2530
    %v2624 = vunpack.c.l.b16 %v2531
    %v2625 = vunpack.c.l.b16 %v2532
    %v2626 = vunpack.c.h.b16 %v2532
    %v2627 = vunpack.c.l.b16 %v2533
    %v2628 = vunpack.c.l.b16 %v2534
    %v2629 = vunpack.c.h.b16 %v2534
    %v2630 = vunpack.c.l.b16 %v2535
    %v2631 = vunpack.c.l.b16 %v2536
    %v2632 = vunpack.c.h.b16 %v2536
    %v2633 = vunpack.c.l.b16 %v2537
    %v2634 = vunpack.c.l.b16 %v2538
    %v2635 = vunpack.c.h.b16 %v2538
    %v2636 = vunpack.c.l.b16 %v2539
    %v2637 = vunpack.c.l.b16 %v2540
    %v2638 = vunpack.c.h.b16 %v2540
    %v2639 = vunpack.c.l.b16 %v2541
    %v2640 = vpack.c.b16 %v2595, %v2592
    %v2641 = vpack.c.b16 %v2596, %v2593
    %v2642 = vpack.c.b16 %v2597, %v2594
    %v2643 = vpack.c.b16 %v2601, %v2598
    %v2644 = vpack.c.b16 %v2602, %v2599
    %v2645 = vpack.c.b16 %v2603, %v2600
    %v2646 = vpack.c.b16 %v2607, %v2604
    %v2647 = vpack.c.b16 %v2608, %v2605
    %v2648 = vpack.c.b16 %v2609, %v2606
    %v2649 = vpack.c.b16 %v2613, %v2610
    %v2650 = vpack.c.b16 %v2614, %v2611
    %v2651 = vpack.c.b16 %v2615, %v2612
    %v2652 = vpack.c.b16 %v2619, %v2616
    %v2653 = vpack.c.b16 %v2620, %v2617
    %v2654 = vpack.c.b16 %v2621, %v2618
    %v2655 = vpack.c.b16 %v2625, %v2622
    %v2656 = vpack.c.b16 %v2626, %v2623
    %v2657 = vpack.c.b16 %v2627, %v2624
    %v2658 = vpack.c.b16 %v2631, %v2628
    %v2659 = vpack.c.b16 %v2632, %v2629
    %v2660 = vpack.c.b16 %v2633, %v2630
    %v2661 = vpack.c.b16 %v2637, %v2634
    %v2662 = vpack.c.b16 %v2638, %v2635
    %v2663 = vpack.c.b16 %v2639, %v2636
    %2688 = vmatprep.subr.bf16.mxu0 %v2641
    %2689 = vmatpush1.bf16.msra.mxu0 %v2640
    %2690 = vmatprep.subr.bf16.mxu0 %v2644
    %2691 = vmatpush1.bf16.msra.mxu0 %v2643
    %2692 = vmatprep.subr.bf16.mxu0 %v2647
    %2693 = vmatpush1.bf16.msra.mxu0 %v2646
    %2694 = vmatprep.subr.bf16.mxu0 %v2650
    %2695 = vmatpush1.bf16.msra.mxu0 %v2649
    %2696 = vmatprep.subr.bf16.mxu0 %v2653
    %2697 = vmatpush1.bf16.msra.mxu0 %v2652
    %2698 = vmatprep.subr.bf16.mxu0 %v2656
    %2699 = vmatpush1.bf16.msra.mxu0 %v2655
    %2700 = vmatprep.subr.bf16.mxu0 %v2659
    %2701 = vmatpush1.bf16.msra.mxu0 %v2658
    %2702 = vmatprep.subr.bf16.mxu0 %v2662
    %2703 = vmatpush1.bf16.msra.mxu0 %v2661
    %2704 = vmatprep.subr.bf16.mxu0 0
    %2705 = vmatpush1.bf16.msra.mxu0 0
    %2706 = vmatprep.subr.bf16.mxu0 0
    %2707 = vmatpush1.bf16.msra.mxu0 0
    %2708 = vmatprep.subr.bf16.mxu0 0
    %2709 = vmatpush1.bf16.msra.mxu0 0
    %2710 = vmatprep.subr.bf16.mxu0 0
    %2711 = vmatpush1.bf16.msra.mxu0 0
    %2712 = vmatprep.subr.bf16.mxu0 0
    %2713 = vmatpush1.bf16.msra.mxu0 0
    %2714 = vmatprep.subr.bf16.mxu0 0
    %2715 = vmatpush1.bf16.msra.mxu0 0
    %2716 = vmatprep.subr.bf16.mxu0 0
    %2717 = vmatpush1.bf16.msra.mxu0 0
    %2718 = vmatprep.subr.bf16.mxu0 0
    %2719 = vmatpush1.bf16.msra.mxu0 0
    %2720 = vmatprep.mubr.bf16.mxu0 0
    %2721 = vmatmul.mubr.bf16.gmra.mrb[0].mxu0 %v2508
    %v2722 = vpop.f32.mrb[0].mxu0
    %v2723 = vadd.f32 %v2548, %v2722
    %v2724 = vpop.f32.mrb[0].mxu0
    %v2725 = vadd.f32 %v2552, %v2724
    %v2726 = vpop.f32.mrb[0].mxu0
    %v2727 = vadd.f32 %v2548, %v2726
    %v2728 = vpop.f32.mrb[0].mxu0
    %v2729 = vadd.f32 %v2552, %v2728
    %2730 = vdwg.mxu0
    %2731 = vmatprep.subr.bf16.mxu0 0
    %2732 = vmatpush1.bf16.msra.mxu0 %v2642
    %2733 = vmatprep.subr.bf16.mxu0 0
    %2734 = vmatpush1.bf16.msra.mxu0 %v2645
    %2735 = vmatprep.subr.bf16.mxu0 0
    %2736 = vmatpush1.bf16.msra.mxu0 %v2648
    %2737 = vmatprep.subr.bf16.mxu0 0
    %2738 = vmatpush1.bf16.msra.mxu0 %v2651
    %2739 = vmatprep.subr.bf16.mxu0 0
    %2740 = vmatpush1.bf16.msra.mxu0 %v2654
    %2741 = vmatprep.subr.bf16.mxu0 0
    %2742 = vmatpush1.bf16.msra.mxu0 %v2657
    %2743 = vmatprep.subr.bf16.mxu0 0
    %2744 = vmatpush1.bf16.msra.mxu0 %v2660
    %2745 = vmatprep.subr.bf16.mxu0 0
    %2746 = vmatpush1.bf16.msra.mxu0 %v2663
    %2747 = vmatprep.subr.bf16.mxu0 0
    %2748 = vmatpush1.bf16.msra.mxu0 0
    %2749 = vmatprep.subr.bf16.mxu0 0
    %2750 = vmatpush1.bf16.msra.mxu0 0
    %2751 = vmatprep.subr.bf16.mxu0 0
    %2752 = vmatpush1.bf16.msra.mxu0 0
    %2753 = vmatprep.subr.bf16.mxu0 0
    %2754 = vmatpush1.bf16.msra.mxu0 0
    %2755 = vmatprep.subr.bf16.mxu0 0
    %2756 = vmatpush1.bf16.msra.mxu0 0
    %2757 = vmatprep.subr.bf16.mxu0 0
    %2758 = vmatpush1.bf16.msra.mxu0 0
    %2759 = vmatprep.subr.bf16.mxu0 0
    %2760 = vmatpush1.bf16.msra.mxu0 0
    %2761 = vmatprep.subr.bf16.mxu0 0
    %2762 = vmatpush1.bf16.msra.mxu0 0
    %2763 = vmatprep.mubr.bf16.mxu0 0
    %2764 = vmatmul.mubr.bf16.gmra.mrb[0].mxu0 %v2508
    %v2765 = vpop.f32.mrb[0].mxu0
    %v2766 = vadd.f32 %v2556, %v2765
    %v2767 = vpop.f32.mrb[0].mxu0
    %v2768 = vpop.f32.mrb[0].mxu0
    %v2769 = vadd.f32 %v2556, %v2768
    %v2770 = vpop.f32.mrb[0].mxu0
    %2771 = vdwg.mxu0
    %v2772 = vpack.c.bf16 %v2723, %v2723
    %v2773 = vpack.c.bf16 %v2725, %v2725
    %v2775 = vsel %vm695, %v2772, 0
    %v2778 = vsel %vm695, %v2773, 0
    %2780 = vmatprep.subr.bf16.mxu0 0
    %2781 = vmatpush1.bf16.xpose.msra.mxu0 %v2778
    %2782 = vmatprep.subr.bf16.mxu0 0
    %2783 = vmatpush1.bf16.xpose.msra.mxu0 0
    %2784 = vmatprep.subr.bf16.mxu0 0
    %2785 = vmatpush1.bf16.xpose.msra.mxu0 0
    %2786 = vmatprep.subr.bf16.mxu0 0
    %2787 = vmatpush1.bf16.xpose.msra.mxu0 0
    %2788 = vmatprep.subr.bf16.mxu0 0
    %2789 = vmatpush1.bf16.xpose.msra.mxu0 0
    %2790 = vmatprep.subr.bf16.mxu0 0
    %2791 = vmatpush1.bf16.xpose.msra.mxu0 0
    %2792 = vmatprep.subr.bf16.mxu0 0
    %2793 = vmatpush1.bf16.xpose.msra.mxu0 0
    %2794 = vmatprep.subr.bf16.mxu0 0
    %2795 = vmatpush1.bf16.xpose.msra.mxu0 0
    %2796 = vmatprep.subr.bf16.mxu0 0
    %2797 = vmatpush1.bf16.xpose.msra.mxu0 0
    %2798 = vmatprep.subr.bf16.mxu0 0
    %2799 = vmatpush1.bf16.xpose.msra.mxu0 0
    %2800 = vmatprep.subr.bf16.mxu0 0
    %2801 = vmatpush1.bf16.xpose.msra.mxu0 0
    %2802 = vmatprep.subr.bf16.mxu0 0
    %2803 = vmatpush1.bf16.xpose.msra.mxu0 0
    %2804 = vmatprep.subr.bf16.mxu0 0
    %2805 = vmatpush1.bf16.xpose.msra.mxu0 0
    %2806 = vmatprep.subr.bf16.mxu0 0
    %2807 = vmatpush1.bf16.xpose.msra.mxu0 0
    %2808 = vmatprep.subr.bf16.mxu0 0
    %2809 = vmatpush1.bf16.xpose.msra.mxu0 0
    %2810 = vmatprep.subr.bf16.mxu0 0
    %2811 = vmatpush1.bf16.xpose.msra.mxu0 0
    %2812 = vmatprep.mubr.bf16.mxu0 0
    %2813 = vmatmul.mubr.bf16.gmra.mrb[0].mxu0 %v2775
    %v2814 = vpop.f32.mrb[0].mxu0
    %v2815 = vadd.f32 0.0, %v2814
    %v2816 = vpop.f32.mrb[0].mxu0
    %v2817 = vpop.f32.mrb[0].mxu0
    %v2818 = vpop.f32.mrb[0].mxu0
    %2819 = vdwg.mxu0
    %2821 = vrot.lane.b32.xlu0 %v2772, 96
    %v2822 = vpop.permute.xlu0 %2821
    %2824 = vrot.lane.b32.xlu0 %v2773, 96
    %v2825 = vpop.permute.xlu0 %2824
    %v2827 = vsel %vm695, %v2822, 0
    %v2830 = vsel %vm695, %v2825, 0
    %2832 = vmatprep.subr.bf16.mxu0 0
    %2833 = vmatpush1.bf16.xpose.msra.mxu0 %v2830
    %2834 = vmatprep.subr.bf16.mxu0 0
    %2835 = vmatpush1.bf16.xpose.msra.mxu0 0
    %2836 = vmatprep.subr.bf16.mxu0 0
    %2837 = vmatpush1.bf16.xpose.msra.mxu0 0
    %2838 = vmatprep.subr.bf16.mxu0 0
    %2839 = vmatpush1.bf16.xpose.msra.mxu0 0
    %2840 = vmatprep.subr.bf16.mxu0 0
    %2841 = vmatpush1.bf16.xpose.msra.mxu0 0
    %2842 = vmatprep.subr.bf16.mxu0 0
    %2843 = vmatpush1.bf16.xpose.msra.mxu0 0
    %2844 = vmatprep.subr.bf16.mxu0 0
    %2845 = vmatpush1.bf16.xpose.msra.mxu0 0
    %2846 = vmatprep.subr.bf16.mxu0 0
    %2847 = vmatpush1.bf16.xpose.msra.mxu0 0
    %2848 = vmatprep.subr.bf16.mxu0 0
    %2849 = vmatpush1.bf16.xpose.msra.mxu0 0
    %2850 = vmatprep.subr.bf16.mxu0 0
    %2851 = vmatpush1.bf16.xpose.msra.mxu0 0
    %2852 = vmatprep.subr.bf16.mxu0 0
    %2853 = vmatpush1.bf16.xpose.msra.mxu0 0
    %2854 = vmatprep.subr.bf16.mxu0 0
    %2855 = vmatpush1.bf16.xpose.msra.mxu0 0
    %2856 = vmatprep.subr.bf16.mxu0 0
    %2857 = vmatpush1.bf16.xpose.msra.mxu0 0
    %2858 = vmatprep.subr.bf16.mxu0 0
    %2859 = vmatpush1.bf16.xpose.msra.mxu0 0
    %2860 = vmatprep.subr.bf16.mxu0 0
    %2861 = vmatpush1.bf16.xpose.msra.mxu0 0
    %2862 = vmatprep.subr.bf16.mxu0 0
    %2863 = vmatpush1.bf16.xpose.msra.mxu0 0
    %2864 = vmatprep.mubr.bf16.mxu0 0
    %2865 = vmatmul.mubr.bf16.gmra.mrb[0].mxu0 %v2827
    %v2866 = vpop.f32.mrb[0].mxu0
    %v2867 = vadd.f32 0.0, %v2866
    %v2868 = vpop.f32.mrb[0].mxu0
    %v2869 = vpop.f32.mrb[0].mxu0
    %v2870 = vpop.f32.mrb[0].mxu0
    %2871 = vdwg.mxu0
    %2872 = vrot.lane.b32.xlu0 %v2772, 64
    %v2873 = vpop.permute.xlu0 %2872
    %2874 = vrot.lane.b32.xlu0 %v2773, 64
    %v2875 = vpop.permute.xlu0 %2874
    %v2877 = vsel %vm695, %v2873, 0
    %v2880 = vsel %vm695, %v2875, 0
    %2882 = vmatprep.subr.bf16.mxu0 0
    %2883 = vmatpush1.bf16.xpose.msra.mxu0 %v2880
    %2884 = vmatprep.subr.bf16.mxu0 0
    %2885 = vmatpush1.bf16.xpose.msra.mxu0 0
    %2886 = vmatprep.subr.bf16.mxu0 0
    %2887 = vmatpush1.bf16.xpose.msra.mxu0 0
    %2888 = vmatprep.subr.bf16.mxu0 0
    %2889 = vmatpush1.bf16.xpose.msra.mxu0 0
    %2890 = vmatprep.subr.bf16.mxu0 0
    %2891 = vmatpush1.bf16.xpose.msra.mxu0 0
    %2892 = vmatprep.subr.bf16.mxu0 0
    %2893 = vmatpush1.bf16.xpose.msra.mxu0 0
    %2894 = vmatprep.subr.bf16.mxu0 0
    %2895 = vmatpush1.bf16.xpose.msra.mxu0 0
    %2896 = vmatprep.subr.bf16.mxu0 0
    %2897 = vmatpush1.bf16.xpose.msra.mxu0 0
    %2898 = vmatprep.subr.bf16.mxu0 0
    %2899 = vmatpush1.bf16.xpose.msra.mxu0 0
    %2900 = vmatprep.subr.bf16.mxu0 0
    %2901 = vmatpush1.bf16.xpose.msra.mxu0 0
    %2902 = vmatprep.subr.bf16.mxu0 0
    %2903 = vmatpush1.bf16.xpose.msra.mxu0 0
    %2904 = vmatprep.subr.bf16.mxu0 0
    %2905 = vmatpush1.bf16.xpose.msra.mxu0 0
    %2906 = vmatprep.subr.bf16.mxu0 0
    %2907 = vmatpush1.bf16.xpose.msra.mxu0 0
    %2908 = vmatprep.subr.bf16.mxu0 0
    %2909 = vmatpush1.bf16.xpose.msra.mxu0 0
    %2910 = vmatprep.subr.bf16.mxu0 0
    %2911 = vmatpush1.bf16.xpose.msra.mxu0 0
    %2912 = vmatprep.subr.bf16.mxu0 0
    %2913 = vmatpush1.bf16.xpose.msra.mxu0 0
    %2914 = vmatprep.mubr.bf16.mxu0 0
    %2915 = vmatmul.mubr.bf16.gmra.mrb[0].mxu0 %v2877
    %v2916 = vpop.f32.mrb[0].mxu0
    %v2917 = vadd.f32 0.0, %v2916
    %v2918 = vpop.f32.mrb[0].mxu0
    %v2919 = vpop.f32.mrb[0].mxu0
    %v2920 = vpop.f32.mrb[0].mxu0
    %2921 = vdwg.mxu0
    %2922 = vrot.lane.b32.xlu0 %v2772, 32
    %v2923 = vpop.permute.xlu0 %2922
    %2924 = vrot.lane.b32.xlu0 %v2773, 32
    %v2925 = vpop.permute.xlu0 %2924
    %v2927 = vsel %vm695, %v2923, 0
    %v2930 = vsel %vm695, %v2925, 0
    %2932 = vmatprep.subr.bf16.mxu0 0
    %2933 = vmatpush1.bf16.xpose.msra.mxu0 %v2930
    %2934 = vmatprep.subr.bf16.mxu0 0
    %2935 = vmatpush1.bf16.xpose.msra.mxu0 0
    %2936 = vmatprep.subr.bf16.mxu0 0
    %2937 = vmatpush1.bf16.xpose.msra.mxu0 0
    %2938 = vmatprep.subr.bf16.mxu0 0
    %2939 = vmatpush1.bf16.xpose.msra.mxu0 0
    %2940 = vmatprep.subr.bf16.mxu0 0
    %2941 = vmatpush1.bf16.xpose.msra.mxu0 0
    %2942 = vmatprep.subr.bf16.mxu0 0
    %2943 = vmatpush1.bf16.xpose.msra.mxu0 0
    %2944 = vmatprep.subr.bf16.mxu0 0
    %2945 = vmatpush1.bf16.xpose.msra.mxu0 0
    %2946 = vmatprep.subr.bf16.mxu0 0
    %2947 = vmatpush1.bf16.xpose.msra.mxu0 0
    %2948 = vmatprep.subr.bf16.mxu0 0
    %2949 = vmatpush1.bf16.xpose.msra.mxu0 0
    %2950 = vmatprep.subr.bf16.mxu0 0
    %2951 = vmatpush1.bf16.xpose.msra.mxu0 0
    %2952 = vmatprep.subr.bf16.mxu0 0
    %2953 = vmatpush1.bf16.xpose.msra.mxu0 0
    %2954 = vmatprep.subr.bf16.mxu0 0
    %2955 = vmatpush1.bf16.xpose.msra.mxu0 0
    %2956 = vmatprep.subr.bf16.mxu0 0
    %2957 = vmatpush1.bf16.xpose.msra.mxu0 0
    %2958 = vmatprep.subr.bf16.mxu0 0
    %2959 = vmatpush1.bf16.xpose.msra.mxu0 0
    %2960 = vmatprep.subr.bf16.mxu0 0
    %2961 = vmatpush1.bf16.xpose.msra.mxu0 0
    %2962 = vmatprep.subr.bf16.mxu0 0
    %2963 = vmatpush1.bf16.xpose.msra.mxu0 0
    %2964 = vmatprep.mubr.bf16.mxu0 0
    %2965 = vmatmul.mubr.bf16.gmra.mrb[0].mxu0 %v2927
    %v2966 = vpop.f32.mrb[0].mxu0
    %v2967 = vadd.f32 0.0, %v2966
    %v2968 = vpop.f32.mrb[0].mxu0
    %v2969 = vpop.f32.mrb[0].mxu0
    %v2970 = vpop.f32.mrb[0].mxu0
    %2971 = vdwg.mxu0
    %v2972 = vpack.c.bf16 %v2727, %v2727
    %v2973 = vpack.c.bf16 %v2729, %v2729
    %v2975 = vsel %vm695, %v2972, 0
    %v2978 = vsel %vm695, %v2973, 0
    %2980 = vmatprep.subr.bf16.mxu0 0
    %2981 = vmatpush1.bf16.xpose.msra.mxu0 %v2978
    %2982 = vmatprep.subr.bf16.mxu0 0
    %2983 = vmatpush1.bf16.xpose.msra.mxu0 0
    %2984 = vmatprep.subr.bf16.mxu0 0
    %2985 = vmatpush1.bf16.xpose.msra.mxu0 0
    %2986 = vmatprep.subr.bf16.mxu0 0
    %2987 = vmatpush1.bf16.xpose.msra.mxu0 0
    %2988 = vmatprep.subr.bf16.mxu0 0
    %2989 = vmatpush1.bf16.xpose.msra.mxu0 0
    %2990 = vmatprep.subr.bf16.mxu0 0
    %2991 = vmatpush1.bf16.xpose.msra.mxu0 0
    %2992 = vmatprep.subr.bf16.mxu0 0
    %2993 = vmatpush1.bf16.xpose.msra.mxu0 0
    %2994 = vmatprep.subr.bf16.mxu0 0
    %2995 = vmatpush1.bf16.xpose.msra.mxu0 0
    %2996 = vmatprep.subr.bf16.mxu0 0
    %2997 = vmatpush1.bf16.xpose.msra.mxu0 0
    %2998 = vmatprep.subr.bf16.mxu0 0
    %2999 = vmatpush1.bf16.xpose.msra.mxu0 0
    %3000 = vmatprep.subr.bf16.mxu0 0
    %3001 = vmatpush1.bf16.xpose.msra.mxu0 0
    %3002 = vmatprep.subr.bf16.mxu0 0
    %3003 = vmatpush1.bf16.xpose.msra.mxu0 0
    %3004 = vmatprep.subr.bf16.mxu0 0
    %3005 = vmatpush1.bf16.xpose.msra.mxu0 0
    %3006 = vmatprep.subr.bf16.mxu0 0
    %3007 = vmatpush1.bf16.xpose.msra.mxu0 0
    %3008 = vmatprep.subr.bf16.mxu0 0
    %3009 = vmatpush1.bf16.xpose.msra.mxu0 0
    %3010 = vmatprep.subr.bf16.mxu0 0
    %3011 = vmatpush1.bf16.xpose.msra.mxu0 0
    %3012 = vmatprep.mubr.bf16.mxu0 0
    %3013 = vmatmul.mubr.bf16.gmra.mrb[0].mxu0 %v2975
    %v3014 = vpop.f32.mrb[0].mxu0
    %v3015 = vadd.f32 0.0, %v3014
    %v3016 = vpop.f32.mrb[0].mxu0
    %v3017 = vpop.f32.mrb[0].mxu0
    %v3018 = vpop.f32.mrb[0].mxu0
    %3019 = vdwg.mxu0
    %3021 = vrot.lane.b32.xlu0 %v2972, 96
    %v3022 = vpop.permute.xlu0 %3021
    %3024 = vrot.lane.b32.xlu0 %v2973, 96
    %v3025 = vpop.permute.xlu0 %3024
    %v3027 = vsel %vm695, %v3022, 0
    %v3030 = vsel %vm695, %v3025, 0
    %3032 = vmatprep.subr.bf16.mxu0 0
    %3033 = vmatpush1.bf16.xpose.msra.mxu0 %v3030
    %3034 = vmatprep.subr.bf16.mxu0 0
    %3035 = vmatpush1.bf16.xpose.msra.mxu0 0
    %3036 = vmatprep.subr.bf16.mxu0 0
    %3037 = vmatpush1.bf16.xpose.msra.mxu0 0
    %3038 = vmatprep.subr.bf16.mxu0 0
    %3039 = vmatpush1.bf16.xpose.msra.mxu0 0
    %3040 = vmatprep.subr.bf16.mxu0 0
    %3041 = vmatpush1.bf16.xpose.msra.mxu0 0
    %3042 = vmatprep.subr.bf16.mxu0 0
    %3043 = vmatpush1.bf16.xpose.msra.mxu0 0
    %3044 = vmatprep.subr.bf16.mxu0 0
    %3045 = vmatpush1.bf16.xpose.msra.mxu0 0
    %3046 = vmatprep.subr.bf16.mxu0 0
    %3047 = vmatpush1.bf16.xpose.msra.mxu0 0
    %3048 = vmatprep.subr.bf16.mxu0 0
    %3049 = vmatpush1.bf16.xpose.msra.mxu0 0
    %3050 = vmatprep.subr.bf16.mxu0 0
    %3051 = vmatpush1.bf16.xpose.msra.mxu0 0
    %3052 = vmatprep.subr.bf16.mxu0 0
    %3053 = vmatpush1.bf16.xpose.msra.mxu0 0
    %3054 = vmatprep.subr.bf16.mxu0 0
    %3055 = vmatpush1.bf16.xpose.msra.mxu0 0
    %3056 = vmatprep.subr.bf16.mxu0 0
    %3057 = vmatpush1.bf16.xpose.msra.mxu0 0
    %3058 = vmatprep.subr.bf16.mxu0 0
    %3059 = vmatpush1.bf16.xpose.msra.mxu0 0
    %3060 = vmatprep.subr.bf16.mxu0 0
    %3061 = vmatpush1.bf16.xpose.msra.mxu0 0
    %3062 = vmatprep.subr.bf16.mxu0 0
    %3063 = vmatpush1.bf16.xpose.msra.mxu0 0
    %3064 = vmatprep.mubr.bf16.mxu0 0
    %3065 = vmatmul.mubr.bf16.gmra.mrb[0].mxu0 %v3027
    %v3066 = vpop.f32.mrb[0].mxu0
    %v3067 = vadd.f32 0.0, %v3066
    %v3068 = vpop.f32.mrb[0].mxu0
    %v3069 = vpop.f32.mrb[0].mxu0
    %v3070 = vpop.f32.mrb[0].mxu0
    %3071 = vdwg.mxu0
    %3072 = vrot.lane.b32.xlu0 %v2972, 64
    %v3073 = vpop.permute.xlu0 %3072
    %3074 = vrot.lane.b32.xlu0 %v2973, 64
    %v3075 = vpop.permute.xlu0 %3074
    %v3077 = vsel %vm695, %v3073, 0
    %v3080 = vsel %vm695, %v3075, 0
    %3082 = vmatprep.subr.bf16.mxu0 0
    %3083 = vmatpush1.bf16.xpose.msra.mxu0 %v3080
    %3084 = vmatprep.subr.bf16.mxu0 0
    %3085 = vmatpush1.bf16.xpose.msra.mxu0 0
    %3086 = vmatprep.subr.bf16.mxu0 0
    %3087 = vmatpush1.bf16.xpose.msra.mxu0 0
    %3088 = vmatprep.subr.bf16.mxu0 0
    %3089 = vmatpush1.bf16.xpose.msra.mxu0 0
    %3090 = vmatprep.subr.bf16.mxu0 0
    %3091 = vmatpush1.bf16.xpose.msra.mxu0 0
    %3092 = vmatprep.subr.bf16.mxu0 0
    %3093 = vmatpush1.bf16.xpose.msra.mxu0 0
    %3094 = vmatprep.subr.bf16.mxu0 0
    %3095 = vmatpush1.bf16.xpose.msra.mxu0 0
    %3096 = vmatprep.subr.bf16.mxu0 0
    %3097 = vmatpush1.bf16.xpose.msra.mxu0 0
    %3098 = vmatprep.subr.bf16.mxu0 0
    %3099 = vmatpush1.bf16.xpose.msra.mxu0 0
    %3100 = vmatprep.subr.bf16.mxu0 0
    %3101 = vmatpush1.bf16.xpose.msra.mxu0 0
    %3102 = vmatprep.subr.bf16.mxu0 0
    %3103 = vmatpush1.bf16.xpose.msra.mxu0 0
    %3104 = vmatprep.subr.bf16.mxu0 0
    %3105 = vmatpush1.bf16.xpose.msra.mxu0 0
    %3106 = vmatprep.subr.bf16.mxu0 0
    %3107 = vmatpush1.bf16.xpose.msra.mxu0 0
    %3108 = vmatprep.subr.bf16.mxu0 0
    %3109 = vmatpush1.bf16.xpose.msra.mxu0 0
    %3110 = vmatprep.subr.bf16.mxu0 0
    %3111 = vmatpush1.bf16.xpose.msra.mxu0 0
    %3112 = vmatprep.subr.bf16.mxu0 0
    %3113 = vmatpush1.bf16.xpose.msra.mxu0 0
    %3114 = vmatprep.mubr.bf16.mxu0 0
    %3115 = vmatmul.mubr.bf16.gmra.mrb[0].mxu0 %v3077
    %v3116 = vpop.f32.mrb[0].mxu0
    %v3117 = vadd.f32 0.0, %v3116
    %v3118 = vpop.f32.mrb[0].mxu0
    %v3119 = vpop.f32.mrb[0].mxu0
    %v3120 = vpop.f32.mrb[0].mxu0
    %3121 = vdwg.mxu0
    %3122 = vrot.lane.b32.xlu0 %v2972, 32
    %v3123 = vpop.permute.xlu0 %3122
    %3124 = vrot.lane.b32.xlu0 %v2973, 32
    %v3125 = vpop.permute.xlu0 %3124
    %v3127 = vsel %vm695, %v3123, 0
    %v3130 = vsel %vm695, %v3125, 0
    %3132 = vmatprep.subr.bf16.mxu0 0
    %3133 = vmatpush1.bf16.xpose.msra.mxu0 %v3130
    %3134 = vmatprep.subr.bf16.mxu0 0
    %3135 = vmatpush1.bf16.xpose.msra.mxu0 0
    %3136 = vmatprep.subr.bf16.mxu0 0
    %3137 = vmatpush1.bf16.xpose.msra.mxu0 0
    %3138 = vmatprep.subr.bf16.mxu0 0
    %3139 = vmatpush1.bf16.xpose.msra.mxu0 0
    %3140 = vmatprep.subr.bf16.mxu0 0
    %3141 = vmatpush1.bf16.xpose.msra.mxu0 0
    %3142 = vmatprep.subr.bf16.mxu0 0
    %3143 = vmatpush1.bf16.xpose.msra.mxu0 0
    %3144 = vmatprep.subr.bf16.mxu0 0
    %3145 = vmatpush1.bf16.xpose.msra.mxu0 0
    %3146 = vmatprep.subr.bf16.mxu0 0
    %3147 = vmatpush1.bf16.xpose.msra.mxu0 0
    %3148 = vmatprep.subr.bf16.mxu0 0
    %3149 = vmatpush1.bf16.xpose.msra.mxu0 0
    %3150 = vmatprep.subr.bf16.mxu0 0
    %3151 = vmatpush1.bf16.xpose.msra.mxu0 0
    %3152 = vmatprep.subr.bf16.mxu0 0
    %3153 = vmatpush1.bf16.xpose.msra.mxu0 0
    %3154 = vmatprep.subr.bf16.mxu0 0
    %3155 = vmatpush1.bf16.xpose.msra.mxu0 0
    %3156 = vmatprep.subr.bf16.mxu0 0
    %3157 = vmatpush1.bf16.xpose.msra.mxu0 0
    %3158 = vmatprep.subr.bf16.mxu0 0
    %3159 = vmatpush1.bf16.xpose.msra.mxu0 0
    %3160 = vmatprep.subr.bf16.mxu0 0
    %3161 = vmatpush1.bf16.xpose.msra.mxu0 0
    %3162 = vmatprep.subr.bf16.mxu0 0
    %3163 = vmatpush1.bf16.xpose.msra.mxu0 0
    %3164 = vmatprep.mubr.bf16.mxu0 0
    %3165 = vmatmul.mubr.bf16.gmra.mrb[0].mxu0 %v3127
    %v3166 = vpop.f32.mrb[0].mxu0
    %v3167 = vadd.f32 0.0, %v3166
    %v3168 = vpop.f32.mrb[0].mxu0
    %v3169 = vpop.f32.mrb[0].mxu0
    %v3170 = vpop.f32.mrb[0].mxu0
    %3171 = vdwg.mxu0
    %v3172 = vmul.f32 %v2815, 0.17677669
    %v3173 = vmul.f32 %v2867, 0.17677669
    %v3174 = vmul.f32 %v2917, 0.17677669
    %v3175 = vmul.f32 %v2967, 0.17677669
    %v3176 = vmul.f32 %v3015, 0.17677669
    %v3177 = vmul.f32 %v3067, 0.17677669
    %v3178 = vmul.f32 %v3117, 0.17677669
    %v3179 = vmul.f32 %v3167, 0.17677669
    %v3180 = vadd.f32 %v3172, %v425
    %v3181 = vadd.f32 %v3173, %v425
    %v3182 = vadd.f32 %v3174, %v425
    %v3183 = vadd.f32 %v3175, %v425
    %v3184 = vadd.f32 %v3176, %v429
    %v3185 = vadd.f32 %v3177, %v429
    %v3186 = vadd.f32 %v3178, %v429
    %v3187 = vadd.f32 %v3179, %v429
    %v3188 = vsel %vm1110, %v3180, -inf
    %3189 = vmax.xlane.f32.xlu0 %v3188
    %v3190 = vpop.xlane.xlu0 %3189
    %v3191 = vsel %vm1110, %v3181, -inf
    %3192 = vmax.xlane.f32.xlu0 %v3191
    %v3193 = vpop.xlane.xlu0 %3192
    %v3194 = vsel %vm1110, %v3182, -inf
    %3195 = vmax.xlane.f32.xlu0 %v3194
    %v3196 = vpop.xlane.xlu0 %3195
    %v3197 = vsel %vm1110, %v3183, -inf
    %3198 = vmax.xlane.f32.xlu0 %v3197
    %v3199 = vpop.xlane.xlu0 %3198
    %v3200 = vsel %vm1110, %v3184, -inf
    %3201 = vmax.xlane.f32.xlu0 %v3200
    %v3202 = vpop.xlane.xlu0 %3201
    %v3203 = vsel %vm1110, %v3185, -inf
    %3204 = vmax.xlane.f32.xlu0 %v3203
    %v3205 = vpop.xlane.xlu0 %3204
    %v3206 = vsel %vm1110, %v3186, -inf
    %3207 = vmax.xlane.f32.xlu0 %v3206
    %v3208 = vpop.xlane.xlu0 %3207
    %v3209 = vsel %vm1110, %v3187, -inf
    %3210 = vmax.xlane.f32.xlu0 %v3209
    %v3211 = vpop.xlane.xlu0 %3210
    %v3212 = vsub.f32 %v3180, %v3190
    %v3213 = vsub.f32 %v3181, %v3193
    %v3214 = vsub.f32 %v3182, %v3196
    %v3215 = vsub.f32 %v3183, %v3199
    %v3216 = vsub.f32 %v3184, %v3202
    %v3217 = vsub.f32 %v3185, %v3205
    %v3218 = vsub.f32 %v3186, %v3208
    %v3219 = vsub.f32 %v3187, %v3211
    %v3220 = vmul.f32 %v3212, 1.442695
    %v3221 = vpow.pop %v3220
    %v3222 = vmul.f32 %v3213, 1.442695
    %v3223 = vpow.pop %v3222
    %v3224 = vmul.f32 %v3214, 1.442695
    %v3225 = vpow.pop %v3224
    %v3226 = vmul.f32 %v3215, 1.442695
    %v3227 = vpow.pop %v3226
    %v3228 = vmul.f32 %v3216, 1.442695
    %v3229 = vpow.pop %v3228
    %v3230 = vmul.f32 %v3217, 1.442695
    %v3231 = vpow.pop %v3230
    %v3232 = vmul.f32 %v3218, 1.442695
    %v3233 = vpow.pop %v3232
    %v3234 = vmul.f32 %v3219, 1.442695
    %v3235 = vpow.pop %v3234
    %v3236 = vsel %vm1110, %v3221, 0.0
    %3237 = vadd.xlane.f32.xlu0 %v3236
    %v3238 = vpop.xlane.xlu0 %3237
    %v3239 = vsel %vm1110, %v3223, 0.0
    %3240 = vadd.xlane.f32.xlu0 %v3239
    %v3241 = vpop.xlane.xlu0 %3240
    %v3242 = vsel %vm1110, %v3225, 0.0
    %3243 = vadd.xlane.f32.xlu0 %v3242
    %v3244 = vpop.xlane.xlu0 %3243
    %v3245 = vsel %vm1110, %v3227, 0.0
    %3246 = vadd.xlane.f32.xlu0 %v3245
    %v3247 = vpop.xlane.xlu0 %3246
    %v3248 = vsel %vm1110, %v3229, 0.0
    %3249 = vadd.xlane.f32.xlu0 %v3248
    %v3250 = vpop.xlane.xlu0 %3249
    %v3251 = vsel %vm1110, %v3231, 0.0
    %3252 = vadd.xlane.f32.xlu0 %v3251
    %v3253 = vpop.xlane.xlu0 %3252
    %v3254 = vsel %vm1110, %v3233, 0.0
    %3255 = vadd.xlane.f32.xlu0 %v3254
    %v3256 = vpop.xlane.xlu0 %3255
    %v3257 = vsel %vm1110, %v3235, 0.0
    %3258 = vadd.xlane.f32.xlu0 %v3257
    %v3259 = vpop.xlane.xlu0 %3258
    %v3260 = vrcp.pop %v3238
    %v3261 = vrcp.pop %v3241
    %v3262 = vrcp.pop %v3244
    %v3263 = vrcp.pop %v3247
    %v3264 = vrcp.pop %v3250
    %v3265 = vrcp.pop %v3253
    %v3266 = vrcp.pop %v3256
    %v3267 = vrcp.pop %v3259
    %v3268 = vmul.f32 %v3221, %v3260
    %v3269 = vmul.f32 %v3223, %v3261
    %v3270 = vmul.f32 %v3225, %v3262
    %v3271 = vmul.f32 %v3227, %v3263
    %v3272 = vmul.f32 %v3229, %v3264
    %v3273 = vmul.f32 %v3231, %v3265
    %v3274 = vmul.f32 %v3233, %v3266
    %v3275 = vmul.f32 %v3235, %v3267
    %v3276 = vpack.c.bf16 %v3268, %v3268
    %v3277 = vpack.c.bf16 %v2766, %v2766
    %v3279 = vsel %vm1110, %v3276, 0
    %v3282 = vsel %vm1204, %v3277, 0
    %3284 = vmatprep.subr.bf16.mxu0 0
    %3285 = vmatpush1.bf16.msra.mxu0 %v3282
    %3286 = vmatprep.subr.bf16.mxu0 0
    %3287 = vmatpush1.bf16.msra.mxu0 0
    %3288 = vmatprep.subr.bf16.mxu0 0
    %3289 = vmatpush1.bf16.msra.mxu0 0
    %3290 = vmatprep.subr.bf16.mxu0 0
    %3291 = vmatpush1.bf16.msra.mxu0 0
    %3292 = vmatprep.subr.bf16.mxu0 0
    %3293 = vmatpush1.bf16.msra.mxu0 0
    %3294 = vmatprep.subr.bf16.mxu0 0
    %3295 = vmatpush1.bf16.msra.mxu0 0
    %3296 = vmatprep.subr.bf16.mxu0 0
    %3297 = vmatpush1.bf16.msra.mxu0 0
    %3298 = vmatprep.subr.bf16.mxu0 0
    %3299 = vmatpush1.bf16.msra.mxu0 0
    %3300 = vmatprep.subr.bf16.mxu0 0
    %3301 = vmatpush1.bf16.msra.mxu0 0
    %3302 = vmatprep.subr.bf16.mxu0 0
    %3303 = vmatpush1.bf16.msra.mxu0 0
    %3304 = vmatprep.subr.bf16.mxu0 0
    %3305 = vmatpush1.bf16.msra.mxu0 0
    %3306 = vmatprep.subr.bf16.mxu0 0
    %3307 = vmatpush1.bf16.msra.mxu0 0
    %3308 = vmatprep.subr.bf16.mxu0 0
    %3309 = vmatpush1.bf16.msra.mxu0 0
    %3310 = vmatprep.subr.bf16.mxu0 0
    %3311 = vmatpush1.bf16.msra.mxu0 0
    %3312 = vmatprep.subr.bf16.mxu0 0
    %3313 = vmatpush1.bf16.msra.mxu0 0
    %3314 = vmatprep.subr.bf16.mxu0 0
    %3315 = vmatpush1.bf16.msra.mxu0 0
    %3316 = vmatprep.mubr.bf16.mxu0 0
    %3317 = vmatmul.mubr.bf16.gmra.mrb[0].mxu0 %v3279
    %v3318 = vpop.f32.mrb[0].mxu0
    %v3319 = vadd.f32 0.0, %v3318
    %v3320 = vpop.f32.mrb[0].mxu0
    %v3321 = vpop.f32.mrb[0].mxu0
    %v3322 = vpop.f32.mrb[0].mxu0
    %3323 = vdwg.mxu0
    %v3324 = vpack.c.bf16 %v3269, %v3269
    %3326 = vrot.lane.b32.xlu0 %v3277, 96
    %v3327 = vpop.permute.xlu0 %3326
    %v3329 = vsel %vm1110, %v3324, 0
    %v3332 = vsel %vm1204, %v3327, 0
    %3334 = vmatprep.subr.bf16.mxu0 0
    %3335 = vmatpush1.bf16.msra.mxu0 %v3332
    %3336 = vmatprep.subr.bf16.mxu0 0
    %3337 = vmatpush1.bf16.msra.mxu0 0
    %3338 = vmatprep.subr.bf16.mxu0 0
    %3339 = vmatpush1.bf16.msra.mxu0 0
    %3340 = vmatprep.subr.bf16.mxu0 0
    %3341 = vmatpush1.bf16.msra.mxu0 0
    %3342 = vmatprep.subr.bf16.mxu0 0
    %3343 = vmatpush1.bf16.msra.mxu0 0
    %3344 = vmatprep.subr.bf16.mxu0 0
    %3345 = vmatpush1.bf16.msra.mxu0 0
    %3346 = vmatprep.subr.bf16.mxu0 0
    %3347 = vmatpush1.bf16.msra.mxu0 0
    %3348 = vmatprep.subr.bf16.mxu0 0
    %3349 = vmatpush1.bf16.msra.mxu0 0
    %3350 = vmatprep.subr.bf16.mxu0 0
    %3351 = vmatpush1.bf16.msra.mxu0 0
    %3352 = vmatprep.subr.bf16.mxu0 0
    %3353 = vmatpush1.bf16.msra.mxu0 0
    %3354 = vmatprep.subr.bf16.mxu0 0
    %3355 = vmatpush1.bf16.msra.mxu0 0
    %3356 = vmatprep.subr.bf16.mxu0 0
    %3357 = vmatpush1.bf16.msra.mxu0 0
    %3358 = vmatprep.subr.bf16.mxu0 0
    %3359 = vmatpush1.bf16.msra.mxu0 0
    %3360 = vmatprep.subr.bf16.mxu0 0
    %3361 = vmatpush1.bf16.msra.mxu0 0
    %3362 = vmatprep.subr.bf16.mxu0 0
    %3363 = vmatpush1.bf16.msra.mxu0 0
    %3364 = vmatprep.subr.bf16.mxu0 0
    %3365 = vmatpush1.bf16.msra.mxu0 0
    %3366 = vmatprep.mubr.bf16.mxu0 0
    %3367 = vmatmul.mubr.bf16.gmra.mrb[0].mxu0 %v3329
    %v3368 = vpop.f32.mrb[0].mxu0
    %v3369 = vadd.f32 0.0, %v3368
    %v3370 = vpop.f32.mrb[0].mxu0
    %v3371 = vpop.f32.mrb[0].mxu0
    %v3372 = vpop.f32.mrb[0].mxu0
    %3373 = vdwg.mxu0
    %v3374 = vpack.c.bf16 %v3270, %v3270
    %3375 = vrot.lane.b32.xlu0 %v3277, 64
    %v3376 = vpop.permute.xlu0 %3375
    %v3378 = vsel %vm1110, %v3374, 0
    %v3381 = vsel %vm1204, %v3376, 0
    %3383 = vmatprep.subr.bf16.mxu0 0
    %3384 = vmatpush1.bf16.msra.mxu0 %v3381
    %3385 = vmatprep.subr.bf16.mxu0 0
    %3386 = vmatpush1.bf16.msra.mxu0 0
    %3387 = vmatprep.subr.bf16.mxu0 0
    %3388 = vmatpush1.bf16.msra.mxu0 0
    %3389 = vmatprep.subr.bf16.mxu0 0
    %3390 = vmatpush1.bf16.msra.mxu0 0
    %3391 = vmatprep.subr.bf16.mxu0 0
    %3392 = vmatpush1.bf16.msra.mxu0 0
    %3393 = vmatprep.subr.bf16.mxu0 0
    %3394 = vmatpush1.bf16.msra.mxu0 0
    %3395 = vmatprep.subr.bf16.mxu0 0
    %3396 = vmatpush1.bf16.msra.mxu0 0
    %3397 = vmatprep.subr.bf16.mxu0 0
    %3398 = vmatpush1.bf16.msra.mxu0 0
    %3399 = vmatprep.subr.bf16.mxu0 0
    %3400 = vmatpush1.bf16.msra.mxu0 0
    %3401 = vmatprep.subr.bf16.mxu0 0
    %3402 = vmatpush1.bf16.msra.mxu0 0
    %3403 = vmatprep.subr.bf16.mxu0 0
    %3404 = vmatpush1.bf16.msra.mxu0 0
    %3405 = vmatprep.subr.bf16.mxu0 0
    %3406 = vmatpush1.bf16.msra.mxu0 0
    %3407 = vmatprep.subr.bf16.mxu0 0
    %3408 = vmatpush1.bf16.msra.mxu0 0
    %3409 = vmatprep.subr.bf16.mxu0 0
    %3410 = vmatpush1.bf16.msra.mxu0 0
    %3411 = vmatprep.subr.bf16.mxu0 0
    %3412 = vmatpush1.bf16.msra.mxu0 0
    %3413 = vmatprep.subr.bf16.mxu0 0
    %3414 = vmatpush1.bf16.msra.mxu0 0
    %3415 = vmatprep.mubr.bf16.mxu0 0
    %3416 = vmatmul.mubr.bf16.gmra.mrb[0].mxu0 %v3378
    %v3417 = vpop.f32.mrb[0].mxu0
    %v3418 = vadd.f32 0.0, %v3417
    %v3419 = vpop.f32.mrb[0].mxu0
    %v3420 = vpop.f32.mrb[0].mxu0
    %v3421 = vpop.f32.mrb[0].mxu0
    %3422 = vdwg.mxu0
    %v3423 = vpack.c.bf16 %v3271, %v3271
    %3424 = vrot.lane.b32.xlu0 %v3277, 32
    %v3425 = vpop.permute.xlu0 %3424
    %v3427 = vsel %vm1110, %v3423, 0
    %v3430 = vsel %vm1204, %v3425, 0
    %3432 = vmatprep.subr.bf16.mxu0 0
    %3433 = vmatpush1.bf16.msra.mxu0 %v3430
    %3434 = vmatprep.subr.bf16.mxu0 0
    %3435 = vmatpush1.bf16.msra.mxu0 0
    %3436 = vmatprep.subr.bf16.mxu0 0
    %3437 = vmatpush1.bf16.msra.mxu0 0
    %3438 = vmatprep.subr.bf16.mxu0 0
    %3439 = vmatpush1.bf16.msra.mxu0 0
    %3440 = vmatprep.subr.bf16.mxu0 0
    %3441 = vmatpush1.bf16.msra.mxu0 0
    %3442 = vmatprep.subr.bf16.mxu0 0
    %3443 = vmatpush1.bf16.msra.mxu0 0
    %3444 = vmatprep.subr.bf16.mxu0 0
    %3445 = vmatpush1.bf16.msra.mxu0 0
    %3446 = vmatprep.subr.bf16.mxu0 0
    %3447 = vmatpush1.bf16.msra.mxu0 0
    %3448 = vmatprep.subr.bf16.mxu0 0
    %3449 = vmatpush1.bf16.msra.mxu0 0
    %3450 = vmatprep.subr.bf16.mxu0 0
    %3451 = vmatpush1.bf16.msra.mxu0 0
    %3452 = vmatprep.subr.bf16.mxu0 0
    %3453 = vmatpush1.bf16.msra.mxu0 0
    %3454 = vmatprep.subr.bf16.mxu0 0
    %3455 = vmatpush1.bf16.msra.mxu0 0
    %3456 = vmatprep.subr.bf16.mxu0 0
    %3457 = vmatpush1.bf16.msra.mxu0 0
    %3458 = vmatprep.subr.bf16.mxu0 0
    %3459 = vmatpush1.bf16.msra.mxu0 0
    %3460 = vmatprep.subr.bf16.mxu0 0
    %3461 = vmatpush1.bf16.msra.mxu0 0
    %3462 = vmatprep.subr.bf16.mxu0 0
    %3463 = vmatpush1.bf16.msra.mxu0 0
    %3464 = vmatprep.mubr.bf16.mxu0 0
    %3465 = vmatmul.mubr.bf16.gmra.mrb[0].mxu0 %v3427
    %v3466 = vpop.f32.mrb[0].mxu0
    %v3467 = vadd.f32 0.0, %v3466
    %v3468 = vpop.f32.mrb[0].mxu0
    %v3469 = vpop.f32.mrb[0].mxu0
    %v3470 = vpop.f32.mrb[0].mxu0
    %3471 = vdwg.mxu0
    %3473 = vrot.lane.b32.xlu0 %v3369, 32
    %v3474 = vpop.permute.xlu0 %3473
    %3477 = vrot.lane.b32.xlu0 %v3418, 64
    %v3478 = vpop.permute.xlu0 %3477
    %3481 = vrot.lane.b32.xlu0 %v3467, 96
    %v3482 = vpop.permute.xlu0 %3481
    %v3484 = vsel %vm695, %v3319, %v3474
    %v3485 = vsel %vm1409, %v3484, %v3478
    %v3486 = vsel %vm1411, %v3485, %v3482
    %v3487 = vpack.c.bf16 %v3272, %v3272
    %v3488 = vpack.c.bf16 %v2769, %v2769
    %v3490 = vsel %vm1110, %v3487, 0
    %v3493 = vsel %vm1204, %v3488, 0
    %3495 = vmatprep.subr.bf16.mxu0 0
    %3496 = vmatpush1.bf16.msra.mxu0 %v3493
    %3497 = vmatprep.subr.bf16.mxu0 0
    %3498 = vmatpush1.bf16.msra.mxu0 0
    %3499 = vmatprep.subr.bf16.mxu0 0
    %3500 = vmatpush1.bf16.msra.mxu0 0
    %3501 = vmatprep.subr.bf16.mxu0 0
    %3502 = vmatpush1.bf16.msra.mxu0 0
    %3503 = vmatprep.subr.bf16.mxu0 0
    %3504 = vmatpush1.bf16.msra.mxu0 0
    %3505 = vmatprep.subr.bf16.mxu0 0
    %3506 = vmatpush1.bf16.msra.mxu0 0
    %3507 = vmatprep.subr.bf16.mxu0 0
    %3508 = vmatpush1.bf16.msra.mxu0 0
    %3509 = vmatprep.subr.bf16.mxu0 0
    %3510 = vmatpush1.bf16.msra.mxu0 0
    %3511 = vmatprep.subr.bf16.mxu0 0
    %3512 = vmatpush1.bf16.msra.mxu0 0
    %3513 = vmatprep.subr.bf16.mxu0 0
    %3514 = vmatpush1.bf16.msra.mxu0 0
    %3515 = vmatprep.subr.bf16.mxu0 0
    %3516 = vmatpush1.bf16.msra.mxu0 0
    %3517 = vmatprep.subr.bf16.mxu0 0
    %3518 = vmatpush1.bf16.msra.mxu0 0
    %3519 = vmatprep.subr.bf16.mxu0 0
    %3520 = vmatpush1.bf16.msra.mxu0 0
    %3521 = vmatprep.subr.bf16.mxu0 0
    %3522 = vmatpush1.bf16.msra.mxu0 0
    %3523 = vmatprep.subr.bf16.mxu0 0
    %3524 = vmatpush1.bf16.msra.mxu0 0
    %3525 = vmatprep.subr.bf16.mxu0 0
    %3526 = vmatpush1.bf16.msra.mxu0 0
    %3527 = vmatprep.mubr.bf16.mxu0 0
    %3528 = vmatmul.mubr.bf16.gmra.mrb[0].mxu0 %v3490
    %v3529 = vpop.f32.mrb[0].mxu0
    %v3530 = vadd.f32 0.0, %v3529
    %v3531 = vpop.f32.mrb[0].mxu0
    %v3532 = vpop.f32.mrb[0].mxu0
    %v3533 = vpop.f32.mrb[0].mxu0
    %3534 = vdwg.mxu0
    %v3535 = vpack.c.bf16 %v3273, %v3273
    %3537 = vrot.lane.b32.xlu0 %v3488, 96
    %v3538 = vpop.permute.xlu0 %3537
    %v3540 = vsel %vm1110, %v3535, 0
    %v3543 = vsel %vm1204, %v3538, 0
    %3545 = vmatprep.subr.bf16.mxu0 0
    %3546 = vmatpush1.bf16.msra.mxu0 %v3543
    %3547 = vmatprep.subr.bf16.mxu0 0
    %3548 = vmatpush1.bf16.msra.mxu0 0
    %3549 = vmatprep.subr.bf16.mxu0 0
    %3550 = vmatpush1.bf16.msra.mxu0 0
    %3551 = vmatprep.subr.bf16.mxu0 0
    %3552 = vmatpush1.bf16.msra.mxu0 0
    %3553 = vmatprep.subr.bf16.mxu0 0
    %3554 = vmatpush1.bf16.msra.mxu0 0
    %3555 = vmatprep.subr.bf16.mxu0 0
    %3556 = vmatpush1.bf16.msra.mxu0 0
    %3557 = vmatprep.subr.bf16.mxu0 0
    %3558 = vmatpush1.bf16.msra.mxu0 0
    %3559 = vmatprep.subr.bf16.mxu0 0
    %3560 = vmatpush1.bf16.msra.mxu0 0
    %3561 = vmatprep.subr.bf16.mxu0 0
    %3562 = vmatpush1.bf16.msra.mxu0 0
    %3563 = vmatprep.subr.bf16.mxu0 0
    %3564 = vmatpush1.bf16.msra.mxu0 0
    %3565 = vmatprep.subr.bf16.mxu0 0
    %3566 = vmatpush1.bf16.msra.mxu0 0
    %3567 = vmatprep.subr.bf16.mxu0 0
    %3568 = vmatpush1.bf16.msra.mxu0 0
    %3569 = vmatprep.subr.bf16.mxu0 0
    %3570 = vmatpush1.bf16.msra.mxu0 0
    %3571 = vmatprep.subr.bf16.mxu0 0
    %3572 = vmatpush1.bf16.msra.mxu0 0
    %3573 = vmatprep.subr.bf16.mxu0 0
    %3574 = vmatpush1.bf16.msra.mxu0 0
    %3575 = vmatprep.subr.bf16.mxu0 0
    %3576 = vmatpush1.bf16.msra.mxu0 0
    %3577 = vmatprep.mubr.bf16.mxu0 0
    %3578 = vmatmul.mubr.bf16.gmra.mrb[0].mxu0 %v3540
    %v3579 = vpop.f32.mrb[0].mxu0
    %v3580 = vadd.f32 0.0, %v3579
    %v3581 = vpop.f32.mrb[0].mxu0
    %v3582 = vpop.f32.mrb[0].mxu0
    %v3583 = vpop.f32.mrb[0].mxu0
    %3584 = vdwg.mxu0
    %v3585 = vpack.c.bf16 %v3274, %v3274
    %3586 = vrot.lane.b32.xlu0 %v3488, 64
    %v3587 = vpop.permute.xlu0 %3586
    %v3589 = vsel %vm1110, %v3585, 0
    %v3592 = vsel %vm1204, %v3587, 0
    %3594 = vmatprep.subr.bf16.mxu0 0
    %3595 = vmatpush1.bf16.msra.mxu0 %v3592
    %3596 = vmatprep.subr.bf16.mxu0 0
    %3597 = vmatpush1.bf16.msra.mxu0 0
    %3598 = vmatprep.subr.bf16.mxu0 0
    %3599 = vmatpush1.bf16.msra.mxu0 0
    %3600 = vmatprep.subr.bf16.mxu0 0
    %3601 = vmatpush1.bf16.msra.mxu0 0
    %3602 = vmatprep.subr.bf16.mxu0 0
    %3603 = vmatpush1.bf16.msra.mxu0 0
    %3604 = vmatprep.subr.bf16.mxu0 0
    %3605 = vmatpush1.bf16.msra.mxu0 0
    %3606 = vmatprep.subr.bf16.mxu0 0
    %3607 = vmatpush1.bf16.msra.mxu0 0
    %3608 = vmatprep.subr.bf16.mxu0 0
    %3609 = vmatpush1.bf16.msra.mxu0 0
    %3610 = vmatprep.subr.bf16.mxu0 0
    %3611 = vmatpush1.bf16.msra.mxu0 0
    %3612 = vmatprep.subr.bf16.mxu0 0
    %3613 = vmatpush1.bf16.msra.mxu0 0
    %3614 = vmatprep.subr.bf16.mxu0 0
    %3615 = vmatpush1.bf16.msra.mxu0 0
    %3616 = vmatprep.subr.bf16.mxu0 0
    %3617 = vmatpush1.bf16.msra.mxu0 0
    %3618 = vmatprep.subr.bf16.mxu0 0
    %3619 = vmatpush1.bf16.msra.mxu0 0
    %3620 = vmatprep.subr.bf16.mxu0 0
    %3621 = vmatpush1.bf16.msra.mxu0 0
    %3622 = vmatprep.subr.bf16.mxu0 0
    %3623 = vmatpush1.bf16.msra.mxu0 0
    %3624 = vmatprep.subr.bf16.mxu0 0
    %3625 = vmatpush1.bf16.msra.mxu0 0
    %3626 = vmatprep.mubr.bf16.mxu0 0
    %3627 = vmatmul.mubr.bf16.gmra.mrb[0].mxu0 %v3589
    %v3628 = vpop.f32.mrb[0].mxu0
    %v3629 = vadd.f32 0.0, %v3628
    %v3630 = vpop.f32.mrb[0].mxu0
    %v3631 = vpop.f32.mrb[0].mxu0
    %v3632 = vpop.f32.mrb[0].mxu0
    %3633 = vdwg.mxu0
    %v3634 = vpack.c.bf16 %v3275, %v3275
    %3635 = vrot.lane.b32.xlu0 %v3488, 32
    %v3636 = vpop.permute.xlu0 %3635
    %v3638 = vsel %vm1110, %v3634, 0
    %v3641 = vsel %vm1204, %v3636, 0
    %3643 = vmatprep.subr.bf16.mxu0 0
    %3644 = vmatpush1.bf16.msra.mxu0 %v3641
    %3645 = vmatprep.subr.bf16.mxu0 0
    %3646 = vmatpush1.bf16.msra.mxu0 0
    %3647 = vmatprep.subr.bf16.mxu0 0
    %3648 = vmatpush1.bf16.msra.mxu0 0
    %3649 = vmatprep.subr.bf16.mxu0 0
    %3650 = vmatpush1.bf16.msra.mxu0 0
    %3651 = vmatprep.subr.bf16.mxu0 0
    %3652 = vmatpush1.bf16.msra.mxu0 0
    %3653 = vmatprep.subr.bf16.mxu0 0
    %3654 = vmatpush1.bf16.msra.mxu0 0
    %3655 = vmatprep.subr.bf16.mxu0 0
    %3656 = vmatpush1.bf16.msra.mxu0 0
    %3657 = vmatprep.subr.bf16.mxu0 0
    %3658 = vmatpush1.bf16.msra.mxu0 0
    %3659 = vmatprep.subr.bf16.mxu0 0
    %3660 = vmatpush1.bf16.msra.mxu0 0
    %3661 = vmatprep.subr.bf16.mxu0 0
    %3662 = vmatpush1.bf16.msra.mxu0 0
    %3663 = vmatprep.subr.bf16.mxu0 0
    %3664 = vmatpush1.bf16.msra.mxu0 0
    %3665 = vmatprep.subr.bf16.mxu0 0
    %3666 = vmatpush1.bf16.msra.mxu0 0
    %3667 = vmatprep.subr.bf16.mxu0 0
    %3668 = vmatpush1.bf16.msra.mxu0 0
    %3669 = vmatprep.subr.bf16.mxu0 0
    %3670 = vmatpush1.bf16.msra.mxu0 0
    %3671 = vmatprep.subr.bf16.mxu0 0
    %3672 = vmatpush1.bf16.msra.mxu0 0
    %3673 = vmatprep.subr.bf16.mxu0 0
    %3674 = vmatpush1.bf16.msra.mxu0 0
    %3675 = vmatprep.mubr.bf16.mxu0 0
    %3676 = vmatmul.mubr.bf16.gmra.mrb[0].mxu0 %v3638
    %v3677 = vpop.f32.mrb[0].mxu0
    %v3678 = vadd.f32 0.0, %v3677
    %v3679 = vpop.f32.mrb[0].mxu0
    %v3680 = vpop.f32.mrb[0].mxu0
    %v3681 = vpop.f32.mrb[0].mxu0
    %3682 = vdwg.mxu0
    %3684 = vrot.lane.b32.xlu0 %v3580, 32
    %v3685 = vpop.permute.xlu0 %3684
    %3688 = vrot.lane.b32.xlu0 %v3629, 64
    %v3689 = vpop.permute.xlu0 %3688
    %3692 = vrot.lane.b32.xlu0 %v3678, 96
    %v3693 = vpop.permute.xlu0 %3692
    %v3695 = vsel %vm695, %v3530, %v3685
    %v3696 = vsel %vm1409, %v3695, %v3689
    %v3697 = vsel %vm1411, %v3696, %v3693
    %v3698 = vpack.c.bf16 %v3697, %v3486
    %v3699 = vld [vmem:[%s2509 + $0xc] sm:$0xf]
    %v3700 = vld [vmem:[%s2509 + $0x2c] sm:$0xf]
    %v3701 = vld [vmem:[%s2509 + $0x4c] sm:$0xf]
    %v3702 = vld [vmem:[%s2509 + $0x6c] sm:$0xf]
    %v3703 = vld [vmem:[%s2509 + $0x8c] sm:$0xf]
    %v3704 = vld [vmem:[%s2509 + $0xac] sm:$0xf]
    %v3705 = vld [vmem:[%s2509 + $0xcc] sm:$0xf]
    %v3706 = vld [vmem:[%s2509 + $0xec] sm:$0xf]
    %v3707 = vld [vmem:[%s2509 + $0x10c] sm:$0xf]
    %v3708 = vld [vmem:[%s2509 + $0x12c] sm:$0xf]
    %v3709 = vld [vmem:[%s2509 + $0x14c] sm:$0xf]
    %v3710 = vld [vmem:[%s2509 + $0x16c] sm:$0xf]
    %v3711 = vld [vmem:[%s2509 + $0x18c] sm:$0xf]
    %v3712 = vld [vmem:[%s2509 + $0x1ac] sm:$0xf]
    %v3713 = vld [vmem:[%s2509 + $0x1cc] sm:$0xf]
    %v3714 = vld [vmem:[%s2509 + $0x1ec] sm:$0xf]
    %v3715 = vld [vmem:[#allocation10 + $0x24] ss:$0 sm:$0xff]
    %v3732 = vunpack.c.l.b16 %v3699
    %v3733 = vunpack.c.l.b16 %v3700
    %v3734 = vunpack.c.l.b16 %v3701
    %v3735 = vunpack.c.l.b16 %v3702
    %v3736 = vunpack.c.l.b16 %v3703
    %v3737 = vunpack.c.l.b16 %v3704
    %v3738 = vunpack.c.l.b16 %v3705
    %v3739 = vunpack.c.l.b16 %v3706
    %v3740 = vunpack.c.l.b16 %v3707
    %v3741 = vunpack.c.l.b16 %v3708
    %v3742 = vunpack.c.l.b16 %v3709
    %v3743 = vunpack.c.l.b16 %v3710
    %v3744 = vunpack.c.l.b16 %v3711
    %v3745 = vunpack.c.l.b16 %v3712
    %v3746 = vunpack.c.l.b16 %v3713
    %v3747 = vunpack.c.l.b16 %v3714
    %v3748 = vpack.c.b16 %v3733, %v3732
    %v3749 = vpack.c.b16 %v3735, %v3734
    %v3750 = vpack.c.b16 %v3737, %v3736
    %v3751 = vpack.c.b16 %v3739, %v3738
    %v3752 = vpack.c.b16 %v3741, %v3740
    %v3753 = vpack.c.b16 %v3743, %v3742
    %v3754 = vpack.c.b16 %v3745, %v3744
    %v3755 = vpack.c.b16 %v3747, %v3746
    %3764 = vmatprep.subr.bf16.mxu0 0
    %3765 = vmatpush1.bf16.msra.mxu0 %v3748
    %3766 = vmatprep.subr.bf16.mxu0 0
    %3767 = vmatpush1.bf16.msra.mxu0 %v3749
    %3768 = vmatprep.subr.bf16.mxu0 0
    %3769 = vmatpush1.bf16.msra.mxu0 %v3750
    %3770 = vmatprep.subr.bf16.mxu0 0
    %3771 = vmatpush1.bf16.msra.mxu0 %v3751
    %3772 = vmatprep.subr.bf16.mxu0 0
    %3773 = vmatpush1.bf16.msra.mxu0 %v3752
    %3774 = vmatprep.subr.bf16.mxu0 0
    %3775 = vmatpush1.bf16.msra.mxu0 %v3753
    %3776 = vmatprep.subr.bf16.mxu0 0
    %3777 = vmatpush1.bf16.msra.mxu0 %v3754
    %3778 = vmatprep.subr.bf16.mxu0 0
    %3779 = vmatpush1.bf16.msra.mxu0 %v3755
    %3780 = vmatprep.subr.bf16.mxu0 0
    %3781 = vmatpush1.bf16.msra.mxu0 0
    %3782 = vmatprep.subr.bf16.mxu0 0
    %3783 = vmatpush1.bf16.msra.mxu0 0
    %3784 = vmatprep.subr.bf16.mxu0 0
    %3785 = vmatpush1.bf16.msra.mxu0 0
    %3786 = vmatprep.subr.bf16.mxu0 0
    %3787 = vmatpush1.bf16.msra.mxu0 0
    %3788 = vmatprep.subr.bf16.mxu0 0
    %3789 = vmatpush1.bf16.msra.mxu0 0
    %3790 = vmatprep.subr.bf16.mxu0 0
    %3791 = vmatpush1.bf16.msra.mxu0 0
    %3792 = vmatprep.subr.bf16.mxu0 0
    %3793 = vmatpush1.bf16.msra.mxu0 0
    %3794 = vmatprep.subr.bf16.mxu0 0
    %3795 = vmatpush1.bf16.msra.mxu0 0
    %3796 = vmatprep.mubr.bf16.mxu0 0
    %3797 = vmatmul.mubr.bf16.gmra.mrb[0].mxu0 %v3698
    %v3798 = vpop.f32.mrb[0].mxu0
    %v3799 = vadd.f32 %v3715, %v3798
    %v3800 = vpop.f32.mrb[0].mxu0
    %v3801 = vpop.f32.mrb[0].mxu0
    %v3802 = vadd.f32 %v3715, %v3801
    %v3803 = vpop.f32.mrb[0].mxu0
    %3804 = vdwg.mxu0
    %v3805 = vadd.f32 %v2506, %v3799
    %v3806 = vadd.f32 %v2507, %v3802
    %v3807 = vld [vmem:[#allocation10 + $0x25] ss:$0 sm:$0xff]
    %v3808 = vld [vmem:[#allocation10 + $0x26] ss:$0 sm:$0xff]
    %3809 = vadd.xlane.f32.xlu0 %v3805
    %v3810 = vpop.xlane.xlu0 %3809
    %3811 = vadd.xlane.f32.xlu0 %v3806
    %v3812 = vpop.xlane.xlu0 %3811
    %v3813 = vmul.f32 %v3810, %v399
    %v3814 = vmul.f32 %v3812, %v399
    %v3815 = vsub.f32 %v3805, %v3813
    %v3816 = vsub.f32 %v3806, %v3814
    %v3817 = vmul.f32 %v3815, %v3815
    %v3818 = vmul.f32 %v3816, %v3816
    %3819 = vadd.xlane.f32.xlu0 %v3817
    %v3820 = vpop.xlane.xlu0 %3819
    %3821 = vadd.xlane.f32.xlu0 %v3818
    %v3822 = vpop.xlane.xlu0 %3821
    %v3823 = vmul.f32 %v3820, %v399
    %v3824 = vmul.f32 %v3822, %v399
    %v3825 = vadd.f32 %v3823, 1e-05
    %v3826 = vadd.f32 %v3824, 1e-05
    %v3827 = vrsqrt.pop %v3825
    %v3828 = vrsqrt.pop %v3826
    %v3829 = vmul.f32 %v3815, %v3827
    %v3830 = vmul.f32 %v3816, %v3828
    %v3831 = vmul.f32 %v3829, %v3807
    %v3832 = vmul.f32 %v3830, %v3807
    %v3833 = vadd.f32 %v3831, %v3808
    %v3834 = vadd.f32 %v3832, %v3808
    %v3835 = vpack.c.bf16 %v3834, %v3833
    %v3836 = vld [vmem:[%s2509 + $0x10] sm:$0xff]
    %v3837 = vld [vmem:[%s2509 + $0x18] sm:$0xff]
    %v3838 = vld [vmem:[%s2509 + $0x30] sm:$0xff]
    %v3839 = vld [vmem:[%s2509 + $0x38] sm:$0xff]
    %v3840 = vld [vmem:[%s2509 + $0x50] sm:$0xff]
    %v3841 = vld [vmem:[%s2509 + $0x58] sm:$0xff]
    %v3842 = vld [vmem:[%s2509 + $0x70] sm:$0xff]
    %v3843 = vld [vmem:[%s2509 + $0x78] sm:$0xff]
    %v3844 = vld [vmem:[%s2509 + $0x90] sm:$0xff]
    %v3845 = vld [vmem:[%s2509 + $0x98] sm:$0xff]
    %v3846 = vld [vmem:[%s2509 + $0xb0] sm:$0xff]
    %v3847 = vld [vmem:[%s2509 + $0xb8] sm:$0xff]
    %v3848 = vld [vmem:[%s2509 + $0xd0] sm:$0xff]
    %v3849 = vld [vmem:[%s2509 + $0xd8] sm:$0xff]
    %v3850 = vld [vmem:[%s2509 + $0xf0] sm:$0xff]
    %v3851 = vld [vmem:[%s2509 + $0xf8] sm:$0xff]
    %v3852 = vld [vmem:[%s2509 + $0x110] sm:$0xff]
    %v3853 = vld [vmem:[%s2509 + $0x118] sm:$0xff]
    %v3854 = vld [vmem:[%s2509 + $0x130] sm:$0xff]
    %v3855 = vld [vmem:[%s2509 + $0x138] sm:$0xff]
    %v3856 = vld [vmem:[%s2509 + $0x150] sm:$0xff]
    %v3857 = vld [vmem:[%s2509 + $0x158] sm:$0xff]
    %v3858 = vld [vmem:[%s2509 + $0x170] sm:$0xff]
    %v3859 = vld [vmem:[%s2509 + $0x178] sm:$0xff]
    %v3860 = vld [vmem:[%s2509 + $0x190] sm:$0xff]
    %v3861 = vld [vmem:[%s2509 + $0x198] sm:$0xff]
    %v3862 = vld [vmem:[%s2509 + $0x1b0] sm:$0xff]
    %v3863 = vld [vmem:[%s2509 + $0x1b8] sm:$0xff]
    %v3864 = vld [vmem:[%s2509 + $0x1d0] sm:$0xff]
    %v3865 = vld [vmem:[%s2509 + $0x1d8] sm:$0xff]
    %v3866 = vld [vmem:[%s2509 + $0x1f0] sm:$0xff]
    %v3867 = vld [vmem:[%s2509 + $0x1f8] sm:$0xff]
    %s3868 = scalar_lea.vmem [#allocation10], 39
    %v3869 = vld [vmem:[%s3868] ss:$8 sm:$0xf]
    %v3871 = vlaneseq
    %v3872 = vshrl.u32 %v3871, 7
    %v3873 = vsub.s32 0, %v3872
    %v3874 = vrot.slane %v3869, %v3873
    %v3875 = vlaneseq
    %v3876 = vshrl.u32 %v3875, 7
    %v3877 = vsub.s32 1, %v3876
    %v3878 = vrot.slane %v3869, %v3877
    %v3879 = vlaneseq
    %v3880 = vshrl.u32 %v3879, 7
    %v3881 = vsub.s32 2, %v3880
    %v3882 = vrot.slane %v3869, %v3881
    %v3883 = vlaneseq
    %v3884 = vshrl.u32 %v3883, 7
    %v3885 = vsub.s32 3, %v3884
    %v3886 = vrot.slane %v3869, %v3885
    %v3923 = vunpack.c.l.b16 %v3836
    %v3924 = vunpack.c.h.b16 %v3836
    %v3925 = vunpack.c.l.b16 %v3837
    %v3926 = vunpack.c.h.b16 %v3837
    %v3927 = vunpack.c.l.b16 %v3838
    %v3928 = vunpack.c.h.b16 %v3838
    %v3929 = vunpack.c.l.b16 %v3839
    %v3930 = vunpack.c.h.b16 %v3839
    %v3931 = vunpack.c.l.b16 %v3840
    %v3932 = vunpack.c.h.b16 %v3840
    %v3933 = vunpack.c.l.b16 %v3841
    %v3934 = vunpack.c.h.b16 %v3841
    %v3935 = vunpack.c.l.b16 %v3842
    %v3936 = vunpack.c.h.b16 %v3842
    %v3937 = vunpack.c.l.b16 %v3843
    %v3938 = vunpack.c.h.b16 %v3843
    %v3939 = vunpack.c.l.b16 %v3844
    %v3940 = vunpack.c.h.b16 %v3844
    %v3941 = vunpack.c.l.b16 %v3845
    %v3942 = vunpack.c.h.b16 %v3845
    %v3943 = vunpack.c.l.b16 %v3846
    %v3944 = vunpack.c.h.b16 %v3846
    %v3945 = vunpack.c.l.b16 %v3847
    %v3946 = vunpack.c.h.b16 %v3847
    %v3947 = vunpack.c.l.b16 %v3848
    %v3948 = vunpack.c.h.b16 %v3848
    %v3949 = vunpack.c.l.b16 %v3849
    %v3950 = vunpack.c.h.b16 %v3849
    %v3951 = vunpack.c.l.b16 %v3850
    %v3952 = vunpack.c.h.b16 %v3850
    %v3953 = vunpack.c.l.b16 %v3851
    %v3954 = vunpack.c.h.b16 %v3851
    %v3955 = vunpack.c.l.b16 %v3852
    %v3956 = vunpack.c.h.b16 %v3852
    %v3957 = vunpack.c.l.b16 %v3853
    %v3958 = vunpack.c.h.b16 %v3853
    %v3959 = vunpack.c.l.b16 %v3854
    %v3960 = vunpack.c.h.b16 %v3854
    %v3961 = vunpack.c.l.b16 %v3855
    %v3962 = vunpack.c.h.b16 %v3855
    %v3963 = vunpack.c.l.b16 %v3856
    %v3964 = vunpack.c.h.b16 %v3856
    %v3965 = vunpack.c.l.b16 %v3857
    %v3966 = vunpack.c.h.b16 %v3857
    %v3967 = vunpack.c.l.b16 %v3858
    %v3968 = vunpack.c.h.b16 %v3858
    %v3969 = vunpack.c.l.b16 %v3859
    %v3970 = vunpack.c.h.b16 %v3859
    %v3971 = vunpack.c.l.b16 %v3860
    %v3972 = vunpack.c.h.b16 %v3860
    %v3973 = vunpack.c.l.b16 %v3861
    %v3974 = vunpack.c.h.b16 %v3861
    %v3975 = vunpack.c.l.b16 %v3862
    %v3976 = vunpack.c.h.b16 %v3862
    %v3977 = vunpack.c.l.b16 %v3863
    %v3978 = vunpack.c.h.b16 %v3863
    %v3979 = vunpack.c.l.b16 %v3864
    %v3980 = vunpack.c.h.b16 %v3864
    %v3981 = vunpack.c.l.b16 %v3865
    %v3982 = vunpack.c.h.b16 %v3865
    %v3983 = vunpack.c.l.b16 %v3866
    %v3984 = vunpack.c.h.b16 %v3866
    %v3985 = vunpack.c.l.b16 %v3867
    %v3986 = vunpack.c.h.b16 %v3867
    %v3987 = vpack.c.b16 %v3927, %v3923
    %v3988 = vpack.c.b16 %v3928, %v3924
    %v3989 = vpack.c.b16 %v3929, %v3925
    %v3990 = vpack.c.b16 %v3930, %v3926
    %v3991 = vpack.c.b16 %v3935, %v3931
    %v3992 = vpack.c.b16 %v3936, %v3932
    %v3993 = vpack.c.b16 %v3937, %v3933
    %v3994 = vpack.c.b16 %v3938, %v3934
    %v3995 = vpack.c.b16 %v3943, %v3939
    %v3996 = vpack.c.b16 %v3944, %v3940
    %v3997 = vpack.c.b16 %v3945, %v3941
    %v3998 = vpack.c.b16 %v3946, %v3942
    %v3999 = vpack.c.b16 %v3951, %v3947
    %v4000 = vpack.c.b16 %v3952, %v3948
    %v4001 = vpack.c.b16 %v3953, %v3949
    %v4002 = vpack.c.b16 %v3954, %v3950
    %v4003 = vpack.c.b16 %v3959, %v3955
    %v4004 = vpack.c.b16 %v3960, %v3956
    %v4005 = vpack.c.b16 %v3961, %v3957
    %v4006 = vpack.c.b16 %v3962, %v3958
    %v4007 = vpack.c.b16 %v3967, %v3963
    %v4008 = vpack.c.b16 %v3968, %v3964
    %v4009 = vpack.c.b16 %v3969, %v3965
    %v4010 = vpack.c.b16 %v3970, %v3966
    %v4011 = vpack.c.b16 %v3975, %v3971
    %v4012 = vpack.c.b16 %v3976, %v3972
    %v4013 = vpack.c.b16 %v3977, %v3973
    %v4014 = vpack.c.b16 %v3978, %v3974
    %v4015 = vpack.c.b16 %v3983, %v3979
    %v4016 = vpack.c.b16 %v3984, %v3980
    %v4017 = vpack.c.b16 %v3985, %v3981
    %v4018 = vpack.c.b16 %v3986, %v3982
    %4051 = vmatprep.subr.bf16.mxu0 %v3988
    %4052 = vmatpush1.bf16.msra.mxu0 %v3987
    %4053 = vmatprep.subr.bf16.mxu0 %v3992
    %4054 = vmatpush1.bf16.msra.mxu0 %v3991
    %4055 = vmatprep.subr.bf16.mxu0 %v3996
    %4056 = vmatpush1.bf16.msra.mxu0 %v3995
    %4057 = vmatprep.subr.bf16.mxu0 %v4000
    %4058 = vmatpush1.bf16.msra.mxu0 %v3999
    %4059 = vmatprep.subr.bf16.mxu0 %v4004
    %4060 = vmatpush1.bf16.msra.mxu0 %v4003
    %4061 = vmatprep.subr.bf16.mxu0 %v4008
    %4062 = vmatpush1.bf16.msra.mxu0 %v4007
    %4063 = vmatprep.subr.bf16.mxu0 %v4012
    %4064 = vmatpush1.bf16.msra.mxu0 %v4011
    %4065 = vmatprep.subr.bf16.mxu0 %v4016
    %4066 = vmatpush1.bf16.msra.mxu0 %v4015
    %4067 = vmatprep.subr.bf16.mxu0 0
    %4068 = vmatpush1.bf16.msra.mxu0 0
    %4069 = vmatprep.subr.bf16.mxu0 0
    %4070 = vmatpush1.bf16.msra.mxu0 0
    %4071 = vmatprep.subr.bf16.mxu0 0
    %4072 = vmatpush1.bf16.msra.mxu0 0
    %4073 = vmatprep.subr.bf16.mxu0 0
    %4074 = vmatpush1.bf16.msra.mxu0 0
    %4075 = vmatprep.subr.bf16.mxu0 0
    %4076 = vmatpush1.bf16.msra.mxu0 0
    %4077 = vmatprep.subr.bf16.mxu0 0
    %4078 = vmatpush1.bf16.msra.mxu0 0
    %4079 = vmatprep.subr.bf16.mxu0 0
    %4080 = vmatpush1.bf16.msra.mxu0 0
    %4081 = vmatprep.subr.bf16.mxu0 0
    %4082 = vmatpush1.bf16.msra.mxu0 0
    %4083 = vmatprep.mubr.bf16.mxu0 0
    %4084 = vmatmul.mubr.bf16.gmra.mrb[0].mxu0 %v3835
    %v4085 = vpop.f32.mrb[0].mxu0
    %v4086 = vadd.f32 %v3874, %v4085
    %v4087 = vpop.f32.mrb[0].mxu0
    %v4088 = vadd.f32 %v3878, %v4087
    %v4089 = vpop.f32.mrb[0].mxu0
    %v4090 = vadd.f32 %v3874, %v4089
    %v4091 = vpop.f32.mrb[0].mxu0
    %v4092 = vadd.f32 %v3878, %v4091
    %4093 = vdwg.mxu0
    %4094 = vmatprep.subr.bf16.mxu0 %v3990
    %4095 = vmatpush1.bf16.msra.mxu0 %v3989
    %4096 = vmatprep.subr.bf16.mxu0 %v3994
    %4097 = vmatpush1.bf16.msra.mxu0 %v3993
    %4098 = vmatprep.subr.bf16.mxu0 %v3998
    %4099 = vmatpush1.bf16.msra.mxu0 %v3997
    %4100 = vmatprep.subr.bf16.mxu0 %v4002
    %4101 = vmatpush1.bf16.msra.mxu0 %v4001
    %4102 = vmatprep.subr.bf16.mxu0 %v4006
    %4103 = vmatpush1.bf16.msra.mxu0 %v4005
    %4104 = vmatprep.subr.bf16.mxu0 %v4010
    %4105 = vmatpush1.bf16.msra.mxu0 %v4009
    %4106 = vmatprep.subr.bf16.mxu0 %v4014
    %4107 = vmatpush1.bf16.msra.mxu0 %v4013
    %4108 = vmatprep.subr.bf16.mxu0 %v4018
    %4109 = vmatpush1.bf16.msra.mxu0 %v4017
    %4110 = vmatprep.subr.bf16.mxu0 0
    %4111 = vmatpush1.bf16.msra.mxu0 0
    %4112 = vmatprep.subr.bf16.mxu0 0
    %4113 = vmatpush1.bf16.msra.mxu0 0
    %4114 = vmatprep.subr.bf16.mxu0 0
    %4115 = vmatpush1.bf16.msra.mxu0 0
    %4116 = vmatprep.subr.bf16.mxu0 0
    %4117 = vmatpush1.bf16.msra.mxu0 0
    %4118 = vmatprep.subr.bf16.mxu0 0
    %4119 = vmatpush1.bf16.msra.mxu0 0
    %4120 = vmatprep.subr.bf16.mxu0 0
    %4121 = vmatpush1.bf16.msra.mxu0 0
    %4122 = vmatprep.subr.bf16.mxu0 0
    %4123 = vmatpush1.bf16.msra.mxu0 0
    %4124 = vmatprep.subr.bf16.mxu0 0
    %4125 = vmatpush1.bf16.msra.mxu0 0
    %4126 = vmatprep.mubr.bf16.mxu0 0
    %4127 = vmatmul.mubr.bf16.gmra.mrb[0].mxu0 %v3835
    %v4128 = vpop.f32.mrb[0].mxu0
    %v4129 = vadd.f32 %v3882, %v4128
    %v4130 = vpop.f32.mrb[0].mxu0
    %v4131 = vadd.f32 %v3886, %v4130
    %v4132 = vpop.f32.mrb[0].mxu0
    %v4133 = vadd.f32 %v3882, %v4132
    %v4134 = vpop.f32.mrb[0].mxu0
    %v4135 = vadd.f32 %v3886, %v4134
    %4136 = vdwg.mxu0
    %v4137 = vmul.f32 %v4086, 0.5
    %v4138 = vmul.f32 %v4088, 0.5
    %v4139 = vmul.f32 %v4129, 0.5
    %v4140 = vmul.f32 %v4131, 0.5
    %v4141 = vmul.f32 %v4090, 0.5
    %v4142 = vmul.f32 %v4092, 0.5
    %v4143 = vmul.f32 %v4133, 0.5
    %v4144 = vmul.f32 %v4135, 0.5
    %v4145 = vmul.f32 %v4086, 0.044715
    %v4146 = vmul.f32 %v4088, 0.044715
    %v4147 = vmul.f32 %v4129, 0.044715
    %v4148 = vmul.f32 %v4131, 0.044715
    %v4149 = vmul.f32 %v4090, 0.044715
    %v4150 = vmul.f32 %v4092, 0.044715
    %v4151 = vmul.f32 %v4133, 0.044715
    %v4152 = vmul.f32 %v4135, 0.044715
    %v4153 = vmul.f32 %v4145, %v4086
    %v4154 = vmul.f32 %v4146, %v4088
    %v4155 = vmul.f32 %v4147, %v4129
    %v4156 = vmul.f32 %v4148, %v4131
    %v4157 = vmul.f32 %v4149, %v4090
    %v4158 = vmul.f32 %v4150, %v4092
    %v4159 = vmul.f32 %v4151, %v4133
    %v4160 = vmul.f32 %v4152, %v4135
    %v4161 = vmul.f32 %v4153, %v4086
    %v4162 = vmul.f32 %v4154, %v4088
    %v4163 = vmul.f32 %v4155, %v4129
    %v4164 = vmul.f32 %v4156, %v4131
    %v4165 = vmul.f32 %v4157, %v4090
    %v4166 = vmul.f32 %v4158, %v4092
    %v4167 = vmul.f32 %v4159, %v4133
    %v4168 = vmul.f32 %v4160, %v4135
    %v4169 = vadd.f32 %v4086, %v4161
    %v4170 = vadd.f32 %v4088, %v4162
    %v4171 = vadd.f32 %v4129, %v4163
    %v4172 = vadd.f32 %v4131, %v4164
    %v4173 = vadd.f32 %v4090, %v4165
    %v4174 = vadd.f32 %v4092, %v4166
    %v4175 = vadd.f32 %v4133, %v4167
    %v4176 = vadd.f32 %v4135, %v4168
    %v4177 = vmul.f32 %v4169, 0.7978846
    %v4178 = vmul.f32 %v4170, 0.7978846
    %v4179 = vmul.f32 %v4171, 0.7978846
    %v4180 = vmul.f32 %v4172, 0.7978846
    %v4181 = vmul.f32 %v4173, 0.7978846
    %v4182 = vmul.f32 %v4174, 0.7978846
    %v4183 = vmul.f32 %v4175, 0.7978846
    %v4184 = vmul.f32 %v4176, 0.7978846
    %v4185 = vtanh.pop %v4177
    %v4186 = vtanh.pop %v4178
    %v4187 = vtanh.pop %v4179
    %v4188 = vtanh.pop %v4180
    %v4189 = vtanh.pop %v4181
    %v4190 = vtanh.pop %v4182
    %v4191 = vtanh.pop %v4183
    %v4192 = vtanh.pop %v4184
    %v4193 = vadd.f32 %v4185, 1.0
    %v4194 = vadd.f32 %v4186, 1.0
    %v4195 = vadd.f32 %v4187, 1.0
    %v4196 = vadd.f32 %v4188, 1.0
    %v4197 = vadd.f32 %v4189, 1.0
    %v4198 = vadd.f32 %v4190, 1.0
    %v4199 = vadd.f32 %v4191, 1.0
    %v4200 = vadd.f32 %v4192, 1.0
    %v4201 = vmul.f32 %v4137, %v4193
    %v4202 = vmul.f32 %v4138, %v4194
    %v4203 = vmul.f32 %v4139, %v4195
    %v4204 = vmul.f32 %v4140, %v4196
    %v4205 = vmul.f32 %v4141, %v4197
    %v4206 = vmul.f32 %v4142, %v4198
    %v4207 = vmul.f32 %v4143, %v4199
    %v4208 = vmul.f32 %v4144, %v4200
    %v4209 = vpack.c.bf16 %v4205, %v4201
    %v4210 = vpack.c.bf16 %v4206, %v4202
    %v4211 = vpack.c.bf16 %v4207, %v4203
    %v4212 = vpack.c.bf16 %v4208, %v4204
    %s4213 = scalar_lea.vmem [#allocation13], 256
    %v4214 = vld [vmem:[%s4213] sm:$0xf]
    %v4215 = vld [vmem:[%s4213 + $0x4] sm:$0xf]
    %v4216 = vld [vmem:[%s4213 + $0x8] sm:$0xf]
    %v4217 = vld [vmem:[%s4213 + $0xc] sm:$0xf]
    %v4218 = vld [vmem:[%s4213 + $0x10] sm:$0xf]
    %v4219 = vld [vmem:[%s4213 + $0x14] sm:$0xf]
    %v4220 = vld [vmem:[%s4213 + $0x18] sm:$0xf]
    %v4221 = vld [vmem:[%s4213 + $0x1c] sm:$0xf]
    %v4222 = vld [vmem:[%s4213 + $0x20] sm:$0xf]
    %v4223 = vld [vmem:[%s4213 + $0x24] sm:$0xf]
    %v4224 = vld [vmem:[%s4213 + $0x28] sm:$0xf]
    %v4225 = vld [vmem:[%s4213 + $0x2c] sm:$0xf]
    %v4226 = vld [vmem:[%s4213 + $0x30] sm:$0xf]
    %v4227 = vld [vmem:[%s4213 + $0x34] sm:$0xf]
    %v4228 = vld [vmem:[%s4213 + $0x38] sm:$0xf]
    %v4229 = vld [vmem:[%s4213 + $0x3c] sm:$0xf]
    %v4230 = vld [vmem:[%s4213 + $0x40] sm:$0xf]
    %v4231 = vld [vmem:[%s4213 + $0x44] sm:$0xf]
    %v4232 = vld [vmem:[%s4213 + $0x48] sm:$0xf]
    %v4233 = vld [vmem:[%s4213 + $0x4c] sm:$0xf]
    %v4234 = vld [vmem:[%s4213 + $0x50] sm:$0xf]
    %v4235 = vld [vmem:[%s4213 + $0x54] sm:$0xf]
    %v4236 = vld [vmem:[%s4213 + $0x58] sm:$0xf]
    %v4237 = vld [vmem:[%s4213 + $0x5c] sm:$0xf]
    %v4238 = vld [vmem:[%s4213 + $0x60] sm:$0xf]
    %v4239 = vld [vmem:[%s4213 + $0x64] sm:$0xf]
    %v4240 = vld [vmem:[%s4213 + $0x68] sm:$0xf]
    %v4241 = vld [vmem:[%s4213 + $0x6c] sm:$0xf]
    %v4242 = vld [vmem:[%s4213 + $0x70] sm:$0xf]
    %v4243 = vld [vmem:[%s4213 + $0x74] sm:$0xf]
    %v4244 = vld [vmem:[%s4213 + $0x78] sm:$0xf]
    %v4245 = vld [vmem:[%s4213 + $0x7c] sm:$0xf]
    %v4246 = vld [vmem:[%s4213 + $0x80] sm:$0xf]
    %v4247 = vld [vmem:[%s4213 + $0x84] sm:$0xf]
    %v4248 = vld [vmem:[%s4213 + $0x88] sm:$0xf]
    %v4249 = vld [vmem:[%s4213 + $0x8c] sm:$0xf]
    %v4250 = vld [vmem:[%s4213 + $0x90] sm:$0xf]
    %v4251 = vld [vmem:[%s4213 + $0x94] sm:$0xf]
    %v4252 = vld [vmem:[%s4213 + $0x98] sm:$0xf]
    %v4253 = vld [vmem:[%s4213 + $0x9c] sm:$0xf]
    %v4254 = vld [vmem:[%s4213 + $0xa0] sm:$0xf]
    %v4255 = vld [vmem:[%s4213 + $0xa4] sm:$0xf]
    %v4256 = vld [vmem:[%s4213 + $0xa8] sm:$0xf]
    %v4257 = vld [vmem:[%s4213 + $0xac] sm:$0xf]
    %v4258 = vld [vmem:[%s4213 + $0xb0] sm:$0xf]
    %v4259 = vld [vmem:[%s4213 + $0xb4] sm:$0xf]
    %v4260 = vld [vmem:[%s4213 + $0xb8] sm:$0xf]
    %v4261 = vld [vmem:[%s4213 + $0xbc] sm:$0xf]
    %v4262 = vld [vmem:[%s4213 + $0xc0] sm:$0xf]
    %v4263 = vld [vmem:[%s4213 + $0xc4] sm:$0xf]
    %v4264 = vld [vmem:[%s4213 + $0xc8] sm:$0xf]
    %v4265 = vld [vmem:[%s4213 + $0xcc] sm:$0xf]
    %v4266 = vld [vmem:[%s4213 + $0xd0] sm:$0xf]
    %v4267 = vld [vmem:[%s4213 + $0xd4] sm:$0xf]
    %v4268 = vld [vmem:[%s4213 + $0xd8] sm:$0xf]
    %v4269 = vld [vmem:[%s4213 + $0xdc] sm:$0xf]
    %v4270 = vld [vmem:[%s4213 + $0xe0] sm:$0xf]
    %v4271 = vld [vmem:[%s4213 + $0xe4] sm:$0xf]
    %v4272 = vld [vmem:[%s4213 + $0xe8] sm:$0xf]
    %v4273 = vld [vmem:[%s4213 + $0xec] sm:$0xf]
    %v4274 = vld [vmem:[%s4213 + $0xf0] sm:$0xf]
    %v4275 = vld [vmem:[%s4213 + $0xf4] sm:$0xf]
    %v4276 = vld [vmem:[%s4213 + $0xf8] sm:$0xf]
    %v4277 = vld [vmem:[%s4213 + $0xfc] sm:$0xf]
    %v4278 = vld [vmem:[#allocation10 + $0x40] ss:$0 sm:$0xff]
    %v4343 = vunpack.c.l.b16 %v4214
    %v4344 = vunpack.c.l.b16 %v4215
    %v4345 = vunpack.c.l.b16 %v4216
    %v4346 = vunpack.c.l.b16 %v4217
    %v4347 = vunpack.c.l.b16 %v4218
    %v4348 = vunpack.c.l.b16 %v4219
    %v4349 = vunpack.c.l.b16 %v4220
    %v4350 = vunpack.c.l.b16 %v4221
    %v4351 = vunpack.c.l.b16 %v4222
    %v4352 = vunpack.c.l.b16 %v4223
    %v4353 = vunpack.c.l.b16 %v4224
    %v4354 = vunpack.c.l.b16 %v4225
    %v4355 = vunpack.c.l.b16 %v4226
    %v4356 = vunpack.c.l.b16 %v4227
    %v4357 = vunpack.c.l.b16 %v4228
    %v4358 = vunpack.c.l.b16 %v4229
    %v4359 = vunpack.c.l.b16 %v4230
    %v4360 = vunpack.c.l.b16 %v4231
    %v4361 = vunpack.c.l.b16 %v4232
    %v4362 = vunpack.c.l.b16 %v4233
    %v4363 = vunpack.c.l.b16 %v4234
    %v4364 = vunpack.c.l.b16 %v4235
    %v4365 = vunpack.c.l.b16 %v4236
    %v4366 = vunpack.c.l.b16 %v4237
    %v4367 = vunpack.c.l.b16 %v4238
    %v4368 = vunpack.c.l.b16 %v4239
    %v4369 = vunpack.c.l.b16 %v4240
    %v4370 = vunpack.c.l.b16 %v4241
    %v4371 = vunpack.c.l.b16 %v4242
    %v4372 = vunpack.c.l.b16 %v4243
    %v4373 = vunpack.c.l.b16 %v4244
    %v4374 = vunpack.c.l.b16 %v4245
    %v4375 = vunpack.c.l.b16 %v4246
    %v4376 = vunpack.c.l.b16 %v4247
    %v4377 = vunpack.c.l.b16 %v4248
    %v4378 = vunpack.c.l.b16 %v4249
    %v4379 = vunpack.c.l.b16 %v4250
    %v4380 = vunpack.c.l.b16 %v4251
    %v4381 = vunpack.c.l.b16 %v4252
    %v4382 = vunpack.c.l.b16 %v4253
    %v4383 = vunpack.c.l.b16 %v4254
    %v4384 = vunpack.c.l.b16 %v4255
    %v4385 = vunpack.c.l.b16 %v4256
    %v4386 = vunpack.c.l.b16 %v4257
    %v4387 = vunpack.c.l.b16 %v4258
    %v4388 = vunpack.c.l.b16 %v4259
    %v4389 = vunpack.c.l.b16 %v4260
    %v4390 = vunpack.c.l.b16 %v4261
    %v4391 = vunpack.c.l.b16 %v4262
    %v4392 = vunpack.c.l.b16 %v4263
    %v4393 = vunpack.c.l.b16 %v4264
    %v4394 = vunpack.c.l.b16 %v4265
    %v4395 = vunpack.c.l.b16 %v4266
    %v4396 = vunpack.c.l.b16 %v4267
    %v4397 = vunpack.c.l.b16 %v4268
    %v4398 = vunpack.c.l.b16 %v4269
    %v4399 = vunpack.c.l.b16 %v4270
    %v4400 = vunpack.c.l.b16 %v4271
    %v4401 = vunpack.c.l.b16 %v4272
    %v4402 = vunpack.c.l.b16 %v4273
    %v4403 = vunpack.c.l.b16 %v4274
    %v4404 = vunpack.c.l.b16 %v4275
    %v4405 = vunpack.c.l.b16 %v4276
    %v4406 = vunpack.c.l.b16 %v4277
    %v4407 = vpack.c.b16 %v4344, %v4343
    %v4408 = vpack.c.b16 %v4346, %v4345
    %v4409 = vpack.c.b16 %v4348, %v4347
    %v4410 = vpack.c.b16 %v4350, %v4349
    %v4411 = vpack.c.b16 %v4352, %v4351
    %v4412 = vpack.c.b16 %v4354, %v4353
    %v4413 = vpack.c.b16 %v4356, %v4355
    %v4414 = vpack.c.b16 %v4358, %v4357
    %v4415 = vpack.c.b16 %v4360, %v4359
    %v4416 = vpack.c.b16 %v4362, %v4361
    %v4417 = vpack.c.b16 %v4364, %v4363
    %v4418 = vpack.c.b16 %v4366, %v4365
    %v4419 = vpack.c.b16 %v4368, %v4367
    %v4420 = vpack.c.b16 %v4370, %v4369
    %v4421 = vpack.c.b16 %v4372, %v4371
    %v4422 = vpack.c.b16 %v4374, %v4373
    %v4423 = vpack.c.b16 %v4376, %v4375
    %v4424 = vpack.c.b16 %v4378, %v4377
    %v4425 = vpack.c.b16 %v4380, %v4379
    %v4426 = vpack.c.b16 %v4382, %v4381
    %v4427 = vpack.c.b16 %v4384, %v4383
    %v4428 = vpack.c.b16 %v4386, %v4385
    %v4429 = vpack.c.b16 %v4388, %v4387
    %v4430 = vpack.c.b16 %v4390, %v4389
    %v4431 = vpack.c.b16 %v4392, %v4391
    %v4432 = vpack.c.b16 %v4394, %v4393
    %v4433 = vpack.c.b16 %v4396, %v4395
    %v4434 = vpack.c.b16 %v4398, %v4397
    %v4435 = vpack.c.b16 %v4400, %v4399
    %v4436 = vpack.c.b16 %v4402, %v4401
    %v4437 = vpack.c.b16 %v4404, %v4403
    %v4438 = vpack.c.b16 %v4406, %v4405
    %4471 = vmatprep.subr.bf16.mxu0 0
    %4472 = vmatpush1.bf16.msra.mxu0 %v4407
    %4473 = vmatprep.subr.bf16.mxu0 0
    %4474 = vmatpush1.bf16.msra.mxu0 %v4408
    %4475 = vmatprep.subr.bf16.mxu0 0
    %4476 = vmatpush1.bf16.msra.mxu0 %v4409
    %4477 = vmatprep.subr.bf16.mxu0 0
    %4478 = vmatpush1.bf16.msra.mxu0 %v4410
    %4479 = vmatprep.subr.bf16.mxu0 0
    %4480 = vmatpush1.bf16.msra.mxu0 %v4411
    %4481 = vmatprep.subr.bf16.mxu0 0
    %4482 = vmatpush1.bf16.msra.mxu0 %v4412
    %4483 = vmatprep.subr.bf16.mxu0 0
    %4484 = vmatpush1.bf16.msra.mxu0 %v4413
    %4485 = vmatprep.subr.bf16.mxu0 0
    %4486 = vmatpush1.bf16.msra.mxu0 %v4414
    %4487 = vmatprep.subr.bf16.mxu0 0
    %4488 = vmatpush1.bf16.msra.mxu0 %v4415
    %4489 = vmatprep.subr.bf16.mxu0 0
    %4490 = vmatpush1.bf16.msra.mxu0 %v4416
    %4491 = vmatprep.subr.bf16.mxu0 0
    %4492 = vmatpush1.bf16.msra.mxu0 %v4417
    %4493 = vmatprep.subr.bf16.mxu0 0
    %4494 = vmatpush1.bf16.msra.mxu0 %v4418
    %4495 = vmatprep.subr.bf16.mxu0 0
    %4496 = vmatpush1.bf16.msra.mxu0 %v4419
    %4497 = vmatprep.subr.bf16.mxu0 0
    %4498 = vmatpush1.bf16.msra.mxu0 %v4420
    %4499 = vmatprep.subr.bf16.mxu0 0
    %4500 = vmatpush1.bf16.msra.mxu0 %v4421
    %4501 = vmatprep.subr.bf16.mxu0 0
    %4502 = vmatpush1.bf16.msra.mxu0 %v4422
    %4503 = vmatprep.mubr.bf16.mxu0 %v4210
    %4504 = vmatmul.mubr.bf16.gmra.mrb[0].mxu0 %v4209
    %v4505 = vpop.f32.mrb[0].mxu0
    %v4506 = vadd.f32 %v4278, %v4505
    %v4507 = vpop.f32.mrb[0].mxu0
    %v4508 = vpop.f32.mrb[0].mxu0
    %v4509 = vadd.f32 %v4278, %v4508
    %v4510 = vpop.f32.mrb[0].mxu0
    %4511 = vdwg.mxu0
    %4512 = vmatprep.subr.bf16.mxu0 0
    %4513 = vmatpush1.bf16.msra.mxu0 %v4423
    %4514 = vmatprep.subr.bf16.mxu0 0
    %4515 = vmatpush1.bf16.msra.mxu0 %v4424
    %4516 = vmatprep.subr.bf16.mxu0 0
    %4517 = vmatpush1.bf16.msra.mxu0 %v4425
    %4518 = vmatprep.subr.bf16.mxu0 0
    %4519 = vmatpush1.bf16.msra.mxu0 %v4426
    %4520 = vmatprep.subr.bf16.mxu0 0
    %4521 = vmatpush1.bf16.msra.mxu0 %v4427
    %4522 = vmatprep.subr.bf16.mxu0 0
    %4523 = vmatpush1.bf16.msra.mxu0 %v4428
    %4524 = vmatprep.subr.bf16.mxu0 0
    %4525 = vmatpush1.bf16.msra.mxu0 %v4429
    %4526 = vmatprep.subr.bf16.mxu0 0
    %4527 = vmatpush1.bf16.msra.mxu0 %v4430
    %4528 = vmatprep.subr.bf16.mxu0 0
    %4529 = vmatpush1.bf16.msra.mxu0 %v4431
    %4530 = vmatprep.subr.bf16.mxu0 0
    %4531 = vmatpush1.bf16.msra.mxu0 %v4432
    %4532 = vmatprep.subr.bf16.mxu0 0
    %4533 = vmatpush1.bf16.msra.mxu0 %v4433
    %4534 = vmatprep.subr.bf16.mxu0 0
    %4535 = vmatpush1.bf16.msra.mxu0 %v4434
    %4536 = vmatprep.subr.bf16.mxu0 0
    %4537 = vmatpush1.bf16.msra.mxu0 %v4435
    %4538 = vmatprep.subr.bf16.mxu0 0
    %4539 = vmatpush1.bf16.msra.mxu0 %v4436
    %4540 = vmatprep.subr.bf16.mxu0 0
    %4541 = vmatpush1.bf16.msra.mxu0 %v4437
    %4542 = vmatprep.subr.bf16.mxu0 0
    %4543 = vmatpush1.bf16.msra.mxu0 %v4438
    %4544 = vmatprep.mubr.bf16.mxu0 %v4212
    %4545 = vmatmul.mubr.bf16.gmra.mrb[0].mxu0 %v4211
    %v4546 = vpop.f32.mrb[0].mxu0
    %v4547 = vadd.f32 %v4506, %v4546
    %v4548 = vpop.f32.mrb[0].mxu0
    %v4549 = vpop.f32.mrb[0].mxu0
    %v4550 = vadd.f32 %v4509, %v4549
    %v4551 = vpop.f32.mrb[0].mxu0
    %4552 = vdwg.mxu0
    %v4553 = vadd.f32 %v3833, %v4547
    %v4554 = vadd.f32 %v3834, %v4550
    %v4555 = vld [vmem:[#allocation10 + $0x41] ss:$0 sm:$0xff]
    %v4556 = vld [vmem:[#allocation10 + $0x42] ss:$0 sm:$0xff]
    %4557 = vadd.xlane.f32.xlu0 %v4553
    %v4558 = vpop.xlane.xlu0 %4557
    %4559 = vadd.xlane.f32.xlu0 %v4554
    %v4560 = vpop.xlane.xlu0 %4559
    %v4561 = vmul.f32 %v4558, %v399
    %v4562 = vmul.f32 %v4560, %v399
    %v4563 = vsub.f32 %v4553, %v4561
    %v4564 = vsub.f32 %v4554, %v4562
    %v4565 = vmul.f32 %v4563, %v4563
    %v4566 = vmul.f32 %v4564, %v4564
    %4567 = vadd.xlane.f32.xlu0 %v4565
    %v4568 = vpop.xlane.xlu0 %4567
    %4569 = vadd.xlane.f32.xlu0 %v4566
    %v4570 = vpop.xlane.xlu0 %4569
    %v4571 = vmul.f32 %v4568, %v399
    %v4572 = vmul.f32 %v4570, %v399
    %v4573 = vadd.f32 %v4571, 1e-05
    %v4574 = vadd.f32 %v4572, 1e-05
    %v4575 = vrsqrt.pop %v4573
    %v4576 = vrsqrt.pop %v4574
    %v4577 = vmul.f32 %v4563, %v4575
    %v4578 = vmul.f32 %v4564, %v4576
    %v4579 = vmul.f32 %v4577, %v4555
    %v4580 = vmul.f32 %v4578, %v4555
    %v4581 = vadd.f32 %v4579, %v4556
    %v4582 = vadd.f32 %v4580, %v4556
    %v4583 = vpack.c.bf16 %v4582, %v4581
    %v4584 = vld [vmem:[#allocation15] sm:$0xff]
    %v4585 = vld [vmem:[#allocation15 + $0x8] sm:$0xff]
    %v4586 = vld [vmem:[#allocation15 + $0x10] sm:$0xff]
    %v4587 = vld [vmem:[#allocation15 + $0x18] sm:$0xff]
    %v4588 = vld [vmem:[#allocation15 + $0x20] sm:$0xff]
    %v4589 = vld [vmem:[#allocation15 + $0x28] sm:$0xff]
    %v4590 = vld [vmem:[#allocation15 + $0x30] sm:$0xff]
    %v4591 = vld [vmem:[#allocation15 + $0x38] sm:$0xff]
    %v4592 = vld [vmem:[#allocation15 + $0x40] sm:$0xff]
    %v4593 = vld [vmem:[#allocation15 + $0x48] sm:$0xff]
    %v4594 = vld [vmem:[#allocation15 + $0x50] sm:$0xff]
    %v4595 = vld [vmem:[#allocation15 + $0x58] sm:$0xff]
    %v4596 = vld [vmem:[#allocation15 + $0x60] sm:$0xff]
    %v4597 = vld [vmem:[#allocation15 + $0x68] sm:$0xff]
    %v4598 = vld [vmem:[#allocation15 + $0x70] sm:$0xff]
    %v4599 = vld [vmem:[#allocation15 + $0x78] sm:$0xff]
    %s4600 = scalar_lea.vmem [#allocation10], 2
    %v4601 = vld [vmem:[%s4600] ss:$8 sm:$0x3]
    %v4603 = vlaneseq
    %v4604 = vshrl.u32 %v4603, 7
    %v4605 = vsub.s32 0, %v4604
    %v4606 = vrot.slane %v4601, %v4605
    %v4607 = vlaneseq
    %v4608 = vshrl.u32 %v4607, 7
    %v4609 = vsub.s32 1, %v4608
    %v4610 = vrot.slane %v4601, %v4609
    %v4629 = vunpack.c.l.b16 %v4584
    %v4630 = vunpack.c.h.b16 %v4584
    %v4631 = vunpack.c.l.b16 %v4585
    %v4632 = vunpack.c.h.b16 %v4585
    %v4633 = vunpack.c.l.b16 %v4586
    %v4634 = vunpack.c.h.b16 %v4586
    %v4635 = vunpack.c.l.b16 %v4587
    %v4636 = vunpack.c.h.b16 %v4587
    %v4637 = vunpack.c.l.b16 %v4588
    %v4638 = vunpack.c.h.b16 %v4588
    %v4639 = vunpack.c.l.b16 %v4589
    %v4640 = vunpack.c.h.b16 %v4589
    %v4641 = vunpack.c.l.b16 %v4590
    %v4642 = vunpack.c.h.b16 %v4590
    %v4643 = vunpack.c.l.b16 %v4591
    %v4644 = vunpack.c.h.b16 %v4591
    %v4645 = vunpack.c.l.b16 %v4592
    %v4646 = vunpack.c.h.b16 %v4592
    %v4647 = vunpack.c.l.b16 %v4593
    %v4648 = vunpack.c.h.b16 %v4593
    %v4649 = vunpack.c.l.b16 %v4594
    %v4650 = vunpack.c.h.b16 %v4594
    %v4651 = vunpack.c.l.b16 %v4595
    %v4652 = vunpack.c.h.b16 %v4595
    %v4653 = vunpack.c.l.b16 %v4596
    %v4654 = vunpack.c.h.b16 %v4596
    %v4655 = vunpack.c.l.b16 %v4597
    %v4656 = vunpack.c.h.b16 %v4597
    %v4657 = vunpack.c.l.b16 %v4598
    %v4658 = vunpack.c.h.b16 %v4598
    %v4659 = vunpack.c.l.b16 %v4599
    %v4660 = vunpack.c.h.b16 %v4599
    %v4661 = vpack.c.b16 %v4631, %v4629
    %v4662 = vpack.c.b16 %v4632, %v4630
    %v4663 = vpack.c.b16 %v4635, %v4633
    %v4664 = vpack.c.b16 %v4636, %v4634
    %v4665 = vpack.c.b16 %v4639, %v4637
    %v4666 = vpack.c.b16 %v4640, %v4638
    %v4667 = vpack.c.b16 %v4643, %v4641
    %v4668 = vpack.c.b16 %v4644, %v4642
    %v4669 = vpack.c.b16 %v4647, %v4645
    %v4670 = vpack.c.b16 %v4648, %v4646
    %v4671 = vpack.c.b16 %v4651, %v4649
    %v4672 = vpack.c.b16 %v4652, %v4650
    %v4673 = vpack.c.b16 %v4655, %v4653
    %v4674 = vpack.c.b16 %v4656, %v4654
    %v4675 = vpack.c.b16 %v4659, %v4657
    %v4676 = vpack.c.b16 %v4660, %v4658
    %4693 = vmatprep.subr.bf16.mxu0 %v4662
    %4694 = vmatpush1.bf16.msra.mxu0 %v4661
    %4695 = vmatprep.subr.bf16.mxu0 %v4664
    %4696 = vmatpush1.bf16.msra.mxu0 %v4663
    %4697 = vmatprep.subr.bf16.mxu0 %v4666
    %4698 = vmatpush1.bf16.msra.mxu0 %v4665
    %4699 = vmatprep.subr.bf16.mxu0 %v4668
    %4700 = vmatpush1.bf16.msra.mxu0 %v4667
    %4701 = vmatprep.subr.bf16.mxu0 %v4670
    %4702 = vmatpush1.bf16.msra.mxu0 %v4669
    %4703 = vmatprep.subr.bf16.mxu0 %v4672
    %4704 = vmatpush1.bf16.msra.mxu0 %v4671
    %4705 = vmatprep.subr.bf16.mxu0 %v4674
    %4706 = vmatpush1.bf16.msra.mxu0 %v4673
    %4707 = vmatprep.subr.bf16.mxu0 %v4676
    %4708 = vmatpush1.bf16.msra.mxu0 %v4675
    %4709 = vmatprep.subr.bf16.mxu0 0
    %4710 = vmatpush1.bf16.msra.mxu0 0
    %4711 = vmatprep.subr.bf16.mxu0 0
    %4712 = vmatpush1.bf16.msra.mxu0 0
    %4713 = vmatprep.subr.bf16.mxu0 0
    %4714 = vmatpush1.bf16.msra.mxu0 0
    %4715 = vmatprep.subr.bf16.mxu0 0
    %4716 = vmatpush1.bf16.msra.mxu0 0
    %4717 = vmatprep.subr.bf16.mxu0 0
    %4718 = vmatpush1.bf16.msra.mxu0 0
    %4719 = vmatprep.subr.bf16.mxu0 0
    %4720 = vmatpush1.bf16.msra.mxu0 0
    %4721 = vmatprep.subr.bf16.mxu0 0
    %4722 = vmatpush1.bf16.msra.mxu0 0
    %4723 = vmatprep.subr.bf16.mxu0 0
    %4724 = vmatpush1.bf16.msra.mxu0 0
    %4725 = vmatprep.mubr.bf16.mxu0 0
    %4726 = vmatmul.mubr.bf16.gmra.mrb[0].mxu0 %v4583
    %v4727 = vpop.f32.mrb[0].mxu0
    %v4728 = vadd.f32 %v4606, %v4727
    %v4729 = vpop.f32.mrb[0].mxu0
    %v4730 = vadd.f32 %v4610, %v4729
    %v4731 = vpop.f32.mrb[0].mxu0
    %v4732 = vadd.f32 %v4606, %v4731
    %v4733 = vpop.f32.mrb[0].mxu0
    %v4734 = vadd.f32 %v4610, %v4733
    %4735 = vdwg.mxu0
    %v4736 = vmax.f32 %v4728, %v4730
    %4737 = vmax.xlane.f32.xlu0 %v4736
    %v4738 = vpop.xlane.xlu0 %4737
    %v4739 = vmax.f32 %v4732, %v4734
    %4740 = vmax.xlane.f32.xlu0 %v4739
    %v4741 = vpop.xlane.xlu0 %4740
    %v4742 = vsub.f32 %v4728, %v4738
    %v4743 = vsub.f32 %v4730, %v4738
    %v4744 = vsub.f32 %v4732, %v4741
    %v4745 = vsub.f32 %v4734, %v4741
    %v4746 = vmul.f32 %v4742, 1.442695
    %v4747 = vpow.pop %v4746
    %v4748 = vmul.f32 %v4743, 1.442695
    %v4749 = vpow.pop %v4748
    %v4750 = vmul.f32 %v4744, 1.442695
    %v4751 = vpow.pop %v4750
    %v4752 = vmul.f32 %v4745, 1.442695
    %v4753 = vpow.pop %v4752
    %v4754 = vadd.f32 %v4747, %v4749
    %4755 = vadd.xlane.f32.xlu0 %v4754
    %v4756 = vpop.xlane.xlu0 %4755
    %v4757 = vadd.f32 %v4751, %v4753
    %4758 = vadd.xlane.f32.xlu0 %v4757
    %v4759 = vpop.xlane.xlu0 %4758
    %v4760 = vlog2.pop %v4756
    %v4761 = vmul.f32 %v4760, 0.6931472
    %v4762 = vlog2.pop %v4759
    %v4763 = vmul.f32 %v4762, 0.6931472
    %v4764 = vadd.f32 %v4761, %v4738
    %v4765 = vadd.f32 %v4763, %v4741
    %v4766 = vsub.f32 %v4728, %v4764
    %v4767 = vsub.f32 %v4730, %v4764
    %v4768 = vsub.f32 %v4732, %v4765
    %v4769 = vsub.f32 %v4734, %v4765
    %4770 = vst [vmem:[#allocation16] sm:$0xff] %v4766
    %4771 = vst [vmem:[#allocation16 + $0x8] sm:$0xff] %v4767
    %4772 = vst [vmem:[#allocation16 + $0x10] sm:$0xff] %v4768
    %4773 = vst [vmem:[#allocation16 + $0x18] sm:$0xff] %v4769
    // Predicated region
    $region58: #{bert_mlm_forward.1} parent=1 // pred_check
      _
    $region59: #{bert_mlm_forward.1} parent=1 // pred_check_branch
      %4775 = sbr.rel (0) target = $region61
    $region60: #{bert_mlm_forward.1} parent=1 // pred_region
      %s4777 = ssub.s32 512, 512
      %4778 = vsyncadd [#allocation5], %s4777
      %s4779 = sshll.u32 [#allocation16], 4
      %s4780 = int_to_ptr.vmem [resolvable:$true] %s4779
      %4785 = dma.vmem_to_hbm [thread:$0]  %s4780, 512, %s7, [#allocation5], 256, 256, 16
    $region61: #{bert_mlm_forward.1} parent=1 // pred_fallthru
      _
    // Predicated region
    $region62: #{bert_mlm_forward.1} parent=1 // pred_check
      _
    $region63: #{bert_mlm_forward.1} parent=1 // pred_check_branch
      %4787 = sbr.rel (0) target = $region65
    $region64: #{bert_mlm_forward.1} parent=1 // pred_region
      %4788 = dma.done [#allocation5], 512
    $region65: #{bert_mlm_forward.1} parent=1 // pred_fallthru
      _
    %4789 = vsyncpa [#allocation4], 1
    %4790 = vsyncpa [#allocation11], 1
    %4791 = vsyncpa [#allocation14], 1
    %4792 = vsyncpa [#allocation5], 1
    %4793 = vsyncpa [#allocation6], 1
    %4794 = vsyncpa [#allocation8], 1

</llo_original>
